<compile_context>
chip_gen: v5e
topology: v5e:2x2
jax: 0.10.0
libtpu: 0.0.40
codegen_flags: <defaults>
</compile_context>

<pallas_src>
import functools
import numpy as np
import jax
import jax.numpy as jnp
from jax.experimental import pallas as pl
from jax.experimental.pallas import tpu as pltpu

LANE = 128
SUBLANE = 8
EPS = 1e-5


def _vmem_limit_bytes():
    # Per-generation sizing: stay inside v7x's 64 MiB/TC, use more on v5e/v6e.
    try:
        cap = int(pltpu.get_tpu_info().vmem_capacity_bytes)
        return min(int(cap * 0.85), 112 * 1024 * 1024)
    except Exception:
        return 56 * 1024 * 1024


VMEM_LIMIT = _vmem_limit_bytes()


# ---------------------------------------------------------------------------
# small helpers
# ---------------------------------------------------------------------------

def _round_up(v, m):
    return ((v + m - 1) // m) * m


def _pad2(a, rows, cols):
    a = jnp.asarray(a, jnp.float32)
    return jnp.pad(a, ((0, rows - a.shape[0]), (0, cols - a.shape[1])))


def _pad_row(v, cols, fill=0.0):
    v = jnp.asarray(v, jnp.float32).reshape(1, -1)
    return jnp.pad(v, ((0, 0), (0, cols - v.shape[1])), constant_values=fill)


def _cparams(sem):
    return pltpu.CompilerParams(dimension_semantics=sem, vmem_limit_bytes=VMEM_LIMIT)


def _bn_train(v, gamma, beta, mask, inv_n):
    # BatchNorm1d training semantics (batch mean, biased variance) over the real
    # rows (padded rows are exactly zero, so plain column sums are exact).
    # Centered, masked two-pass variance avoids E[x^2]-mean^2 cancellation.
    mean = jnp.sum(v, axis=0, keepdims=True) * inv_n
    d = (v - mean) * mask
    var = jnp.sum(d * d, axis=0, keepdims=True) * inv_n
    return (v - mean) * jax.lax.rsqrt(var + EPS) * gamma + beta


# ---------------------------------------------------------------------------
# Kernel 1: bn_feat + conv_feat (gfn=True -> X @ W, no propagation) + ReLU
# ---------------------------------------------------------------------------

def _feat_kernel(x_ref, m_ref, g_ref, b_ref, w_ref, o_ref, *, inv_n):
    mask = m_ref[...]
    xn = _bn_train(x_ref[...], g_ref[...], b_ref[...], mask, inv_n)
    y = jnp.dot(xn.astype(jnp.bfloat16), w_ref[...],
                preferred_element_type=jnp.float32)
    o_ref[...] = (jnp.maximum(y, 0.0) * mask).astype(o_ref.dtype)


def feat_transform(x_pad, node_mask, gamma, beta, w_bf16, n_real):
    # TODO(synk): row-tile this grid=(1,) kernel (2-pass BN stats) once the
    #             (n_pad, f_pad) slab no longer fits comfortably in VMEM.
    n_pad, f_pad = x_pad.shape
    h_pad = w_bf16.shape[1]
    return pl.pallas_call(
        functools.partial(_feat_kernel, inv_n=1.0 / float(n_real)),
        out_shape=jax.ShapeDtypeStruct((n_pad, h_pad), jnp.bfloat16),
        grid=(1,),
        in_specs=[
            pl.BlockSpec((n_pad, f_pad), lambda i: (0, 0)),
            pl.BlockSpec((n_pad, 1), lambda i: (0, 0)),
            pl.BlockSpec((1, f_pad), lambda i: (0, 0)),
            pl.BlockSpec((1, f_pad), lambda i: (0, 0)),
            pl.BlockSpec((f_pad, h_pad), lambda i: (0, 0)),
        ],
        out_specs=pl.BlockSpec((n_pad, h_pad), lambda i: (0, 0)),
        compiler_params=_cparams(("arbitrary",)),
    )(x_pad, node_mask, gamma, beta, w_bf16)


# ---------------------------------------------------------------------------
# Kernel 2: ALL GIN layers fused.  grid = (num_layers,), "arbitrary" (serial dep).
#   A (=I+adjacency, bf16) uses a constant-index full BlockSpec -> one HBM read,
#   resident in VMEM for every layer.  The layer activation lives in the revisited
#   output block (read back at l>0).
#   layer(x) = relu( relu(BN( A @ (x @ W1) )) @ W2 + b2 ) * mask    (b1 cancels in BN)
# ---------------------------------------------------------------------------

def _gin_stack_kernel(a_ref, x0_ref, m_ref, w1_ref, g_ref, b_ref, w2_ref, b2_ref,
                      o_ref, *, inv_n):
    l = pl.program_id(0)
    mask = m_ref[...]

    def layer(x_bf):
        xw = jnp.dot(x_bf, w1_ref[0], preferred_element_type=jnp.float32)
        agg = jnp.dot(a_ref[...], xw.astype(jnp.bfloat16),
                      preferred_element_type=jnp.float32)
        h = jnp.maximum(_bn_train(agg, g_ref[0], b_ref[0], mask, inv_n), 0.0)
        y = jnp.dot(h.astype(jnp.bfloat16), w2_ref[0],
                    preferred_element_type=jnp.float32) + b2_ref[0]
        o_ref[...] = (jnp.maximum(y, 0.0) * mask).astype(o_ref.dtype)

    @pl.when(l == 0)
    def _():
        layer(x0_ref[...])

    @pl.when(l != 0)
    def _():
        layer(o_ref[...])      # previous layer's activation is still resident


def gin_stack(a_bf16, x0, node_mask, w1s, gammas, betas, w2s, b2s, n_real):
    n_pad, h_pad = x0.shape
    num_layers = w1s.shape[0]
    flops = num_layers * 2 * n_pad * h_pad * (2 * h_pad + n_pad)
    bytes_acc = ((a_bf16.size + x0.size + n_pad * h_pad + w1s.size + w2s.size) * 2
                 + (gammas.size + betas.size + b2s.size) * 4)
    return pl.pallas_call(
        functools.partial(_gin_stack_kernel, inv_n=1.0 / float(n_real)),
        out_shape=jax.ShapeDtypeStruct((n_pad, h_pad), jnp.bfloat16),
        grid=(num_layers,),
        in_specs=[
            pl.BlockSpec((n_pad, n_pad), lambda l: (0, 0)),       # A: DMA'd once
            pl.BlockSpec((n_pad, h_pad), lambda l: (0, 0)),       # x0 (layer 0 input)
            pl.BlockSpec((n_pad, 1), lambda l: (0, 0)),           # row mask
            pl.BlockSpec((1, h_pad, h_pad), lambda l: (l, 0, 0)),  # W1[l]
            pl.BlockSpec((1, 1, h_pad), lambda l: (l, 0, 0)),      # gamma[l]
            pl.BlockSpec((1, 1, h_pad), lambda l: (l, 0, 0)),      # beta[l]
            pl.BlockSpec((1, h_pad, h_pad), lambda l: (l, 0, 0)),  # W2[l]
            pl.BlockSpec((1, 1, h_pad), lambda l: (l, 0, 0)),      # b2[l]
        ],
        out_specs=pl.BlockSpec((n_pad, h_pad), lambda l: (0, 0)),  # resident across layers
        compiler_params=_cparams(("arbitrary",)),
        cost_estimate=pl.CostEstimate(flops=int(flops),
                                      transcendentals=int(num_layers * h_pad),
                                      bytes_accessed=int(bytes_acc)),
    )(a_bf16, x0, node_mask, w1s, gammas, betas, w2s, b2s)


# ---------------------------------------------------------------------------
# Kernel 3: node attention (2-way softmax) -> xc / xo fused with bnc / bno,
#           plus the per-node halves of the edge-attention logits (one matmul,
#           lane-dense (n_pad, 128) output; per-edge gather happens in glue).
# ---------------------------------------------------------------------------

def _node_branch_kernel(x_ref, m_ref, wall_ref, bnode_ref,
                        gc_ref, bc_ref, go_ref, bo_ref,
                        zc_ref, zo_ref, elog_ref, *, inv_n):
    mask = m_ref[...]
    x_bf = x_ref[...]
    x32 = x_bf.astype(jnp.float32)
    # cols 0:2 -> node-att logits; cols 2:4 -> edge src half; cols 4:6 -> edge dst half
    logits = jnp.dot(x_bf, wall_ref[...], preferred_element_type=jnp.float32)
    elog_ref[...] = logits
    nl = logits + bnode_ref[...]
    l0 = nl[:, 0:1]
    l1 = nl[:, 1:2]
    mx = jnp.maximum(l0, l1)
    e0 = jnp.exp(l0 - mx)
    e1 = jnp.exp(l1 - mx)
    inv = pl.reciprocal(e0 + e1, approx=True)
    xc = (e0 * inv) * x32
    xo = (e1 * inv) * x32
    zc_ref[...] = _bn_train(xc, gc_ref[...], bc_ref[...], mask, inv_n).astype(zc_ref.dtype)
    zo_ref[...] = _bn_train(xo, go_ref[...], bo_ref[...], mask, inv_n).astype(zo_ref.dtype)


def node_branches(x, node_mask, w_all, b_node, gc, bc, go, bo, n_real):
    n_pad, h_pad = x.shape
    full = pl.BlockSpec((n_pad, h_pad), lambda i: (0, 0))
    row_h = pl.BlockSpec((1, h_pad), lambda i: (0, 0))
    return pl.pallas_call(
        functools.partial(_node_branch_kernel, inv_n=1.0 / float(n_real)),
        out_shape=(jax.ShapeDtypeStruct((n_pad, h_pad), jnp.bfloat16),
                   jax.ShapeDtypeStruct((n_pad, h_pad), jnp.bfloat16),
                   jax.ShapeDtypeStruct((n_pad, LANE), jnp.float32)),
        grid=(1,),
        in_specs=[full,
                  pl.BlockSpec((n_pad, 1), lambda i: (0, 0)),
                  pl.BlockSpec((h_pad, LANE), lambda i: (0, 0)),
                  pl.BlockSpec((1, LANE), lambda i: (0, 0)),
                  row_h, row_h, row_h, row_h],
        out_specs=(full, full, pl.BlockSpec((n_pad, LANE), lambda i: (0, 0))),
        compiler_params=_cparams(("arbitrary",)),
    )(x, node_mask, w_all, b_node, gc, bc, go, bo)


# ---------------------------------------------------------------------------
# Kernel 4: objects_convs on both branches: relu(A_norm @ (z @ W) + b) * mask
#   grid = (branch,), "parallel" so megacore can shard branches.
# ---------------------------------------------------------------------------

def _obj_conv_kernel(mat_ref, z_ref, m_ref, w_ref, b_ref, o_ref):
    zw = jnp.dot(z_ref[0], w_ref[...], preferred_element_type=jnp.float32)
    y = jnp.dot(mat_ref[0], zw.astype(jnp.bfloat16),
                preferred_element_type=jnp.float32) + b_ref[...]
    o_ref[0] = (jnp.maximum(y, 0.0) * m_ref[...]).astype(o_ref.dtype)


def obj_conv_branches(mats_bf16, zs, node_mask, w_bf16, b):
    _, n_pad, _ = mats_bf16.shape
    h_pad = zs.shape[2]
    flops = 2 * (2 * n_pad * n_pad * h_pad + 2 * n_pad * h_pad * h_pad)
    bytes_acc = (mats_bf16.size + zs.size + w_bf16.size + 2 * n_pad * h_pad) * 2
    return pl.pallas_call(
        _obj_conv_kernel,
        out_shape=jax.ShapeDtypeStruct((2, n_pad, h_pad), jnp.bfloat16),
        grid=(2,),
        in_specs=[
            pl.BlockSpec((1, n_pad, n_pad), lambda br: (br, 0, 0)),
            pl.BlockSpec((1, n_pad, h_pad), lambda br: (br, 0, 0)),
            pl.BlockSpec((n_pad, 1), lambda br: (0, 0)),
            pl.BlockSpec((h_pad, h_pad), lambda br: (0, 0)),
            pl.BlockSpec((1, h_pad), lambda br: (0, 0)),
        ],
        out_specs=pl.BlockSpec((1, n_pad, h_pad), lambda br: (br, 0, 0)),
        compiler_params=_cparams(("parallel",)),
        cost_estimate=pl.CostEstimate(flops=int(flops), transcendentals=0,
                                      bytes_accessed=int(bytes_acc)),
    )(mats_bf16, zs, node_mask, w_bf16, b)


# ---------------------------------------------------------------------------
# Kernel 5: fused global_add_pool of x, xc, xo as ONE (b_pad,n_pad)@(n_pad,3*h_pad)
#           matmul (operands assembled in a bf16 VMEM scratch -> full MXU width).
# ---------------------------------------------------------------------------

def _pool_kernel(p_ref, x_ref, br_ref, o_ref, xall_ref):
    h_pad = x_ref.shape[1]
    xall_ref[:, 0:h_pad] = x_ref[...]
    xall_ref[:, h_pad:2 * h_pad] = br_ref[0]
    xall_ref[:, 2 * h_pad:3 * h_pad] = br_ref[1]
    o_ref[...] = jnp.dot(p_ref[...], xall_ref[...],
                         preferred_element_type=jnp.float32)


def global_pool(pool_bf16, x, branches):
    b_pad, n_pad = pool_bf16.shape
    h_pad = x.shape[1]
    return pl.pallas_call(
        _pool_kernel,
        out_shape=jax.ShapeDtypeStruct((b_pad, 3 * h_pad), jnp.float32),
        grid=(1,),
        in_specs=[pl.BlockSpec((b_pad, n_pad), lambda i: (0, 0)),
                  pl.BlockSpec((n_pad, h_pad), lambda i: (0, 0)),
                  pl.BlockSpec((2, n_pad, h_pad), lambda i: (0, 0, 0))],
        out_specs=pl.BlockSpec((b_pad, 3 * h_pad), lambda i: (0, 0)),
        scratch_shapes=[pltpu.VMEM((n_pad, 3 * h_pad), jnp.bfloat16)],
        compiler_params=_cparams(("arbitrary",)),
    )(pool_bf16, x, branches)


# ---------------------------------------------------------------------------
# Kernel 6: readout heads (c, co, o) fused; grid=(3,) "parallel" over heads
#   head(x) = fc2(BN2(relu(fc1(BN1(x)))))
# ---------------------------------------------------------------------------

def _readout_kernel(x_ref, m_ref, g1_ref, b1_ref, w1_ref, c1_ref,
                    g2_ref, b2_ref, w2_ref, c2_ref, o_ref, *, inv_b):
    mask = m_ref[...]
    x = x_ref[0]
    h = _bn_train(x, g1_ref[0], b1_ref[0], mask, inv_b)
    h = jnp.maximum(jnp.dot(h, w1_ref[0], preferred_element_type=jnp.float32)
                    + c1_ref[0], 0.0)
    h = h * mask                       # keep padded graph rows out of BN2's stats
    h = _bn_train(h, g2_ref[0], b2_ref[0], mask, inv_b)
    o_ref[0] = jnp.dot(h, w2_ref[0], preferred_element_type=jnp.float32) + c2_ref[0]


def readout_heads(x3, graph_mask, g1, b1, w1, c1, g2, b2, w2, c2, b_real):
    _, b_pad, h_pad = x3.shape
    c_pad = w2.shape[2]
    vec_h = pl.BlockSpec((1, 1, h_pad), lambda h: (h, 0, 0))
    vec_c = pl.BlockSpec((1, 1, c_pad), lambda h: (h, 0, 0))
    return pl.pallas_call(
        functools.partial(_readout_kernel, inv_b=1.0 / float(b_real)),
        out_shape=jax.ShapeDtypeStruct((3, b_pad, c_pad), jnp.float32),
        grid=(3,),
        in_specs=[
            pl.BlockSpec((1, b_pad, h_pad), lambda h: (h, 0, 0)),
            pl.BlockSpec((b_pad, 1), lambda h: (0, 0)),
            vec_h, vec_h,
            pl.BlockSpec((1, h_pad, h_pad), lambda h: (h, 0, 0)),
            vec_h, vec_h, vec_h,
            pl.BlockSpec((1, h_pad, c_pad), lambda h: (h, 0, 0)),
            vec_c,
        ],
        out_specs=pl.BlockSpec((1, b_pad, c_pad), lambda h: (h, 0, 0)),
        compiler_params=_cparams(("parallel",)),
    )(x3, graph_mask, g1, b1, w1, c1, g2, b2, w2, c2)


# ---------------------------------------------------------------------------
# Glue: dense graph operators (index / scatter setup in plain JAX, bf16 outputs)
# ---------------------------------------------------------------------------

def _gcn_norm_matrix_bf16(row, col, edge_weight, n_real, n_pad):
    """CAL GCNConv norm: self-loops weight 1, deg^-1/2 symmetric normalization,
    messages scattered onto target nodes (edge_index[1]).  Built directly in bf16."""
    # TODO(synk): replace the dense O(N^2) densification with a scalar-prefetch
    #             sparse gather/accumulate Pallas kernel for large graphs.
    sl = jnp.arange(n_real, dtype=row.dtype)
    fr = jnp.concatenate([row, sl])
    fc = jnp.concatenate([col, sl])
    fw = jnp.concatenate([edge_weight.astype(jnp.float32),
                          jnp.ones((n_real,), jnp.float32)])
    deg = jnp.zeros((n_pad,), jnp.float32).at[fr].add(fw)
    dis = jnp.where(deg > 0, jax.lax.rsqrt(deg), 0.0)
    norm = dis[fr] * fw * dis[fc]
    return jnp.zeros((n_pad, n_pad), jnp.bfloat16).at[fc, fr].add(
        norm.astype(jnp.bfloat16))


# ---------------------------------------------------------------------------
# Parameters (deterministic synthetic init; BN gamma=1, beta=1e-4 per the module)
# ---------------------------------------------------------------------------

def init_params(key, num_features, hidden, num_classes, num_layers):
    keys = iter(jax.random.split(key, 64))

    def lin(din, dout):
        w = jax.random.normal(next(keys), (din, dout), jnp.float32) / jnp.sqrt(din)
        b = jnp.zeros((dout,), jnp.float32)
        return w, b

    def bn(c):
        return jnp.ones((c,), jnp.float32), jnp.full((c,), 1e-4, jnp.float32)

    p = {}
    p["bn_feat"] = bn(num_features)
    p["conv_feat_w"], _ = lin(num_features, hidden)          # gfn=True: no bias used
    gins = []
    for _ in range(num_layers):
        w1, b1 = lin(hidden, hidden)
        g, bt = bn(hidden)
        w2, b2 = lin(hidden, hidden)
        gins.append((w1, b1, g, bt, w2, b2))
    p["gins"] = gins
    p["edge_att"] = lin(2 * hidden, 2)
    p["node_att"] = lin(hidden, 2)
    p["bnc"] = bn(hidden)
    p["bno"] = bn(hidden)
    p["obj_conv"] = lin(hidden, hidden)                       # shared objects_convs
    for tag in ("c", "o", "co"):                              # cat_or_add = 'add'
        p["fc1_bn_" + tag] = bn(hidden)
        p["fc1_" + tag] = lin(hidden, hidden)
        p["fc2_bn_" + tag] = bn(hidden)
        p["fc2_" + tag] = lin(hidden, num_classes)
    return p


# ---------------------------------------------------------------------------
# Forward pass
# ---------------------------------------------------------------------------

def causal_gin_forward(params, x, edge_index, batch, num_graphs):
    N, F = x.shape
    hidden = params["conv_feat_w"].shape[1]
    num_classes = params["fc2_c"][0].shape[1]
    B = num_graphs
    row, col = edge_index[0], edge_index[1]
    E = int(row.shape[0])

    n_pad = _round_up(N, LANE)
    f_pad = _round_up(F, LANE)
    h_pad = _round_up(hidden, LANE)
    c_pad = _round_up(num_classes, LANE)
    b_pad = _round_up(B, SUBLANE)

    node_mask = (jnp.arange(n_pad) < N).astype(jnp.float32).reshape(n_pad, 1)
    graph_mask = (jnp.arange(b_pad) < B).astype(jnp.float32).reshape(b_pad, 1)

    x_pad = _pad2(x, n_pad, f_pad)

    # bn_feat + conv_feat (gfn=True -> plain X @ W) + relu   (bf16 output)
    x_h = feat_transform(
        x_pad, node_mask,
        _pad_row(params["bn_feat"][0], f_pad, 1.0),
        _pad_row(params["bn_feat"][1], f_pad, 0.0),
        _pad2(params["conv_feat_w"], f_pad, h_pad).astype(jnp.bfloat16),
        n_real=N)

    # GIN aggregation matrix (I + A); built directly in bf16 (exact for the small
    # integer counts) and read from HBM exactly once for all fused layers.
    agg = jnp.zeros((n_pad, n_pad), jnp.bfloat16).at[col, row].add(
        jnp.ones((E,), jnp.bfloat16))
    agg = agg.at[jnp.arange(N), jnp.arange(N)].add(jnp.ones((N,), jnp.bfloat16))

    num_layers = len(params["gins"])
    if num_layers > 0:
        w1s = jnp.stack([_pad2(g[0], h_pad, h_pad) for g in params["gins"]]).astype(jnp.bfloat16)
        gms = jnp.stack([_pad_row(g[2], h_pad, 1.0) for g in params["gins"]])
        bts = jnp.stack([_pad_row(g[3], h_pad, 0.0) for g in params["gins"]])
        w2s = jnp.stack([_pad2(g[4], h_pad, h_pad) for g in params["gins"]]).astype(jnp.bfloat16)
        b2s = jnp.stack([_pad_row(g[5], h_pad, 0.0) for g in params["gins"]])
        # g[1] (Linear1 bias) cancels exactly inside train-mode BatchNorm -> skipped.
        x_h = gin_stack(agg, x_h, node_mask, w1s, gms, bts, w2s, b2s, n_real=N)

    # node attention -> xc / xo (+ bnc/bno), plus edge-logit halves, in one kernel
    wn, bn_b = params["node_att"]
    we, be = params["edge_att"]
    w_all = jnp.zeros((h_pad, LANE), jnp.float32)
    w_all = w_all.at[:hidden, 0:2].set(wn)
    w_all = w_all.at[:hidden, 2:4].set(we[:hidden])
    w_all = w_all.at[:hidden, 4:6].set(we[hidden:])
    b_node = jnp.zeros((1, LANE), jnp.float32).at[0, 0:2].set(bn_b)

    zc, zo, elog = node_branches(
        x_h, node_mask, w_all.astype(jnp.bfloat16), b_node,
        _pad_row(params["bnc"][0], h_pad, 1.0), _pad_row(params["bnc"][1], h_pad, 0.0),
        _pad_row(params["bno"][0], h_pad, 1.0), _pad_row(params["bno"][1], h_pad, 0.0),
        n_real=N)

    # per-edge attention: gather 2 scalars per endpoint, 2-way softmax (tiny glue)
    edge_logits = elog[row, 2:4] + elog[col, 4:6] + be.reshape(1, 2)
    edge_att = jax.nn.softmax(edge_logits, axis=-1)
    ew_c = edge_att[:, 0]
    ew_o = edge_att[:, 1]

    # objects_convs (shared weights) on both branches with per-branch edge weights
    mats = jnp.stack([_gcn_norm_matrix_bf16(row, col, ew_c, N, n_pad),
                      _gcn_norm_matrix_bf16(row, col, ew_o, N, n_pad)])
    zs = jnp.stack([zc, zo])
    branch_nodes = obj_conv_branches(
        mats, zs, node_mask,
        _pad2(params["obj_conv"][0], h_pad, h_pad).astype(jnp.bfloat16),
        _pad_row(params["obj_conv"][1], h_pad, 0.0))

    # fused global_add_pool for x, xc, xo (bf16 one-hot pool matrix)
    pool = jnp.zeros((b_pad, n_pad), jnp.bfloat16).at[
        batch, jnp.arange(N)].set(jnp.ones((N,), jnp.bfloat16))
    pooled = global_pool(pool, x_h, branch_nodes)          # (b_pad, 3*h_pad) f32

    h_graph = pooled[:B, 0:hidden]
    xc_p = pooled[:, h_pad:2 * h_pad]
    xo_p = pooled[:, 2 * h_pad:3 * h_pad]
    xc_real = xc_p[:B, :hidden]
    xo_real = xo_p[:B, :hidden]

    # construct_h_mix_list (pure indexing glue)
    idx = np.arange(B)
    causal_idx = np.repeat(idx, B - 1)
    bias_idx = np.tile(idx, (B, 1))[~np.eye(B, dtype=bool)]
    h_mix_list = (xo_real[causal_idx] + xc_real[bias_idx]).reshape(B, B - 1, -1)

    # readout heads (c, co, o) as one grid=(3,) kernel
    # TODO(synk): PyTorch uses Python random.shuffle per call; replaced with a fixed
    #             deterministic permutation baked at trace time.
    perm = jnp.asarray(np.random.RandomState(0).permutation(B), dtype=jnp.int32)
    perm_pad = jnp.concatenate([perm, jnp.arange(B, b_pad, dtype=jnp.int32)])
    xco_p = xc_p[perm_pad] + xo_p                          # cat_or_add = 'add'
    x3 = jnp.stack([xc_p, xco_p, xo_p])

    tags = ("c", "co", "o")
    g1 = jnp.stack([_pad_row(params["fc1_bn_" + t][0], h_pad, 1.0) for t in tags])
    b1s = jnp.stack([_pad_row(params["fc1_bn_" + t][1], h_pad, 0.0) for t in tags])
    w1r = jnp.stack([_pad2(params["fc1_" + t][0], h_pad, h_pad) for t in tags])
    c1s = jnp.stack([_pad_row(params["fc1_" + t][1], h_pad, 0.0) for t in tags])
    g2 = jnp.stack([_pad_row(params["fc2_bn_" + t][0], h_pad, 1.0) for t in tags])
    b2r = jnp.stack([_pad_row(params["fc2_bn_" + t][1], h_pad, 0.0) for t in tags])
    w2r = jnp.stack([_pad2(params["fc2_" + t][0], h_pad, c_pad) for t in tags])
    c2s = jnp.stack([_pad_row(params["fc2_" + t][1], c_pad, 0.0) for t in tags])

    logits3 = readout_heads(x3, graph_mask, g1, b1s, w1r, c1s, g2, b2r, w2r, c2s,
                            b_real=B)
    xc_logis = logits3[0, :B, :num_classes]
    xco_logis = logits3[1, :B, :num_classes]
    xo_logis = logits3[2, :B, :num_classes]

    return xc_logis, xo_logis, xco_logis, h_graph, h_mix_list


# ---------------------------------------------------------------------------
# Demo
# ---------------------------------------------------------------------------

if __name__ == "__main__":
    num_features, hidden, num_classes, num_layers = 4, 32, 3, 2
    num_graphs, nodes_per_graph = 4, 4
    N = num_graphs * nodes_per_graph

    # deterministic synthetic graph batch: per-graph bidirectional ring
    rows_l, cols_l = [], []
    for g in range(num_graphs):
        base = g * nodes_per_graph
        for i in range(nodes_per_graph):
            j = (i + 1) % nodes_per_graph
            rows_l += [base + i, base + j]
            cols_l += [base + j, base + i]
    edge_index = jnp.array([rows_l, cols_l], dtype=jnp.int32)
    batch = jnp.repeat(jnp.arange(num_graphs, dtype=jnp.int32), nodes_per_graph)

    key = jax.random.PRNGKey(0)
    kx, kp = jax.random.split(key)
    x = jax.random.normal(kx, (N, num_features), jnp.float32)
    params = init_params(kp, num_features, hidden, num_classes, num_layers)

    fwd = jax.jit(functools.partial(causal_gin_forward, num_graphs=num_graphs))
    outs = fwd(params, x, edge_index, batch)
    jax.block_until_ready(outs)

    xc_logis, xo_logis, xco_logis, h_graph, h_mix_list = outs
    assert xc_logis.shape == (num_graphs, num_classes)
    assert xo_logis.shape == (num_graphs, num_classes)
    assert xco_logis.shape == (num_graphs, num_classes)
    assert h_graph.shape == (num_graphs, hidden)
    assert h_mix_list.shape == (num_graphs, num_graphs - 1, hidden)
    for o in (xc_logis, xo_logis, xco_logis, h_graph, h_mix_list):
        assert bool(jnp.all(jnp.isfinite(o)))
    print("KERNEL_OK")
</pallas_src>

<mosaic_0001>
module attributes {stable_mosaic.version = 11 : i64} {
  func.func @_feat_kernel(%arg0: i32, %arg1: memref<128x128xf32, #tpu.memory_space<vmem>>, %arg2: memref<128x1xf32, #tpu.memory_space<vmem>>, %arg3: memref<1x128xf32, #tpu.memory_space<vmem>>, %arg4: memref<1x128xf32, #tpu.memory_space<vmem>>, %arg5: memref<128x128xbf16, #tpu.memory_space<vmem>>, %arg6: memref<128x128xbf16, #tpu.memory_space<vmem>>) attributes {dimension_semantics = [#tpu.dimension_semantics<arbitrary>], iteration_bounds = array<i64: 1>, scalar_prefetch = 0 : i64, scratch_operands = 0 : i64, tpu.core_type = #tpu.core_type<tc>, window_params = [{pipeline_mode = #tpu.pipeline_mode<synchronous>, transform_indices = @transform_0, window_bounds = array<i64: 128, 128>}, {pipeline_mode = #tpu.pipeline_mode<synchronous>, transform_indices = @transform_1, window_bounds = array<i64: 128, 1>}, {pipeline_mode = #tpu.pipeline_mode<synchronous>, transform_indices = @transform_2, window_bounds = array<i64: 1, 128>}, {pipeline_mode = #tpu.pipeline_mode<synchronous>, transform_indices = @transform_3, window_bounds = array<i64: 1, 128>}, {pipeline_mode = #tpu.pipeline_mode<synchronous>, transform_indices = @transform_4, window_bounds = array<i64: 128, 128>}, {pipeline_mode = #tpu.pipeline_mode<synchronous>, transform_indices = @transform_5, window_bounds = array<i64: 128, 128>}]} {
    %c0 = arith.constant 0 : index
    %c0_0 = arith.constant 0 : index
    %0 = vector.load %arg2[%c0, %c0_0] : memref<128x1xf32, #tpu.memory_space<vmem>>, vector<128x1xf32>
    %c0_1 = arith.constant 0 : index
    %c0_2 = arith.constant 0 : index
    %1 = vector.load %arg1[%c0_1, %c0_2] : memref<128x128xf32, #tpu.memory_space<vmem>>, vector<128x128xf32>
    %c0_3 = arith.constant 0 : index
    %c0_4 = arith.constant 0 : index
    %2 = vector.load %arg3[%c0_3, %c0_4] : memref<1x128xf32, #tpu.memory_space<vmem>>, vector<1x128xf32>
    %c0_5 = arith.constant 0 : index
    %c0_6 = arith.constant 0 : index
    %3 = vector.load %arg4[%c0_5, %c0_6] : memref<1x128xf32, #tpu.memory_space<vmem>>, vector<1x128xf32>
    %cst = arith.constant dense<0.000000e+00> : vector<128xf32>
    %4 = vector.multi_reduction <add>, %1, %cst [0] : vector<128x128xf32> to vector<128xf32>
    %5 = vector.shape_cast %4 : vector<128xf32> to vector<1x128xf32>
    %cst_7 = arith.constant 6.250000e-02 : f32
    %6 = vector.broadcast %cst_7 : f32 to vector<1x128xf32>
    %7 = arith.mulf %5, %6 : vector<1x128xf32>
    %8 = vector.broadcast %7 : vector<1x128xf32> to vector<128x128xf32>
    %9 = arith.subf %1, %8 : vector<128x128xf32>
    %10 = vector.broadcast %0 : vector<128x1xf32> to vector<128x128xf32>
    %11 = arith.mulf %9, %10 : vector<128x128xf32>
    %12 = arith.mulf %11, %11 : vector<128x128xf32>
    %cst_8 = arith.constant dense<0.000000e+00> : vector<128xf32>
    %13 = vector.multi_reduction <add>, %12, %cst_8 [0] : vector<128x128xf32> to vector<128xf32>
    %14 = vector.shape_cast %13 : vector<128xf32> to vector<1x128xf32>
    %cst_9 = arith.constant 6.250000e-02 : f32
    %15 = vector.broadcast %cst_9 : f32 to vector<1x128xf32>
    %16 = arith.mulf %14, %15 : vector<1x128xf32>
    %17 = vector.broadcast %7 : vector<1x128xf32> to vector<128x128xf32>
    %18 = arith.subf %1, %17 : vector<128x128xf32>
    %cst_10 = arith.constant 9.99999974E-6 : f32
    %19 = vector.broadcast %cst_10 : f32 to vector<1x128xf32>
    %20 = arith.addf %16, %19 : vector<1x128xf32>
    %21 = math.rsqrt %20 : vector<1x128xf32>
    %22 = vector.broadcast %21 : vector<1x128xf32> to vector<128x128xf32>
    %23 = arith.mulf %18, %22 : vector<128x128xf32>
    %24 = vector.broadcast %2 : vector<1x128xf32> to vector<128x128xf32>
    %25 = arith.mulf %23, %24 : vector<128x128xf32>
    %26 = vector.broadcast %3 : vector<1x128xf32> to vector<128x128xf32>
    %27 = arith.addf %25, %26 : vector<128x128xf32>
    %28 = arith.truncf %27 : vector<128x128xf32> to vector<128x128xbf16>
    %c0_11 = arith.constant 0 : index
    %c0_12 = arith.constant 0 : index
    %29 = vector.load %arg5[%c0_11, %c0_12] : memref<128x128xbf16, #tpu.memory_space<vmem>>, vector<128x128xbf16>
    %cst_13 = arith.constant dense<0.000000e+00> : vector<128x128xf32>
    %30 = tpu.matmul %28, %29, %cst_13 {dimension_numbers = #tpu.dot_dimension_numbers<[1], [0], [0], [1], [0, 0, 1, 1], [], []>} : vector<128x128xbf16>, vector<128x128xbf16>, vector<128x128xf32> -> vector<128x128xf32>
    %cst_14 = arith.constant 0.000000e+00 : f32
    %31 = vector.broadcast %cst_14 : f32 to vector<128x128xf32>
    %32 = arith.maximumf %30, %31 : vector<128x128xf32>
    %33 = vector.broadcast %0 : vector<128x1xf32> to vector<128x128xf32>
    %34 = arith.mulf %32, %33 : vector<128x128xf32>
    %35 = arith.truncf %34 : vector<128x128xf32> to vector<128x128xbf16>
    %c0_15 = arith.constant 0 : index
    %c0_16 = arith.constant 0 : index
    %36 = vector.load %arg6[%c0_15, %c0_16] : memref<128x128xbf16, #tpu.memory_space<vmem>>, vector<128x128xbf16>
    tpu.vector_store %arg6[%c0_15, %c0_16], %35 {strides = array<i32>} : memref<128x128xbf16, #tpu.memory_space<vmem>>, vector<128x128xbf16>,
    return
  }
  func.func @transform_0(%arg0: i32) -> (i32, i32) {
    %c0_i32 = arith.constant 0 : i32
    %c0_i32_0 = arith.constant 0 : i32
    %c0_i32_1 = arith.constant 0 : i32
    return %c0_i32, %c0_i32_0 : i32, i32
  }
  func.func @transform_1(%arg0: i32) -> (i32, i32) {
    %c0_i32 = arith.constant 0 : i32
    %c0_i32_0 = arith.constant 0 : i32
    %c0_i32_1 = arith.constant 0 : i32
    return %c0_i32, %c0_i32_0 : i32, i32
  }
  func.func @transform_2(%arg0: i32) -> (i32, i32) {
    %c0_i32 = arith.constant 0 : i32
    %c0_i32_0 = arith.constant 0 : i32
    %c0_i32_1 = arith.constant 0 : i32
    return %c0_i32, %c0_i32_0 : i32, i32
  }
  func.func @transform_3(%arg0: i32) -> (i32, i32) {
    %c0_i32 = arith.constant 0 : i32
    %c0_i32_0 = arith.constant 0 : i32
    %c0_i32_1 = arith.constant 0 : i32
    return %c0_i32, %c0_i32_0 : i32, i32
  }
  func.func @transform_4(%arg0: i32) -> (i32, i32) {
    %c0_i32 = arith.constant 0 : i32
    %c0_i32_0 = arith.constant 0 : i32
    %c0_i32_1 = arith.constant 0 : i32
    return %c0_i32, %c0_i32_0 : i32, i32
  }
  func.func @transform_5(%arg0: i32) -> (i32, i32) {
    %c0_i32 = arith.constant 0 : i32
    %c0_i32_0 = arith.constant 0 : i32
    %c0_i32_1 = arith.constant 0 : i32
    return %c0_i32, %c0_i32_0 : i32, i32
  }
}

module attributes {stable_mosaic.version = 11 : i64} {
  func.func @_gin_stack_kernel(%arg0: i32, %arg1: memref<128x128xbf16, #tpu.memory_space<vmem>>, %arg2: memref<128x128xbf16, #tpu.memory_space<vmem>>, %arg3: memref<128x1xf32, #tpu.memory_space<vmem>>, %arg4: memref<1x128x128xbf16, #tpu.memory_space<vmem>>, %arg5: memref<1x1x128xf32, #tpu.memory_space<vmem>>, %arg6: memref<1x1x128xf32, #tpu.memory_space<vmem>>, %arg7: memref<1x128x128xbf16, #tpu.memory_space<vmem>>, %arg8: memref<1x1x128xf32, #tpu.memory_space<vmem>>, %arg9: memref<128x128xbf16, #tpu.memory_space<vmem>>) attributes {dimension_semantics = [#tpu.dimension_semantics<arbitrary>], iteration_bounds = array<i64: 2>, scalar_prefetch = 0 : i64, scratch_operands = 0 : i64, tpu.core_type = #tpu.core_type<tc>, window_params = [{pipeline_mode = #tpu.pipeline_mode<synchronous>, transform_indices = @transform_0, window_bounds = array<i64: 128, 128>}, {pipeline_mode = #tpu.pipeline_mode<synchronous>, transform_indices = @transform_1, window_bounds = array<i64: 128, 128>}, {pipeline_mode = #tpu.pipeline_mode<synchronous>, transform_indices = @transform_2, window_bounds = array<i64: 128, 1>}, {transform_indices = @transform_3, window_bounds = array<i64: 1, 128, 128>}, {transform_indices = @transform_4, window_bounds = array<i64: 1, 1, 128>}, {transform_indices = @transform_5, window_bounds = array<i64: 1, 1, 128>}, {transform_indices = @transform_6, window_bounds = array<i64: 1, 128, 128>}, {transform_indices = @transform_7, window_bounds = array<i64: 1, 1, 128>}, {pipeline_mode = #tpu.pipeline_mode<synchronous>, transform_indices = @transform_8, window_bounds = array<i64: 128, 128>}]} {
    %c0 = arith.constant 0 : index
    %c0_0 = arith.constant 0 : index
    %0 = vector.load %arg3[%c0, %c0_0] : memref<128x1xf32, #tpu.memory_space<vmem>>, vector<128x1xf32>
    %c0_i32 = arith.constant 0 : i32
    %1 = arith.cmpi eq, %arg0, %c0_i32 : i32
    %2 = arith.extui %1 : i1 to i32
    %c0_i32_1 = arith.constant 0 : i32
    %3 = arith.cmpi ne, %2, %c0_i32_1 : i32
    scf.if %3 {
      %c0_4 = arith.constant 0 : index
      %c0_5 = arith.constant 0 : index
      %7 = vector.load %arg2[%c0_4, %c0_5] : memref<128x128xbf16, #tpu.memory_space<vmem>>, vector<128x128xbf16>
      %c0_6 = arith.constant 0 : index
      %c0_7 = arith.constant 0 : index
      %c0_8 = arith.constant 0 : index
      %8 = vector.load %arg4[%c0_6, %c0_7, %c0_8] : memref<1x128x128xbf16, #tpu.memory_space<vmem>>, vector<1x128x128xbf16>
      %9 = vector.shape_cast %8 : vector<1x128x128xbf16> to vector<128x128xbf16>
      %cst = arith.constant dense<0.000000e+00> : vector<128x128xf32>
      %10 = tpu.matmul %7, %9, %cst {dimension_numbers = #tpu.dot_dimension_numbers<[1], [0], [0], [1], [0, 0, 1, 1], [], []>} : vector<128x128xbf16>, vector<128x128xbf16>, vector<128x128xf32> -> vector<128x128xf32>
      %c0_9 = arith.constant 0 : index
      %c0_10 = arith.constant 0 : index
      %11 = vector.load %arg1[%c0_9, %c0_10] : memref<128x128xbf16, #tpu.memory_space<vmem>>, vector<128x128xbf16>
      %12 = arith.truncf %10 : vector<128x128xf32> to vector<128x128xbf16>
      %cst_11 = arith.constant dense<0.000000e+00> : vector<128x128xf32>
      %13 = tpu.matmul %11, %12, %cst_11 {dimension_numbers = #tpu.dot_dimension_numbers<[1], [0], [0], [1], [0, 0, 1, 1], [], []>} : vector<128x128xbf16>, vector<128x128xbf16>, vector<128x128xf32> -> vector<128x128xf32>
      %c0_12 = arith.constant 0 : index
      %c0_13 = arith.constant 0 : index
      %c0_14 = arith.constant 0 : index
      %14 = vector.load %arg5[%c0_12, %c0_13, %c0_14] : memref<1x1x128xf32, #tpu.memory_space<vmem>>, vector<1x1x128xf32>
      %15 = vector.shape_cast %14 : vector<1x1x128xf32> to vector<1x128xf32>
      %c0_15 = arith.constant 0 : index
      %c0_16 = arith.constant 0 : index
      %c0_17 = arith.constant 0 : index
      %16 = vector.load %arg6[%c0_15, %c0_16, %c0_17] : memref<1x1x128xf32, #tpu.memory_space<vmem>>, vector<1x1x128xf32>
      %17 = vector.shape_cast %16 : vector<1x1x128xf32> to vector<1x128xf32>
      %cst_18 = arith.constant dense<0.000000e+00> : vector<128xf32>
      %18 = vector.multi_reduction <add>, %13, %cst_18 [0] : vector<128x128xf32> to vector<128xf32>
      %19 = vector.shape_cast %18 : vector<128xf32> to vector<1x128xf32>
      %cst_19 = arith.constant 6.250000e-02 : f32
      %20 = vector.broadcast %cst_19 : f32 to vector<1x128xf32>
      %21 = arith.mulf %19, %20 : vector<1x128xf32>
      %22 = vector.broadcast %21 : vector<1x128xf32> to vector<128x128xf32>
      %23 = arith.subf %13, %22 : vector<128x128xf32>
      %24 = vector.broadcast %0 : vector<128x1xf32> to vector<128x128xf32>
      %25 = arith.mulf %23, %24 : vector<128x128xf32>
      %26 = arith.mulf %25, %25 : vector<128x128xf32>
      %cst_20 = arith.constant dense<0.000000e+00> : vector<128xf32>
      %27 = vector.multi_reduction <add>, %26, %cst_20 [0] : vector<128x128xf32> to vector<128xf32>
      %28 = vector.shape_cast %27 : vector<128xf32> to vector<1x128xf32>
      %cst_21 = arith.constant 6.250000e-02 : f32
      %29 = vector.broadcast %cst_21 : f32 to vector<1x128xf32>
      %30 = arith.mulf %28, %29 : vector<1x128xf32>
      %31 = vector.broadcast %21 : vector<1x128xf32> to vector<128x128xf32>
      %32 = arith.subf %13, %31 : vector<128x128xf32>
      %cst_22 = arith.constant 9.99999974E-6 : f32
      %33 = vector.broadcast %cst_22 : f32 to vector<1x128xf32>
      %34 = arith.addf %30, %33 : vector<1x128xf32>
      %35 = math.rsqrt %34 : vector<1x128xf32>
      %36 = vector.broadcast %35 : vector<1x128xf32> to vector<128x128xf32>
      %37 = arith.mulf %32, %36 : vector<128x128xf32>
      %38 = vector.broadcast %15 : vector<1x128xf32> to vector<128x128xf32>
      %39 = arith.mulf %37, %38 : vector<128x128xf32>
      %40 = vector.broadcast %17 : vector<1x128xf32> to vector<128x128xf32>
      %41 = arith.addf %39, %40 : vector<128x128xf32>
      %cst_23 = arith.constant 0.000000e+00 : f32
      %42 = vector.broadcast %cst_23 : f32 to vector<128x128xf32>
      %43 = arith.maximumf %41, %42 : vector<128x128xf32>
      %44 = arith.truncf %43 : vector<128x128xf32> to vector<128x128xbf16>
      %c0_24 = arith.constant 0 : index
      %c0_25 = arith.constant 0 : index
      %c0_26 = arith.constant 0 : index
      %45 = vector.load %arg7[%c0_24, %c0_25, %c0_26] : memref<1x128x128xbf16, #tpu.memory_space<vmem>>, vector<1x128x128xbf16>
      %46 = vector.shape_cast %45 : vector<1x128x128xbf16> to vector<128x128xbf16>
      %cst_27 = arith.constant dense<0.000000e+00> : vector<128x128xf32>
      %47 = tpu.matmul %44, %46, %cst_27 {dimension_numbers = #tpu.dot_dimension_numbers<[1], [0], [0], [1], [0, 0, 1, 1], [], []>} : vector<128x128xbf16>, vector<128x128xbf16>, vector<128x128xf32> -> vector<128x128xf32>
      %c0_28 = arith.constant 0 : index
      %c0_29 = arith.constant 0 : index
      %c0_30 = arith.constant 0 : index
      %48 = vector.load %arg8[%c0_28, %c0_29, %c0_30] : memref<1x1x128xf32, #tpu.memory_space<vmem>>, vector<1x1x128xf32>
      %49 = vector.shape_cast %48 : vector<1x1x128xf32> to vector<1x128xf32>
      %50 = vector.broadcast %49 : vector<1x128xf32> to vector<128x128xf32>
      %51 = arith.addf %47, %50 : vector<128x128xf32>
      %cst_31 = arith.constant 0.000000e+00 : f32
      %52 = vector.broadcast %cst_31 : f32 to vector<128x128xf32>
      %53 = arith.maximumf %51, %52 : vector<128x128xf32>
      %54 = vector.broadcast %0 : vector<128x1xf32> to vector<128x128xf32>
      %55 = arith.mulf %53, %54 : vector<128x128xf32>
      %56 = arith.truncf %55 : vector<128x128xf32> to vector<128x128xbf16>
      %c0_32 = arith.constant 0 : index
      %c0_33 = arith.constant 0 : index
      %57 = vector.load %arg9[%c0_32, %c0_33] : memref<128x128xbf16, #tpu.memory_space<vmem>>, vector<128x128xbf16>
      tpu.vector_store %arg9[%c0_32, %c0_33], %56 {strides = array<i32>} : memref<128x128xbf16, #tpu.memory_space<vmem>>, vector<128x128xbf16>,
    } else {
    }
    %c0_i32_2 = arith.constant 0 : i32
    %4 = arith.cmpi ne, %arg0, %c0_i32_2 : i32
    %5 = arith.extui %4 : i1 to i32
    %c0_i32_3 = arith.constant 0 : i32
    %6 = arith.cmpi ne, %5, %c0_i32_3 : i32
    scf.if %6 {
      %c0_4 = arith.constant 0 : index
      %c0_5 = arith.constant 0 : index
      %7 = vector.load %arg9[%c0_4, %c0_5] : memref<128x128xbf16, #tpu.memory_space<vmem>>, vector<128x128xbf16>
      %c0_6 = arith.constant 0 : index
      %c0_7 = arith.constant 0 : index
      %c0_8 = arith.constant 0 : index
      %8 = vector.load %arg4[%c0_6, %c0_7, %c0_8] : memref<1x128x128xbf16, #tpu.memory_space<vmem>>, vector<1x128x128xbf16>
      %9 = vector.shape_cast %8 : vector<1x128x128xbf16> to vector<128x128xbf16>
      %cst = arith.constant dense<0.000000e+00> : vector<128x128xf32>
      %10 = tpu.matmul %7, %9, %cst {dimension_numbers = #tpu.dot_dimension_numbers<[1], [0], [0], [1], [0, 0, 1, 1], [], []>} : vector<128x128xbf16>, vector<128x128xbf16>, vector<128x128xf32> -> vector<128x128xf32>
      %c0_9 = arith.constant 0 : index
      %c0_10 = arith.constant 0 : index
      %11 = vector.load %arg1[%c0_9, %c0_10] : memref<128x128xbf16, #tpu.memory_space<vmem>>, vector<128x128xbf16>
      %12 = arith.truncf %10 : vector<128x128xf32> to vector<128x128xbf16>
      %cst_11 = arith.constant dense<0.000000e+00> : vector<128x128xf32>
      %13 = tpu.matmul %11, %12, %cst_11 {dimension_numbers = #tpu.dot_dimension_numbers<[1], [0], [0], [1], [0, 0, 1, 1], [], []>} : vector<128x128xbf16>, vector<128x128xbf16>, vector<128x128xf32> -> vector<128x128xf32>
      %c0_12 = arith.constant 0 : index
      %c0_13 = arith.constant 0 : index
      %c0_14 = arith.constant 0 : index
      %14 = vector.load %arg5[%c0_12, %c0_13, %c0_14] : memref<1x1x128xf32, #tpu.memory_space<vmem>>, vector<1x1x128xf32>
      %15 = vector.shape_cast %14 : vector<1x1x128xf32> to vector<1x128xf32>
      %c0_15 = arith.constant 0 : index
      %c0_16 = arith.constant 0 : index
      %c0_17 = arith.constant 0 : index
      %16 = vector.load %arg6[%c0_15, %c0_16, %c0_17] : memref<1x1x128xf32, #tpu.memory_space<vmem>>, vector<1x1x128xf32>
      %17 = vector.shape_cast %16 : vector<1x1x128xf32> to vector<1x128xf32>
      %cst_18 = arith.constant dense<0.000000e+00> : vector<128xf32>
      %18 = vector.multi_reduction <add>, %13, %cst_18 [0] : vector<128x128xf32> to vector<128xf32>
      %19 = vector.shape_cast %18 : vector<128xf32> to vector<1x128xf32>
      %cst_19 = arith.constant 6.250000e-02 : f32
      %20 = vector.broadcast %cst_19 : f32 to vector<1x128xf32>
      %21 = arith.mulf %19, %20 : vector<1x128xf32>
      %22 = vector.broadcast %21 : vector<1x128xf32> to vector<128x128xf32>
      %23 = arith.subf %13, %22 : vector<128x128xf32>
      %24 = vector.broadcast %0 : vector<128x1xf32> to vector<128x128xf32>
      %25 = arith.mulf %23, %24 : vector<128x128xf32>
      %26 = arith.mulf %25, %25 : vector<128x128xf32>
      %cst_20 = arith.constant dense<0.000000e+00> : vector<128xf32>
      %27 = vector.multi_reduction <add>, %26, %cst_20 [0] : vector<128x128xf32> to vector<128xf32>
      %28 = vector.shape_cast %27 : vector<128xf32> to vector<1x128xf32>
      %cst_21 = arith.constant 6.250000e-02 : f32
      %29 = vector.broadcast %cst_21 : f32 to vector<1x128xf32>
      %30 = arith.mulf %28, %29 : vector<1x128xf32>
      %31 = vector.broadcast %21 : vector<1x128xf32> to vector<128x128xf32>
      %32 = arith.subf %13, %31 : vector<128x128xf32>
      %cst_22 = arith.constant 9.99999974E-6 : f32
      %33 = vector.broadcast %cst_22 : f32 to vector<1x128xf32>
      %34 = arith.addf %30, %33 : vector<1x128xf32>
      %35 = math.rsqrt %34 : vector<1x128xf32>
      %36 = vector.broadcast %35 : vector<1x128xf32> to vector<128x128xf32>
      %37 = arith.mulf %32, %36 : vector<128x128xf32>
      %38 = vector.broadcast %15 : vector<1x128xf32> to vector<128x128xf32>
      %39 = arith.mulf %37, %38 : vector<128x128xf32>
      %40 = vector.broadcast %17 : vector<1x128xf32> to vector<128x128xf32>
      %41 = arith.addf %39, %40 : vector<128x128xf32>
      %cst_23 = arith.constant 0.000000e+00 : f32
      %42 = vector.broadcast %cst_23 : f32 to vector<128x128xf32>
      %43 = arith.maximumf %41, %42 : vector<128x128xf32>
      %44 = arith.truncf %43 : vector<128x128xf32> to vector<128x128xbf16>
      %c0_24 = arith.constant 0 : index
      %c0_25 = arith.constant 0 : index
      %c0_26 = arith.constant 0 : index
      %45 = vector.load %arg7[%c0_24, %c0_25, %c0_26] : memref<1x128x128xbf16, #tpu.memory_space<vmem>>, vector<1x128x128xbf16>
      %46 = vector.shape_cast %45 : vector<1x128x128xbf16> to vector<128x128xbf16>
      %cst_27 = arith.constant dense<0.000000e+00> : vector<128x128xf32>
      %47 = tpu.matmul %44, %46, %cst_27 {dimension_numbers = #tpu.dot_dimension_numbers<[1], [0], [0], [1], [0, 0, 1, 1], [], []>} : vector<128x128xbf16>, vector<128x128xbf16>, vector<128x128xf32> -> vector<128x128xf32>
      %c0_28 = arith.constant 0 : index
      %c0_29 = arith.constant 0 : index
      %c0_30 = arith.constant 0 : index
      %48 = vector.load %arg8[%c0_28, %c0_29, %c0_30] : memref<1x1x128xf32, #tpu.memory_space<vmem>>, vector<1x1x128xf32>
      %49 = vector.shape_cast %48 : vector<1x1x128xf32> to vector<1x128xf32>
      %50 = vector.broadcast %49 : vector<1x128xf32> to vector<128x128xf32>
      %51 = arith.addf %47, %50 : vector<128x128xf32>
      %cst_31 = arith.constant 0.000000e+00 : f32
      %52 = vector.broadcast %cst_31 : f32 to vector<128x128xf32>
      %53 = arith.maximumf %51, %52 : vector<128x128xf32>
      %54 = vector.broadcast %0 : vector<128x1xf32> to vector<128x128xf32>
      %55 = arith.mulf %53, %54 : vector<128x128xf32>
      %56 = arith.truncf %55 : vector<128x128xf32> to vector<128x128xbf16>
      %c0_32 = arith.constant 0 : index
      %c0_33 = arith.constant 0 : index
      %57 = vector.load %arg9[%c0_32, %c0_33] : memref<128x128xbf16, #tpu.memory_space<vmem>>, vector<128x128xbf16>
      tpu.vector_store %arg9[%c0_32, %c0_33], %56 {strides = array<i32>} : memref<128x128xbf16, #tpu.memory_space<vmem>>, vector<128x128xbf16>,
    } else {
    }
    return
  }
  func.func @transform_0(%arg0: i32) -> (i32, i32) {
    %c0_i32 = arith.constant 0 : i32
    %c0_i32_0 = arith.constant 0 : i32
    %c0_i32_1 = arith.constant 0 : i32
    return %c0_i32, %c0_i32_0 : i32, i32
  }
  func.func @transform_1(%arg0: i32) -> (i32, i32) {
    %c0_i32 = arith.constant 0 : i32
    %c0_i32_0 = arith.constant 0 : i32
    %c0_i32_1 = arith.constant 0 : i32
    return %c0_i32, %c0_i32_0 : i32, i32
  }
  func.func @transform_2(%arg0: i32) -> (i32, i32) {
    %c0_i32 = arith.constant 0 : i32
    %c0_i32_0 = arith.constant 0 : i32
    %c0_i32_1 = arith.constant 0 : i32
    return %c0_i32, %c0_i32_0 : i32, i32
  }
  func.func @transform_3(%arg0: i32) -> (i32, i32, i32) {
    %c0_i32 = arith.constant 0 : i32
    %c0_i32_0 = arith.constant 0 : i32
    %c0_i32_1 = arith.constant 0 : i32
    return %arg0, %c0_i32, %c0_i32_0 : i32, i32, i32
  }
  func.func @transform_4(%arg0: i32) -> (i32, i32, i32) {
    %c0_i32 = arith.constant 0 : i32
    %c0_i32_0 = arith.constant 0 : i32
    %c0_i32_1 = arith.constant 0 : i32
    return %arg0, %c0_i32, %c0_i32_0 : i32, i32, i32
  }
  func.func @transform_5(%arg0: i32) -> (i32, i32, i32) {
    %c0_i32 = arith.constant 0 : i32
    %c0_i32_0 = arith.constant 0 : i32
    %c0_i32_1 = arith.constant 0 : i32
    return %arg0, %c0_i32, %c0_i32_0 : i32, i32, i32
  }
  func.func @transform_6(%arg0: i32) -> (i32, i32, i32) {
    %c0_i32 = arith.constant 0 : i32
    %c0_i32_0 = arith.constant 0 : i32
    %c0_i32_1 = arith.constant 0 : i32
    return %arg0, %c0_i32, %c0_i32_0 : i32, i32, i32
  }
  func.func @transform_7(%arg0: i32) -> (i32, i32, i32) {
    %c0_i32 = arith.constant 0 : i32
    %c0_i32_0 = arith.constant 0 : i32
    %c0_i32_1 = arith.constant 0 : i32
    return %arg0, %c0_i32, %c0_i32_0 : i32, i32, i32
  }
  func.func @transform_8(%arg0: i32) -> (i32, i32) {
    %c0_i32 = arith.constant 0 : i32
    %c0_i32_0 = arith.constant 0 : i32
    %c0_i32_1 = arith.constant 0 : i32
    return %c0_i32, %c0_i32_0 : i32, i32
  }
}

module attributes {stable_mosaic.version = 11 : i64} {
  func.func @_node_branch_kernel(%arg0: i32, %arg1: memref<128x128xbf16, #tpu.memory_space<vmem>>, %arg2: memref<128x1xf32, #tpu.memory_space<vmem>>, %arg3: memref<128x128xbf16, #tpu.memory_space<vmem>>, %arg4: memref<1x128xf32, #tpu.memory_space<vmem>>, %arg5: memref<1x128xf32, #tpu.memory_space<vmem>>, %arg6: memref<1x128xf32, #tpu.memory_space<vmem>>, %arg7: memref<1x128xf32, #tpu.memory_space<vmem>>, %arg8: memref<1x128xf32, #tpu.memory_space<vmem>>, %arg9: memref<128x128xbf16, #tpu.memory_space<vmem>>, %arg10: memref<128x128xbf16, #tpu.memory_space<vmem>>, %arg11: memref<128x128xf32, #tpu.memory_space<vmem>>) attributes {dimension_semantics = [#tpu.dimension_semantics<arbitrary>], iteration_bounds = array<i64: 1>, scalar_prefetch = 0 : i64, scratch_operands = 0 : i64, tpu.core_type = #tpu.core_type<tc>, window_params = [{pipeline_mode = #tpu.pipeline_mode<synchronous>, transform_indices = @transform_0, window_bounds = array<i64: 128, 128>}, {pipeline_mode = #tpu.pipeline_mode<synchronous>, transform_indices = @transform_1, window_bounds = array<i64: 128, 1>}, {pipeline_mode = #tpu.pipeline_mode<synchronous>, transform_indices = @transform_2, window_bounds = array<i64: 128, 128>}, {pipeline_mode = #tpu.pipeline_mode<synchronous>, transform_indices = @transform_3, window_bounds = array<i64: 1, 128>}, {pipeline_mode = #tpu.pipeline_mode<synchronous>, transform_indices = @transform_4, window_bounds = array<i64: 1, 128>}, {pipeline_mode = #tpu.pipeline_mode<synchronous>, transform_indices = @transform_5, window_bounds = array<i64: 1, 128>}, {pipeline_mode = #tpu.pipeline_mode<synchronous>, transform_indices = @transform_6, window_bounds = array<i64: 1, 128>}, {pipeline_mode = #tpu.pipeline_mode<synchronous>, transform_indices = @transform_7, window_bounds = array<i64: 1, 128>}, {pipeline_mode = #tpu.pipeline_mode<synchronous>, transform_indices = @transform_8, window_bounds = array<i64: 128, 128>}, {pipeline_mode = #tpu.pipeline_mode<synchronous>, transform_indices = @transform_9, window_bounds = array<i64: 128, 128>}, {pipeline_mode = #tpu.pipeline_mode<synchronous>, transform_indices = @transform_10, window_bounds = array<i64: 128, 128>}]} {
    %c0 = arith.constant 0 : index
    %c0_0 = arith.constant 0 : index
    %0 = vector.load %arg2[%c0, %c0_0] : memref<128x1xf32, #tpu.memory_space<vmem>>, vector<128x1xf32>
    %c0_1 = arith.constant 0 : index
    %c0_2 = arith.constant 0 : index
    %1 = vector.load %arg1[%c0_1, %c0_2] : memref<128x128xbf16, #tpu.memory_space<vmem>>, vector<128x128xbf16>
    %2 = arith.extf %1 : vector<128x128xbf16> to vector<128x128xf32>
    %c0_3 = arith.constant 0 : index
    %c0_4 = arith.constant 0 : index
    %3 = vector.load %arg3[%c0_3, %c0_4] : memref<128x128xbf16, #tpu.memory_space<vmem>>, vector<128x128xbf16>
    %cst = arith.constant dense<0.000000e+00> : vector<128x128xf32>
    %4 = tpu.matmul %1, %3, %cst {dimension_numbers = #tpu.dot_dimension_numbers<[1], [0], [0], [1], [0, 0, 1, 1], [], []>} : vector<128x128xbf16>, vector<128x128xbf16>, vector<128x128xf32> -> vector<128x128xf32>
    %c0_5 = arith.constant 0 : index
    %c0_6 = arith.constant 0 : index
    %5 = vector.load %arg11[%c0_5, %c0_6] : memref<128x128xf32, #tpu.memory_space<vmem>>, vector<128x128xf32>
    tpu.vector_store %arg11[%c0_5, %c0_6], %4 {strides = array<i32>} : memref<128x128xf32, #tpu.memory_space<vmem>>, vector<128x128xf32>,
    %c0_7 = arith.constant 0 : index
    %c0_8 = arith.constant 0 : index
    %6 = vector.load %arg4[%c0_7, %c0_8] : memref<1x128xf32, #tpu.memory_space<vmem>>, vector<1x128xf32>
    %7 = vector.broadcast %6 : vector<1x128xf32> to vector<128x128xf32>
    %8 = arith.addf %4, %7 : vector<128x128xf32>
    %9 = vector.extract_strided_slice %8 {offsets = [0, 0], sizes = [128, 1], strides = [1, 1]} : vector<128x128xf32> to vector<128x1xf32>
    %10 = vector.extract_strided_slice %8 {offsets = [0, 1], sizes = [128, 1], strides = [1, 1]} : vector<128x128xf32> to vector<128x1xf32>
    %11 = arith.maximumf %9, %10 : vector<128x1xf32>
    %12 = arith.subf %9, %11 : vector<128x1xf32>
    %13 = math.exp %12 : vector<128x1xf32>
    %14 = arith.subf %10, %11 : vector<128x1xf32>
    %15 = math.exp %14 : vector<128x1xf32>
    %16 = arith.addf %13, %15 : vector<128x1xf32>
    %17 = tpu.reciprocal %16 {approx = true} : vector<128x1xf32> -> vector<128x1xf32>
    %18 = arith.mulf %13, %17 : vector<128x1xf32>
    %19 = vector.broadcast %18 : vector<128x1xf32> to vector<128x128xf32>
    %20 = arith.mulf %19, %2 : vector<128x128xf32>
    %21 = arith.mulf %15, %17 : vector<128x1xf32>
    %22 = vector.broadcast %21 : vector<128x1xf32> to vector<128x128xf32>
    %23 = arith.mulf %22, %2 : vector<128x128xf32>
    %c0_9 = arith.constant 0 : index
    %c0_10 = arith.constant 0 : index
    %24 = vector.load %arg5[%c0_9, %c0_10] : memref<1x128xf32, #tpu.memory_space<vmem>>, vector<1x128xf32>
    %c0_11 = arith.constant 0 : index
    %c0_12 = arith.constant 0 : index
    %25 = vector.load %arg6[%c0_11, %c0_12] : memref<1x128xf32, #tpu.memory_space<vmem>>, vector<1x128xf32>
    %cst_13 = arith.constant dense<0.000000e+00> : vector<128xf32>
    %26 = vector.multi_reduction <add>, %20, %cst_13 [0] : vector<128x128xf32> to vector<128xf32>
    %27 = vector.shape_cast %26 : vector<128xf32> to vector<1x128xf32>
    %cst_14 = arith.constant 6.250000e-02 : f32
    %28 = vector.broadcast %cst_14 : f32 to vector<1x128xf32>
    %29 = arith.mulf %27, %28 : vector<1x128xf32>
    %30 = vector.broadcast %29 : vector<1x128xf32> to vector<128x128xf32>
    %31 = arith.subf %20, %30 : vector<128x128xf32>
    %32 = vector.broadcast %0 : vector<128x1xf32> to vector<128x128xf32>
    %33 = arith.mulf %31, %32 : vector<128x128xf32>
    %34 = arith.mulf %33, %33 : vector<128x128xf32>
    %cst_15 = arith.constant dense<0.000000e+00> : vector<128xf32>
    %35 = vector.multi_reduction <add>, %34, %cst_15 [0] : vector<128x128xf32> to vector<128xf32>
    %36 = vector.shape_cast %35 : vector<128xf32> to vector<1x128xf32>
    %cst_16 = arith.constant 6.250000e-02 : f32
    %37 = vector.broadcast %cst_16 : f32 to vector<1x128xf32>
    %38 = arith.mulf %36, %37 : vector<1x128xf32>
    %39 = vector.broadcast %29 : vector<1x128xf32> to vector<128x128xf32>
    %40 = arith.subf %20, %39 : vector<128x128xf32>
    %cst_17 = arith.constant 9.99999974E-6 : f32
    %41 = vector.broadcast %cst_17 : f32 to vector<1x128xf32>
    %42 = arith.addf %38, %41 : vector<1x128xf32>
    %43 = math.rsqrt %42 : vector<1x128xf32>
    %44 = vector.broadcast %43 : vector<1x128xf32> to vector<128x128xf32>
    %45 = arith.mulf %40, %44 : vector<128x128xf32>
    %46 = vector.broadcast %24 : vector<1x128xf32> to vector<128x128xf32>
    %47 = arith.mulf %45, %46 : vector<128x128xf32>
    %48 = vector.broadcast %25 : vector<1x128xf32> to vector<128x128xf32>
    %49 = arith.addf %47, %48 : vector<128x128xf32>
    %50 = arith.truncf %49 : vector<128x128xf32> to vector<128x128xbf16>
    %c0_18 = arith.constant 0 : index
    %c0_19 = arith.constant 0 : index
    %51 = vector.load %arg9[%c0_18, %c0_19] : memref<128x128xbf16, #tpu.memory_space<vmem>>, vector<128x128xbf16>
    tpu.vector_store %arg9[%c0_18, %c0_19], %50 {strides = array<i32>} : memref<128x128xbf16, #tpu.memory_space<vmem>>, vector<128x128xbf16>,
    %c0_20 = arith.constant 0 : index
    %c0_21 = arith.constant 0 : index
    %52 = vector.load %arg7[%c0_20, %c0_21] : memref<1x128xf32, #tpu.memory_space<vmem>>, vector<1x128xf32>
    %c0_22 = arith.constant 0 : index
    %c0_23 = arith.constant 0 : index
    %53 = vector.load %arg8[%c0_22, %c0_23] : memref<1x128xf32, #tpu.memory_space<vmem>>, vector<1x128xf32>
    %cst_24 = arith.constant dense<0.000000e+00> : vector<128xf32>
    %54 = vector.multi_reduction <add>, %23, %cst_24 [0] : vector<128x128xf32> to vector<128xf32>
    %55 = vector.shape_cast %54 : vector<128xf32> to vector<1x128xf32>
    %cst_25 = arith.constant 6.250000e-02 : f32
    %56 = vector.broadcast %cst_25 : f32 to vector<1x128xf32>
    %57 = arith.mulf %55, %56 : vector<1x128xf32>
    %58 = vector.broadcast %57 : vector<1x128xf32> to vector<128x128xf32>
    %59 = arith.subf %23, %58 : vector<128x128xf32>
    %60 = vector.broadcast %0 : vector<128x1xf32> to vector<128x128xf32>
    %61 = arith.mulf %59, %60 : vector<128x128xf32>
    %62 = arith.mulf %61, %61 : vector<128x128xf32>
    %cst_26 = arith.constant dense<0.000000e+00> : vector<128xf32>
    %63 = vector.multi_reduction <add>, %62, %cst_26 [0] : vector<128x128xf32> to vector<128xf32>
    %64 = vector.shape_cast %63 : vector<128xf32> to vector<1x128xf32>
    %cst_27 = arith.constant 6.250000e-02 : f32
    %65 = vector.broadcast %cst_27 : f32 to vector<1x128xf32>
    %66 = arith.mulf %64, %65 : vector<1x128xf32>
    %67 = vector.broadcast %57 : vector<1x128xf32> to vector<128x128xf32>
    %68 = arith.subf %23, %67 : vector<128x128xf32>
    %cst_28 = arith.constant 9.99999974E-6 : f32
    %69 = vector.broadcast %cst_28 : f32 to vector<1x128xf32>
    %70 = arith.addf %66, %69 : vector<1x128xf32>
    %71 = math.rsqrt %70 : vector<1x128xf32>
    %72 = vector.broadcast %71 : vector<1x128xf32> to vector<128x128xf32>
    %73 = arith.mulf %68, %72 : vector<128x128xf32>
    %74 = vector.broadcast %52 : vector<1x128xf32> to vector<128x128xf32>
    %75 = arith.mulf %73, %74 : vector<128x128xf32>
    %76 = vector.broadcast %53 : vector<1x128xf32> to vector<128x128xf32>
    %77 = arith.addf %75, %76 : vector<128x128xf32>
    %78 = arith.truncf %77 : vector<128x128xf32> to vector<128x128xbf16>
    %c0_29 = arith.constant 0 : index
    %c0_30 = arith.constant 0 : index
    %79 = vector.load %arg10[%c0_29, %c0_30] : memref<128x128xbf16, #tpu.memory_space<vmem>>, vector<128x128xbf16>
    tpu.vector_store %arg10[%c0_29, %c0_30], %78 {strides = array<i32>} : memref<128x128xbf16, #tpu.memory_space<vmem>>, vector<128x128xbf16>,
    return
  }
  func.func @transform_0(%arg0: i32) -> (i32, i32) {
    %c0_i32 = arith.constant 0 : i32
    %c0_i32_0 = arith.constant 0 : i32
    %c0_i32_1 = arith.constant 0 : i32
    return %c0_i32, %c0_i32_0 : i32, i32
  }
  func.func @transform_1(%arg0: i32) -> (i32, i32) {
    %c0_i32 = arith.constant 0 : i32
    %c0_i32_0 = arith.constant 0 : i32
    %c0_i32_1 = arith.constant 0 : i32
    return %c0_i32, %c0_i32_0 : i32, i32
  }
  func.func @transform_2(%arg0: i32) -> (i32, i32) {
    %c0_i32 = arith.constant 0 : i32
    %c0_i32_0 = arith.constant 0 : i32
    %c0_i32_1 = arith.constant 0 : i32
    return %c0_i32, %c0_i32_0 : i32, i32
  }
  func.func @transform_3(%arg0: i32) -> (i32, i32) {
    %c0_i32 = arith.constant 0 : i32
    %c0_i32_0 = arith.constant 0 : i32
    %c0_i32_1 = arith.constant 0 : i32
    return %c0_i32, %c0_i32_0 : i32, i32
  }
  func.func @transform_4(%arg0: i32) -> (i32, i32) {
    %c0_i32 = arith.constant 0 : i32
    %c0_i32_0 = arith.constant 0 : i32
    %c0_i32_1 = arith.constant 0 : i32
    return %c0_i32, %c0_i32_0 : i32, i32
  }
  func.func @transform_5(%arg0: i32) -> (i32, i32) {
    %c0_i32 = arith.constant 0 : i32
    %c0_i32_0 = arith.constant 0 : i32
    %c0_i32_1 = arith.constant 0 : i32
    return %c0_i32, %c0_i32_0 : i32, i32
  }
  func.func @transform_6(%arg0: i32) -> (i32, i32) {
    %c0_i32 = arith.constant 0 : i32
    %c0_i32_0 = arith.constant 0 : i32
    %c0_i32_1 = arith.constant 0 : i32
    return %c0_i32, %c0_i32_0 : i32, i32
  }
  func.func @transform_7(%arg0: i32) -> (i32, i32) {
    %c0_i32 = arith.constant 0 : i32
    %c0_i32_0 = arith.constant 0 : i32
    %c0_i32_1 = arith.constant 0 : i32
    return %c0_i32, %c0_i32_0 : i32, i32
  }
  func.func @transform_8(%arg0: i32) -> (i32, i32) {
    %c0_i32 = arith.constant 0 : i32
    %c0_i32_0 = arith.constant 0 : i32
    %c0_i32_1 = arith.constant 0 : i32
    return %c0_i32, %c0_i32_0 : i32, i32
  }
  func.func @transform_9(%arg0: i32) -> (i32, i32) {
    %c0_i32 = arith.constant 0 : i32
    %c0_i32_0 = arith.constant 0 : i32
    %c0_i32_1 = arith.constant 0 : i32
    return %c0_i32, %c0_i32_0 : i32, i32
  }
  func.func @transform_10(%arg0: i32) -> (i32, i32) {
    %c0_i32 = arith.constant 0 : i32
    %c0_i32_0 = arith.constant 0 : i32
    %c0_i32_1 = arith.constant 0 : i32
    return %c0_i32, %c0_i32_0 : i32, i32
  }
}

module attributes {stable_mosaic.version = 11 : i64} {
  func.func @_obj_conv_kernel(%arg0: i32, %arg1: memref<1x128x128xbf16, #tpu.memory_space<vmem>>, %arg2: memref<1x128x128xbf16, #tpu.memory_space<vmem>>, %arg3: memref<128x1xf32, #tpu.memory_space<vmem>>, %arg4: memref<128x128xbf16, #tpu.memory_space<vmem>>, %arg5: memref<1x128xf32, #tpu.memory_space<vmem>>, %arg6: memref<1x128x128xbf16, #tpu.memory_space<vmem>>) attributes {dimension_semantics = [#tpu.dimension_semantics<parallel>], iteration_bounds = array<i64: 2>, scalar_prefetch = 0 : i64, scratch_operands = 0 : i64, tpu.core_type = #tpu.core_type<tc>, window_params = [{transform_indices = @transform_0, window_bounds = array<i64: 1, 128, 128>}, {transform_indices = @transform_1, window_bounds = array<i64: 1, 128, 128>}, {pipeline_mode = #tpu.pipeline_mode<synchronous>, transform_indices = @transform_2, window_bounds = array<i64: 128, 1>}, {pipeline_mode = #tpu.pipeline_mode<synchronous>, transform_indices = @transform_3, window_bounds = array<i64: 128, 128>}, {pipeline_mode = #tpu.pipeline_mode<synchronous>, transform_indices = @transform_4, window_bounds = array<i64: 1, 128>}, {transform_indices = @transform_5, window_bounds = array<i64: 1, 128, 128>}]} {
    %c0 = arith.constant 0 : index
    %c0_0 = arith.constant 0 : index
    %c0_1 = arith.constant 0 : index
    %0 = vector.load %arg2[%c0, %c0_0, %c0_1] : memref<1x128x128xbf16, #tpu.memory_space<vmem>>, vector<1x128x128xbf16>
    %1 = vector.shape_cast %0 : vector<1x128x128xbf16> to vector<128x128xbf16>
    %c0_2 = arith.constant 0 : index
    %c0_3 = arith.constant 0 : index
    %2 = vector.load %arg4[%c0_2, %c0_3] : memref<128x128xbf16, #tpu.memory_space<vmem>>, vector<128x128xbf16>
    %cst = arith.constant dense<0.000000e+00> : vector<128x128xf32>
    %3 = tpu.matmul %1, %2, %cst {dimension_numbers = #tpu.dot_dimension_numbers<[1], [0], [0], [1], [0, 0, 1, 1], [], []>} : vector<128x128xbf16>, vector<128x128xbf16>, vector<128x128xf32> -> vector<128x128xf32>
    %c0_4 = arith.constant 0 : index
    %c0_5 = arith.constant 0 : index
    %c0_6 = arith.constant 0 : index
    %4 = vector.load %arg1[%c0_4, %c0_5, %c0_6] : memref<1x128x128xbf16, #tpu.memory_space<vmem>>, vector<1x128x128xbf16>
    %5 = vector.shape_cast %4 : vector<1x128x128xbf16> to vector<128x128xbf16>
    %6 = arith.truncf %3 : vector<128x128xf32> to vector<128x128xbf16>
    %cst_7 = arith.constant dense<0.000000e+00> : vector<128x128xf32>
    %7 = tpu.matmul %5, %6, %cst_7 {dimension_numbers = #tpu.dot_dimension_numbers<[1], [0], [0], [1], [0, 0, 1, 1], [], []>} : vector<128x128xbf16>, vector<128x128xbf16>, vector<128x128xf32> -> vector<128x128xf32>
    %c0_8 = arith.constant 0 : index
    %c0_9 = arith.constant 0 : index
    %8 = vector.load %arg5[%c0_8, %c0_9] : memref<1x128xf32, #tpu.memory_space<vmem>>, vector<1x128xf32>
    %9 = vector.broadcast %8 : vector<1x128xf32> to vector<128x128xf32>
    %10 = arith.addf %7, %9 : vector<128x128xf32>
    %cst_10 = arith.constant 0.000000e+00 : f32
    %11 = vector.broadcast %cst_10 : f32 to vector<128x128xf32>
    %12 = arith.maximumf %10, %11 : vector<128x128xf32>
    %c0_11 = arith.constant 0 : index
    %c0_12 = arith.constant 0 : index
    %13 = vector.load %arg3[%c0_11, %c0_12] : memref<128x1xf32, #tpu.memory_space<vmem>>, vector<128x1xf32>
    %14 = vector.broadcast %13 : vector<128x1xf32> to vector<128x128xf32>
    %15 = arith.mulf %12, %14 : vector<128x128xf32>
    %16 = arith.truncf %15 : vector<128x128xf32> to vector<128x128xbf16>
    %c0_13 = arith.constant 0 : index
    %c0_14 = arith.constant 0 : index
    %c0_15 = arith.constant 0 : index
    %17 = vector.load %arg6[%c0_13, %c0_14, %c0_15] : memref<1x128x128xbf16, #tpu.memory_space<vmem>>, vector<1x128x128xbf16>
    %18 = vector.shape_cast %17 : vector<1x128x128xbf16> to vector<128x128xbf16>
    %19 = vector.shape_cast %16 : vector<128x128xbf16> to vector<1x128x128xbf16>
    tpu.vector_store %arg6[%c0_13, %c0_14, %c0_15], %19 {strides = array<i32>} : memref<1x128x128xbf16, #tpu.memory_space<vmem>>, vector<1x128x128xbf16>,
    return
  }
  func.func @transform_0(%arg0: i32) -> (i32, i32, i32) {
    %c0_i32 = arith.constant 0 : i32
    %c0_i32_0 = arith.constant 0 : i32
    %c0_i32_1 = arith.constant 0 : i32
    return %arg0, %c0_i32, %c0_i32_0 : i32, i32, i32
  }
  func.func @transform_1(%arg0: i32) -> (i32, i32, i32) {
    %c0_i32 = arith.constant 0 : i32
    %c0_i32_0 = arith.constant 0 : i32
    %c0_i32_1 = arith.constant 0 : i32
    return %arg0, %c0_i32, %c0_i32_0 : i32, i32, i32
  }
  func.func @transform_2(%arg0: i32) -> (i32, i32) {
    %c0_i32 = arith.constant 0 : i32
    %c0_i32_0 = arith.constant 0 : i32
    %c0_i32_1 = arith.constant 0 : i32
    return %c0_i32, %c0_i32_0 : i32, i32
  }
  func.func @transform_3(%arg0: i32) -> (i32, i32) {
    %c0_i32 = arith.constant 0 : i32
    %c0_i32_0 = arith.constant 0 : i32
    %c0_i32_1 = arith.constant 0 : i32
    return %c0_i32, %c0_i32_0 : i32, i32
  }
  func.func @transform_4(%arg0: i32) -> (i32, i32) {
    %c0_i32 = arith.constant 0 : i32
    %c0_i32_0 = arith.constant 0 : i32
    %c0_i32_1 = arith.constant 0 : i32
    return %c0_i32, %c0_i32_0 : i32, i32
  }
  func.func @transform_5(%arg0: i32) -> (i32, i32, i32) {
    %c0_i32 = arith.constant 0 : i32
    %c0_i32_0 = arith.constant 0 : i32
    %c0_i32_1 = arith.constant 0 : i32
    return %arg0, %c0_i32, %c0_i32_0 : i32, i32, i32
  }
}

module attributes {stable_mosaic.version = 11 : i64} {
  func.func @_pool_kernel(%arg0: i32, %arg1: memref<8x128xbf16, #tpu.memory_space<vmem>>, %arg2: memref<128x128xbf16, #tpu.memory_space<vmem>>, %arg3: memref<2x128x128xbf16, #tpu.memory_space<vmem>>, %arg4: memref<8x384xf32, #tpu.memory_space<vmem>>, %arg5: memref<128x384xbf16, #tpu.memory_space<vmem>>) attributes {dimension_semantics = [#tpu.dimension_semantics<arbitrary>], iteration_bounds = array<i64: 1>, scalar_prefetch = 0 : i64, scratch_operands = 1 : i64, tpu.core_type = #tpu.core_type<tc>, window_params = [{pipeline_mode = #tpu.pipeline_mode<synchronous>, transform_indices = @transform_0, window_bounds = array<i64: 8, 128>}, {pipeline_mode = #tpu.pipeline_mode<synchronous>, transform_indices = @transform_1, window_bounds = array<i64: 128, 128>}, {pipeline_mode = #tpu.pipeline_mode<synchronous>, transform_indices = @transform_2, window_bounds = array<i64: 2, 128, 128>}, {pipeline_mode = #tpu.pipeline_mode<synchronous>, transform_indices = @transform_3, window_bounds = array<i64: 8, 384>}]} {
    %c0 = arith.constant 0 : index
    %c0_0 = arith.constant 0 : index
    %0 = vector.load %arg2[%c0, %c0_0] : memref<128x128xbf16, #tpu.memory_space<vmem>>, vector<128x128xbf16>
    %c0_1 = arith.constant 0 : index
    %c0_2 = arith.constant 0 : index
    %1 = vector.load %arg5[%c0_1, %c0_2] : memref<128x384xbf16, #tpu.memory_space<vmem>>, vector<128x128xbf16>
    tpu.vector_store %arg5[%c0_1, %c0_2], %0 {strides = array<i32>} : memref<128x384xbf16, #tpu.memory_space<vmem>>, vector<128x128xbf16>,
    %c0_3 = arith.constant 0 : index
    %c0_4 = arith.constant 0 : index
    %c0_5 = arith.constant 0 : index
    %2 = vector.load %arg3[%c0_3, %c0_4, %c0_5] : memref<2x128x128xbf16, #tpu.memory_space<vmem>>, vector<1x128x128xbf16>
    %3 = vector.shape_cast %2 : vector<1x128x128xbf16> to vector<128x128xbf16>
    %c0_6 = arith.constant 0 : index
    %c128 = arith.constant 128 : index
    %4 = vector.load %arg5[%c0_6, %c128] : memref<128x384xbf16, #tpu.memory_space<vmem>>, vector<128x128xbf16>
    tpu.vector_store %arg5[%c0_6, %c128], %3 {strides = array<i32>} : memref<128x384xbf16, #tpu.memory_space<vmem>>, vector<128x128xbf16>,
    %c1 = arith.constant 1 : index
    %c0_7 = arith.constant 0 : index
    %c0_8 = arith.constant 0 : index
    %5 = vector.load %arg3[%c1, %c0_7, %c0_8] : memref<2x128x128xbf16, #tpu.memory_space<vmem>>, vector<1x128x128xbf16>
    %6 = vector.shape_cast %5 : vector<1x128x128xbf16> to vector<128x128xbf16>
    %c0_9 = arith.constant 0 : index
    %c256 = arith.constant 256 : index
    %7 = vector.load %arg5[%c0_9, %c256] : memref<128x384xbf16, #tpu.memory_space<vmem>>, vector<128x128xbf16>
    tpu.vector_store %arg5[%c0_9, %c256], %6 {strides = array<i32>} : memref<128x384xbf16, #tpu.memory_space<vmem>>, vector<128x128xbf16>,
    %c0_10 = arith.constant 0 : index
    %c0_11 = arith.constant 0 : index
    %8 = vector.load %arg1[%c0_10, %c0_11] : memref<8x128xbf16, #tpu.memory_space<vmem>>, vector<8x128xbf16>
    %c0_12 = arith.constant 0 : index
    %c0_13 = arith.constant 0 : index
    %9 = vector.load %arg5[%c0_12, %c0_13] : memref<128x384xbf16, #tpu.memory_space<vmem>>, vector<128x384xbf16>
    %cst = arith.constant dense<0.000000e+00> : vector<8x384xf32>
    %10 = tpu.matmul %8, %9, %cst {dimension_numbers = #tpu.dot_dimension_numbers<[1], [0], [0], [1], [0, 0, 1, 1], [], []>} : vector<8x128xbf16>, vector<128x384xbf16>, vector<8x384xf32> -> vector<8x384xf32>
    %c0_14 = arith.constant 0 : index
    %c0_15 = arith.constant 0 : index
    %11 = vector.load %arg4[%c0_14, %c0_15] : memref<8x384xf32, #tpu.memory_space<vmem>>, vector<8x384xf32>
    tpu.vector_store %arg4[%c0_14, %c0_15], %10 {strides = array<i32>} : memref<8x384xf32, #tpu.memory_space<vmem>>, vector<8x384xf32>,
    return
  }
  func.func @transform_0(%arg0: i32) -> (i32, i32) {
    %c0_i32 = arith.constant 0 : i32
    %c0_i32_0 = arith.constant 0 : i32
    %c0_i32_1 = arith.constant 0 : i32
    return %c0_i32, %c0_i32_0 : i32, i32
  }
  func.func @transform_1(%arg0: i32) -> (i32, i32) {
    %c0_i32 = arith.constant 0 : i32
    %c0_i32_0 = arith.constant 0 : i32
    %c0_i32_1 = arith.constant 0 : i32
    return %c0_i32, %c0_i32_0 : i32, i32
  }
  func.func @transform_2(%arg0: i32) -> (i32, i32, i32) {
    %c0_i32 = arith.constant 0 : i32
    %c0_i32_0 = arith.constant 0 : i32
    %c0_i32_1 = arith.constant 0 : i32
    %c0_i32_2 = arith.constant 0 : i32
    return %c0_i32, %c0_i32_0, %c0_i32_1 : i32, i32, i32
  }
  func.func @transform_3(%arg0: i32) -> (i32, i32) {
    %c0_i32 = arith.constant 0 : i32
    %c0_i32_0 = arith.constant 0 : i32
    %c0_i32_1 = arith.constant 0 : i32
    return %c0_i32, %c0_i32_0 : i32, i32
  }
}

module attributes {stable_mosaic.version = 11 : i64} {
  func.func @_readout_kernel(%arg0: i32, %arg1: memref<1x8x128xf32, #tpu.memory_space<vmem>>, %arg2: memref<8x1xf32, #tpu.memory_space<vmem>>, %arg3: memref<1x1x128xf32, #tpu.memory_space<vmem>>, %arg4: memref<1x1x128xf32, #tpu.memory_space<vmem>>, %arg5: memref<1x128x128xf32, #tpu.memory_space<vmem>>, %arg6: memref<1x1x128xf32, #tpu.memory_space<vmem>>, %arg7: memref<1x1x128xf32, #tpu.memory_space<vmem>>, %arg8: memref<1x1x128xf32, #tpu.memory_space<vmem>>, %arg9: memref<1x128x128xf32, #tpu.memory_space<vmem>>, %arg10: memref<1x1x128xf32, #tpu.memory_space<vmem>>, %arg11: memref<1x8x128xf32, #tpu.memory_space<vmem>>) attributes {dimension_semantics = [#tpu.dimension_semantics<parallel>], iteration_bounds = array<i64: 3>, scalar_prefetch = 0 : i64, scratch_operands = 0 : i64, tpu.core_type = #tpu.core_type<tc>, window_params = [{transform_indices = @transform_0, window_bounds = array<i64: 1, 8, 128>}, {pipeline_mode = #tpu.pipeline_mode<synchronous>, transform_indices = @transform_1, window_bounds = array<i64: 8, 1>}, {transform_indices = @transform_2, window_bounds = array<i64: 1, 1, 128>}, {transform_indices = @transform_3, window_bounds = array<i64: 1, 1, 128>}, {transform_indices = @transform_4, window_bounds = array<i64: 1, 128, 128>}, {transform_indices = @transform_5, window_bounds = array<i64: 1, 1, 128>}, {transform_indices = @transform_6, window_bounds = array<i64: 1, 1, 128>}, {transform_indices = @transform_7, window_bounds = array<i64: 1, 1, 128>}, {transform_indices = @transform_8, window_bounds = array<i64: 1, 128, 128>}, {transform_indices = @transform_9, window_bounds = array<i64: 1, 1, 128>}, {transform_indices = @transform_10, window_bounds = array<i64: 1, 8, 128>}]} {
    %c0 = arith.constant 0 : index
    %c0_0 = arith.constant 0 : index
    %0 = vector.load %arg2[%c0, %c0_0] : memref<8x1xf32, #tpu.memory_space<vmem>>, vector<8x1xf32>
    %c0_1 = arith.constant 0 : index
    %c0_2 = arith.constant 0 : index
    %c0_3 = arith.constant 0 : index
    %1 = vector.load %arg1[%c0_1, %c0_2, %c0_3] : memref<1x8x128xf32, #tpu.memory_space<vmem>>, vector<1x8x128xf32>
    %2 = vector.shape_cast %1 : vector<1x8x128xf32> to vector<8x128xf32>
    %c0_4 = arith.constant 0 : index
    %c0_5 = arith.constant 0 : index
    %c0_6 = arith.constant 0 : index
    %3 = vector.load %arg3[%c0_4, %c0_5, %c0_6] : memref<1x1x128xf32, #tpu.memory_space<vmem>>, vector<1x1x128xf32>
    %4 = vector.shape_cast %3 : vector<1x1x128xf32> to vector<1x128xf32>
    %c0_7 = arith.constant 0 : index
    %c0_8 = arith.constant 0 : index
    %c0_9 = arith.constant 0 : index
    %5 = vector.load %arg4[%c0_7, %c0_8, %c0_9] : memref<1x1x128xf32, #tpu.memory_space<vmem>>, vector<1x1x128xf32>
    %6 = vector.shape_cast %5 : vector<1x1x128xf32> to vector<1x128xf32>
    %cst = arith.constant dense<0.000000e+00> : vector<128xf32>
    %7 = vector.multi_reduction <add>, %2, %cst [0] : vector<8x128xf32> to vector<128xf32>
    %8 = vector.shape_cast %7 : vector<128xf32> to vector<1x128xf32>
    %cst_10 = arith.constant 2.500000e-01 : f32
    %9 = vector.broadcast %cst_10 : f32 to vector<1x128xf32>
    %10 = arith.mulf %8, %9 : vector<1x128xf32>
    %11 = vector.broadcast %10 : vector<1x128xf32> to vector<8x128xf32>
    %12 = arith.subf %2, %11 : vector<8x128xf32>
    %13 = vector.broadcast %0 : vector<8x1xf32> to vector<8x128xf32>
    %14 = arith.mulf %12, %13 : vector<8x128xf32>
    %15 = arith.mulf %14, %14 : vector<8x128xf32>
    %cst_11 = arith.constant dense<0.000000e+00> : vector<128xf32>
    %16 = vector.multi_reduction <add>, %15, %cst_11 [0] : vector<8x128xf32> to vector<128xf32>
    %17 = vector.shape_cast %16 : vector<128xf32> to vector<1x128xf32>
    %cst_12 = arith.constant 2.500000e-01 : f32
    %18 = vector.broadcast %cst_12 : f32 to vector<1x128xf32>
    %19 = arith.mulf %17, %18 : vector<1x128xf32>
    %20 = vector.broadcast %10 : vector<1x128xf32> to vector<8x128xf32>
    %21 = arith.subf %2, %20 : vector<8x128xf32>
    %cst_13 = arith.constant 9.99999974E-6 : f32
    %22 = vector.broadcast %cst_13 : f32 to vector<1x128xf32>
    %23 = arith.addf %19, %22 : vector<1x128xf32>
    %24 = math.rsqrt %23 : vector<1x128xf32>
    %25 = vector.broadcast %24 : vector<1x128xf32> to vector<8x128xf32>
    %26 = arith.mulf %21, %25 : vector<8x128xf32>
    %27 = vector.broadcast %4 : vector<1x128xf32> to vector<8x128xf32>
    %28 = arith.mulf %26, %27 : vector<8x128xf32>
    %29 = vector.broadcast %6 : vector<1x128xf32> to vector<8x128xf32>
    %30 = arith.addf %28, %29 : vector<8x128xf32>
    %c0_14 = arith.constant 0 : index
    %c0_15 = arith.constant 0 : index
    %c0_16 = arith.constant 0 : index
    %31 = vector.load %arg5[%c0_14, %c0_15, %c0_16] : memref<1x128x128xf32, #tpu.memory_space<vmem>>, vector<1x128x128xf32>
    %32 = vector.shape_cast %31 : vector<1x128x128xf32> to vector<128x128xf32>
    %cst_17 = arith.constant dense<0.000000e+00> : vector<8x128xf32>
    %33 = tpu.matmul %30, %32, %cst_17 {dimension_numbers = #tpu.dot_dimension_numbers<[1], [0], [0], [1], [0, 0, 1, 1], [], []>} : vector<8x128xf32>, vector<128x128xf32>, vector<8x128xf32> -> vector<8x128xf32>
    %c0_18 = arith.constant 0 : index
    %c0_19 = arith.constant 0 : index
    %c0_20 = arith.constant 0 : index
    %34 = vector.load %arg6[%c0_18, %c0_19, %c0_20] : memref<1x1x128xf32, #tpu.memory_space<vmem>>, vector<1x1x128xf32>
    %35 = vector.shape_cast %34 : vector<1x1x128xf32> to vector<1x128xf32>
    %36 = vector.broadcast %35 : vector<1x128xf32> to vector<8x128xf32>
    %37 = arith.addf %33, %36 : vector<8x128xf32>
    %cst_21 = arith.constant 0.000000e+00 : f32
    %38 = vector.broadcast %cst_21 : f32 to vector<8x128xf32>
    %39 = arith.maximumf %37, %38 : vector<8x128xf32>
    %40 = vector.broadcast %0 : vector<8x1xf32> to vector<8x128xf32>
    %41 = arith.mulf %39, %40 : vector<8x128xf32>
    %c0_22 = arith.constant 0 : index
    %c0_23 = arith.constant 0 : index
    %c0_24 = arith.constant 0 : index
    %42 = vector.load %arg7[%c0_22, %c0_23, %c0_24] : memref<1x1x128xf32, #tpu.memory_space<vmem>>, vector<1x1x128xf32>
    %43 = vector.shape_cast %42 : vector<1x1x128xf32> to vector<1x128xf32>
    %c0_25 = arith.constant 0 : index
    %c0_26 = arith.constant 0 : index
    %c0_27 = arith.constant 0 : index
    %44 = vector.load %arg8[%c0_25, %c0_26, %c0_27] : memref<1x1x128xf32, #tpu.memory_space<vmem>>, vector<1x1x128xf32>
    %45 = vector.shape_cast %44 : vector<1x1x128xf32> to vector<1x128xf32>
    %cst_28 = arith.constant dense<0.000000e+00> : vector<128xf32>
    %46 = vector.multi_reduction <add>, %41, %cst_28 [0] : vector<8x128xf32> to vector<128xf32>
    %47 = vector.shape_cast %46 : vector<128xf32> to vector<1x128xf32>
    %cst_29 = arith.constant 2.500000e-01 : f32
    %48 = vector.broadcast %cst_29 : f32 to vector<1x128xf32>
    %49 = arith.mulf %47, %48 : vector<1x128xf32>
    %50 = vector.broadcast %49 : vector<1x128xf32> to vector<8x128xf32>
    %51 = arith.subf %41, %50 : vector<8x128xf32>
    %52 = vector.broadcast %0 : vector<8x1xf32> to vector<8x128xf32>
    %53 = arith.mulf %51, %52 : vector<8x128xf32>
    %54 = arith.mulf %53, %53 : vector<8x128xf32>
    %cst_30 = arith.constant dense<0.000000e+00> : vector<128xf32>
    %55 = vector.multi_reduction <add>, %54, %cst_30 [0] : vector<8x128xf32> to vector<128xf32>
    %56 = vector.shape_cast %55 : vector<128xf32> to vector<1x128xf32>
    %cst_31 = arith.constant 2.500000e-01 : f32
    %57 = vector.broadcast %cst_31 : f32 to vector<1x128xf32>
    %58 = arith.mulf %56, %57 : vector<1x128xf32>
    %59 = vector.broadcast %49 : vector<1x128xf32> to vector<8x128xf32>
    %60 = arith.subf %41, %59 : vector<8x128xf32>
    %cst_32 = arith.constant 9.99999974E-6 : f32
    %61 = vector.broadcast %cst_32 : f32 to vector<1x128xf32>
    %62 = arith.addf %58, %61 : vector<1x128xf32>
    %63 = math.rsqrt %62 : vector<1x128xf32>
    %64 = vector.broadcast %63 : vector<1x128xf32> to vector<8x128xf32>
    %65 = arith.mulf %60, %64 : vector<8x128xf32>
    %66 = vector.broadcast %43 : vector<1x128xf32> to vector<8x128xf32>
    %67 = arith.mulf %65, %66 : vector<8x128xf32>
    %68 = vector.broadcast %45 : vector<1x128xf32> to vector<8x128xf32>
    %69 = arith.addf %67, %68 : vector<8x128xf32>
    %c0_33 = arith.constant 0 : index
    %c0_34 = arith.constant 0 : index
    %c0_35 = arith.constant 0 : index
    %70 = vector.load %arg9[%c0_33, %c0_34, %c0_35] : memref<1x128x128xf32, #tpu.memory_space<vmem>>, vector<1x128x128xf32>
    %71 = vector.shape_cast %70 : vector<1x128x128xf32> to vector<128x128xf32>
    %cst_36 = arith.constant dense<0.000000e+00> : vector<8x128xf32>
    %72 = tpu.matmul %69, %71, %cst_36 {dimension_numbers = #tpu.dot_dimension_numbers<[1], [0], [0], [1], [0, 0, 1, 1], [], []>} : vector<8x128xf32>, vector<128x128xf32>, vector<8x128xf32> -> vector<8x128xf32>
    %c0_37 = arith.constant 0 : index
    %c0_38 = arith.constant 0 : index
    %c0_39 = arith.constant 0 : index
    %73 = vector.load %arg10[%c0_37, %c0_38, %c0_39] : memref<1x1x128xf32, #tpu.memory_space<vmem>>, vector<1x1x128xf32>
    %74 = vector.shape_cast %73 : vector<1x1x128xf32> to vector<1x128xf32>
    %75 = vector.broadcast %74 : vector<1x128xf32> to vector<8x128xf32>
    %76 = arith.addf %72, %75 : vector<8x128xf32>
    %c0_40 = arith.constant 0 : index
    %c0_41 = arith.constant 0 : index
    %c0_42 = arith.constant 0 : index
    %77 = vector.load %arg11[%c0_40, %c0_41, %c0_42] : memref<1x8x128xf32, #tpu.memory_space<vmem>>, vector<1x8x128xf32>
    %78 = vector.shape_cast %77 : vector<1x8x128xf32> to vector<8x128xf32>
    %79 = vector.shape_cast %76 : vector<8x128xf32> to vector<1x8x128xf32>
    tpu.vector_store %arg11[%c0_40, %c0_41, %c0_42], %79 {strides = array<i32>} : memref<1x8x128xf32, #tpu.memory_space<vmem>>, vector<1x8x128xf32>,
    return
  }
  func.func @transform_0(%arg0: i32) -> (i32, i32, i32) {
    %c0_i32 = arith.constant 0 : i32
    %c0_i32_0 = arith.constant 0 : i32
    %c0_i32_1 = arith.constant 0 : i32
    return %arg0, %c0_i32, %c0_i32_0 : i32, i32, i32
  }
  func.func @transform_1(%arg0: i32) -> (i32, i32) {
    %c0_i32 = arith.constant 0 : i32
    %c0_i32_0 = arith.constant 0 : i32
    %c0_i32_1 = arith.constant 0 : i32
    return %c0_i32, %c0_i32_0 : i32, i32
  }
  func.func @transform_2(%arg0: i32) -> (i32, i32, i32) {
    %c0_i32 = arith.constant 0 : i32
    %c0_i32_0 = arith.constant 0 : i32
    %c0_i32_1 = arith.constant 0 : i32
    return %arg0, %c0_i32, %c0_i32_0 : i32, i32, i32
  }
  func.func @transform_3(%arg0: i32) -> (i32, i32, i32) {
    %c0_i32 = arith.constant 0 : i32
    %c0_i32_0 = arith.constant 0 : i32
    %c0_i32_1 = arith.constant 0 : i32
    return %arg0, %c0_i32, %c0_i32_0 : i32, i32, i32
  }
  func.func @transform_4(%arg0: i32) -> (i32, i32, i32) {
    %c0_i32 = arith.constant 0 : i32
    %c0_i32_0 = arith.constant 0 : i32
    %c0_i32_1 = arith.constant 0 : i32
    return %arg0, %c0_i32, %c0_i32_0 : i32, i32, i32
  }
  func.func @transform_5(%arg0: i32) -> (i32, i32, i32) {
    %c0_i32 = arith.constant 0 : i32
    %c0_i32_0 = arith.constant 0 : i32
    %c0_i32_1 = arith.constant 0 : i32
    return %arg0, %c0_i32, %c0_i32_0 : i32, i32, i32
  }
  func.func @transform_6(%arg0: i32) -> (i32, i32, i32) {
    %c0_i32 = arith.constant 0 : i32
    %c0_i32_0 = arith.constant 0 : i32
    %c0_i32_1 = arith.constant 0 : i32
    return %arg0, %c0_i32, %c0_i32_0 : i32, i32, i32
  }
  func.func @transform_7(%arg0: i32) -> (i32, i32, i32) {
    %c0_i32 = arith.constant 0 : i32
    %c0_i32_0 = arith.constant 0 : i32
    %c0_i32_1 = arith.constant 0 : i32
    return %arg0, %c0_i32, %c0_i32_0 : i32, i32, i32
  }
  func.func @transform_8(%arg0: i32) -> (i32, i32, i32) {
    %c0_i32 = arith.constant 0 : i32
    %c0_i32_0 = arith.constant 0 : i32
    %c0_i32_1 = arith.constant 0 : i32
    return %arg0, %c0_i32, %c0_i32_0 : i32, i32, i32
  }
  func.func @transform_9(%arg0: i32) -> (i32, i32, i32) {
    %c0_i32 = arith.constant 0 : i32
    %c0_i32_0 = arith.constant 0 : i32
    %c0_i32_1 = arith.constant 0 : i32
    return %arg0, %c0_i32, %c0_i32_0 : i32, i32, i32
  }
  func.func @transform_10(%arg0: i32) -> (i32, i32, i32) {
    %c0_i32 = arith.constant 0 : i32
    %c0_i32_0 = arith.constant 0 : i32
    %c0_i32_1 = arith.constant 0 : i32
    return %arg0, %c0_i32, %c0_i32_0 : i32, i32, i32
  }
}

</mosaic_0001>

<llo_original>
// kernel: causal_gin_forward.6
$region0: #{causal_gin_forward.6}
  #allocation0 [shape = 'u32[]', space=smem, size = 0x4, offset = 0x4, fixed_abs, tag = 'smem constant byte address 0x4 - core index']
  #allocation1 [shape = 'u32[72,128]{1,0:T(1,128)}', space=vmem, size = 0x9000, scoped, tag = 'internal scratch']
  %s0 = inlined_call_operand.vmem [shape: f32[128,128], index: 0, kind: input, shape index: {}]
  %s1 = inlined_call_operand.vmem [shape: f32[128,1], index: 1, kind: input, shape index: {}]
  %s2 = inlined_call_operand.vmem [shape: f32[1,128], index: 2, kind: input, shape index: {}]
  %s3 = inlined_call_operand.vmem [shape: f32[1,128], index: 3, kind: input, shape index: {}]
  %s4 = inlined_call_operand.vmem [shape: bf16[128,128], index: 4, kind: input, shape index: {}]
  %s5 = inlined_call_operand.vmem [shape: bf16[128,128], index: 5, kind: output, shape index: {}]
  %s6 = sld [smem:[#allocation0]]
  $region30: #{causal_gin_forward.6} parent=0
    _
  %s8 = ssub.s32 1, %s6
  %s9 = scalar_select 0, %s8, %s6
  // Predicated region
  $region2: #{causal_gin_forward.6} parent=0 // pred_check
    _
  $region3: #{causal_gin_forward.6} parent=0 // pred_check_branch
    %11 = sbr.rel (0) target = $region5
  $region4: #{causal_gin_forward.6} parent=0 // pred_region
    _
  $region5: #{causal_gin_forward.6} parent=0 // pred_fallthru
    _
  // Predicated region
  $region6: #{causal_gin_forward.6} parent=0 // pred_check
    _
  $region7: #{causal_gin_forward.6} parent=0 // pred_check_branch
    %13 = sbr.rel (0) target = $region9
  $region8: #{causal_gin_forward.6} parent=0 // pred_region
    _
  $region9: #{causal_gin_forward.6} parent=0 // pred_fallthru
    _
  // Predicated region
  $region10: #{causal_gin_forward.6} parent=0 // pred_check
    _
  $region11: #{causal_gin_forward.6} parent=0 // pred_check_branch
    %15 = sbr.rel (0) target = $region13
  $region12: #{causal_gin_forward.6} parent=0 // pred_region
    _
  $region13: #{causal_gin_forward.6} parent=0 // pred_fallthru
    _
  // Predicated region
  $region14: #{causal_gin_forward.6} parent=0 // pred_check
    _
  $region15: #{causal_gin_forward.6} parent=0 // pred_check_branch
    %17 = sbr.rel (0) target = $region17
  $region16: #{causal_gin_forward.6} parent=0 // pred_region
    _
  $region17: #{causal_gin_forward.6} parent=0 // pred_fallthru
    _
  // Predicated region
  $region18: #{causal_gin_forward.6} parent=0 // pred_check
    _
  $region19: #{causal_gin_forward.6} parent=0 // pred_check_branch
    %19 = sbr.rel (0) target = $region21
  $region20: #{causal_gin_forward.6} parent=0 // pred_region
    _
  $region21: #{causal_gin_forward.6} parent=0 // pred_fallthru
    _
  %v20 = vld [vmem:[%s1] sm:$0xff]
  %v21 = vld [vmem:[%s1 + $0x8] sm:$0xff]
  %v22 = vld [vmem:[%s1 + $0x10] sm:$0xff]
  %v23 = vld [vmem:[%s1 + $0x18] sm:$0xff]
  %v24 = vld [vmem:[%s1 + $0x20] sm:$0xff]
  %v25 = vld [vmem:[%s1 + $0x28] sm:$0xff]
  %v26 = vld [vmem:[%s1 + $0x30] sm:$0xff]
  %v27 = vld [vmem:[%s1 + $0x38] sm:$0xff]
  %v28 = vld [vmem:[%s1 + $0x40] sm:$0xff]
  %v29 = vld [vmem:[%s1 + $0x48] sm:$0xff]
  %v30 = vld [vmem:[%s1 + $0x50] sm:$0xff]
  %v31 = vld [vmem:[%s1 + $0x58] sm:$0xff]
  %v32 = vld [vmem:[%s1 + $0x60] sm:$0xff]
  %v33 = vld [vmem:[%s1 + $0x68] sm:$0xff]
  %v34 = vld [vmem:[%s1 + $0x70] sm:$0xff]
  %v35 = vld [vmem:[%s1 + $0x78] sm:$0xff]
  %v36 = vld [vmem:[%s0] sm:$0xff]
  %v37 = vld [vmem:[%s0 + $0x8] sm:$0xff]
  %v38 = vld [vmem:[%s0 + $0x10] sm:$0xff]
  %v39 = vld [vmem:[%s0 + $0x18] sm:$0xff]
  %v40 = vld [vmem:[%s0 + $0x20] sm:$0xff]
  %v41 = vld [vmem:[%s0 + $0x28] sm:$0xff]
  %v42 = vld [vmem:[%s0 + $0x30] sm:$0xff]
  %v43 = vld [vmem:[%s0 + $0x38] sm:$0xff]
  %v44 = vld [vmem:[%s0 + $0x40] sm:$0xff]
  %v45 = vld [vmem:[%s0 + $0x48] sm:$0xff]
  %v46 = vld [vmem:[%s0 + $0x50] sm:$0xff]
  %v47 = vld [vmem:[%s0 + $0x58] sm:$0xff]
  %v48 = vld [vmem:[%s0 + $0x60] sm:$0xff]
  %v49 = vld [vmem:[%s0 + $0x68] sm:$0xff]
  %v50 = vld [vmem:[%s0 + $0x70] sm:$0xff]
  %v51 = vld [vmem:[%s0 + $0x78] sm:$0xff]
  %v52 = vld [vmem:[%s2] sm:$0x1]
  %v53 = vld [vmem:[%s3] sm:$0x1]
  %v54 = vadd.f32 %v36, %v37
  %v55 = vadd.f32 %v54, %v38
  %v56 = vadd.f32 %v55, %v39
  %v57 = vadd.f32 %v56, %v40
  %v58 = vadd.f32 %v57, %v41
  %v59 = vadd.f32 %v58, %v42
  %v60 = vadd.f32 %v59, %v43
  %v61 = vadd.f32 %v60, %v44
  %v62 = vadd.f32 %v61, %v45
  %v63 = vadd.f32 %v62, %v46
  %v64 = vadd.f32 %v63, %v47
  %v65 = vadd.f32 %v64, %v48
  %v66 = vadd.f32 %v65, %v49
  %v67 = vadd.f32 %v66, %v50
  %v68 = vadd.f32 %v67, %v51
  %v69 = vrot.slane %v68, 4
  %v70 = vadd.f32 %v68, %v69
  %v71 = vrot.slane %v70, 2
  %v72 = vadd.f32 %v70, %v71
  %v73 = vrot.slane %v72, 1
  %v74 = vadd.f32 %v72, %v73
  %v75 = vmul.f32 %v74, 0.0625
  %v76 = vsub.f32 %v36, %v75
  %v77 = vsub.f32 %v37, %v75
  %v78 = vsub.f32 %v38, %v75
  %v79 = vsub.f32 %v39, %v75
  %v80 = vsub.f32 %v40, %v75
  %v81 = vsub.f32 %v41, %v75
  %v82 = vsub.f32 %v42, %v75
  %v83 = vsub.f32 %v43, %v75
  %v84 = vsub.f32 %v44, %v75
  %v85 = vsub.f32 %v45, %v75
  %v86 = vsub.f32 %v46, %v75
  %v87 = vsub.f32 %v47, %v75
  %v88 = vsub.f32 %v48, %v75
  %v89 = vsub.f32 %v49, %v75
  %v90 = vsub.f32 %v50, %v75
  %v91 = vsub.f32 %v51, %v75
  %93 = vset.pattern.permute.xlu0 0
  %94 = vperm.xlu0 %93, %v20
  %v95 = vpop.permute.xlu0 %94
  %98 = vset.pattern.permute.xlu0 0
  %99 = vperm.xlu0 %98, %v21
  %v100 = vpop.permute.xlu0 %99
  %103 = vset.pattern.permute.xlu0 0
  %104 = vperm.xlu0 %103, %v22
  %v105 = vpop.permute.xlu0 %104
  %108 = vset.pattern.permute.xlu0 0
  %109 = vperm.xlu0 %108, %v23
  %v110 = vpop.permute.xlu0 %109
  %113 = vset.pattern.permute.xlu0 0
  %114 = vperm.xlu0 %113, %v24
  %v115 = vpop.permute.xlu0 %114
  %118 = vset.pattern.permute.xlu0 0
  %119 = vperm.xlu0 %118, %v25
  %v120 = vpop.permute.xlu0 %119
  %123 = vset.pattern.permute.xlu0 0
  %124 = vperm.xlu0 %123, %v26
  %v125 = vpop.permute.xlu0 %124
  %128 = vset.pattern.permute.xlu0 0
  %129 = vperm.xlu0 %128, %v27
  %v130 = vpop.permute.xlu0 %129
  %133 = vset.pattern.permute.xlu0 0
  %134 = vperm.xlu0 %133, %v28
  %v135 = vpop.permute.xlu0 %134
  %138 = vset.pattern.permute.xlu0 0
  %139 = vperm.xlu0 %138, %v29
  %v140 = vpop.permute.xlu0 %139
  %143 = vset.pattern.permute.xlu0 0
  %144 = vperm.xlu0 %143, %v30
  %v145 = vpop.permute.xlu0 %144
  %148 = vset.pattern.permute.xlu0 0
  %149 = vperm.xlu0 %148, %v31
  %v150 = vpop.permute.xlu0 %149
  %153 = vset.pattern.permute.xlu0 0
  %154 = vperm.xlu0 %153, %v32
  %v155 = vpop.permute.xlu0 %154
  %158 = vset.pattern.permute.xlu0 0
  %159 = vperm.xlu0 %158, %v33
  %v160 = vpop.permute.xlu0 %159
  %163 = vset.pattern.permute.xlu0 0
  %164 = vperm.xlu0 %163, %v34
  %v165 = vpop.permute.xlu0 %164
  %168 = vset.pattern.permute.xlu0 0
  %169 = vperm.xlu0 %168, %v35
  %v170 = vpop.permute.xlu0 %169
  %v172 = vmul.f32 %v76, %v95
  %v173 = vmul.f32 %v77, %v100
  %v174 = vmul.f32 %v78, %v105
  %v175 = vmul.f32 %v79, %v110
  %v176 = vmul.f32 %v80, %v115
  %v177 = vmul.f32 %v81, %v120
  %v178 = vmul.f32 %v82, %v125
  %v179 = vmul.f32 %v83, %v130
  %v180 = vmul.f32 %v84, %v135
  %v181 = vmul.f32 %v85, %v140
  %v182 = vmul.f32 %v86, %v145
  %v183 = vmul.f32 %v87, %v150
  %v184 = vmul.f32 %v88, %v155
  %v185 = vmul.f32 %v89, %v160
  %v186 = vmul.f32 %v90, %v165
  %v187 = vmul.f32 %v91, %v170
  %v188 = vmul.f32 %v172, %v172
  %v189 = vmul.f32 %v173, %v173
  %v190 = vmul.f32 %v174, %v174
  %v191 = vmul.f32 %v175, %v175
  %v192 = vmul.f32 %v176, %v176
  %v193 = vmul.f32 %v177, %v177
  %v194 = vmul.f32 %v178, %v178
  %v195 = vmul.f32 %v179, %v179
  %v196 = vmul.f32 %v180, %v180
  %v197 = vmul.f32 %v181, %v181
  %v198 = vmul.f32 %v182, %v182
  %v199 = vmul.f32 %v183, %v183
  %v200 = vmul.f32 %v184, %v184
  %v201 = vmul.f32 %v185, %v185
  %v202 = vmul.f32 %v186, %v186
  %v203 = vmul.f32 %v187, %v187
  %v204 = vadd.f32 %v188, %v189
  %v205 = vadd.f32 %v204, %v190
  %v206 = vadd.f32 %v205, %v191
  %v207 = vadd.f32 %v206, %v192
  %v208 = vadd.f32 %v207, %v193
  %v209 = vadd.f32 %v208, %v194
  %v210 = vadd.f32 %v209, %v195
  %v211 = vadd.f32 %v210, %v196
  %v212 = vadd.f32 %v211, %v197
  %v213 = vadd.f32 %v212, %v198
  %v214 = vadd.f32 %v213, %v199
  %v215 = vadd.f32 %v214, %v200
  %v216 = vadd.f32 %v215, %v201
  %v217 = vadd.f32 %v216, %v202
  %v218 = vadd.f32 %v217, %v203
  %v219 = vrot.slane %v218, 4
  %v220 = vadd.f32 %v218, %v219
  %v221 = vrot.slane %v220, 2
  %v222 = vadd.f32 %v220, %v221
  %v223 = vrot.slane %v222, 1
  %v224 = vadd.f32 %v222, %v223
  %v225 = vmul.f32 %v224, 0.0625
  %v226 = vadd.f32 %v225, 1e-05
  %v227 = vrsqrt.pop %v226
  %v228 = vmul.f32 %v227, %v226
  %v229 = vmul.f32 %v228, %v227
  %v230 = vmul.f32 0.5, %v229
  %v231 = vsub.f32 1.5, %v230
  %v232 = vmul.f32 %v227, %v231
  %vm233 = vweird.f32 %v226
  %vm234 = vweird.f32 %v227
  %vm235 = vmor %vm233, %vm234
  %v236 = vsel %vm235, %v227, %v232
  %v237 = vmul.f32 %v76, %v236
  %v238 = vmul.f32 %v77, %v236
  %v239 = vmul.f32 %v78, %v236
  %v240 = vmul.f32 %v79, %v236
  %v241 = vmul.f32 %v80, %v236
  %v242 = vmul.f32 %v81, %v236
  %v243 = vmul.f32 %v82, %v236
  %v244 = vmul.f32 %v83, %v236
  %v245 = vmul.f32 %v84, %v236
  %v246 = vmul.f32 %v85, %v236
  %v247 = vmul.f32 %v86, %v236
  %v248 = vmul.f32 %v87, %v236
  %v249 = vmul.f32 %v88, %v236
  %v250 = vmul.f32 %v89, %v236
  %v251 = vmul.f32 %v90, %v236
  %v252 = vmul.f32 %v91, %v236
  %v254 = vperm.slane %v52, 0
  %v256 = vmul.f32 %v237, %v254
  %v257 = vmul.f32 %v238, %v254
  %v258 = vmul.f32 %v239, %v254
  %v259 = vmul.f32 %v240, %v254
  %v260 = vmul.f32 %v241, %v254
  %v261 = vmul.f32 %v242, %v254
  %v262 = vmul.f32 %v243, %v254
  %v263 = vmul.f32 %v244, %v254
  %v264 = vmul.f32 %v245, %v254
  %v265 = vmul.f32 %v246, %v254
  %v266 = vmul.f32 %v247, %v254
  %v267 = vmul.f32 %v248, %v254
  %v268 = vmul.f32 %v249, %v254
  %v269 = vmul.f32 %v250, %v254
  %v270 = vmul.f32 %v251, %v254
  %v271 = vmul.f32 %v252, %v254
  %v273 = vperm.slane %v53, 0
  %v275 = vadd.f32 %v256, %v273
  %v276 = vadd.f32 %v257, %v273
  %v277 = vadd.f32 %v258, %v273
  %v278 = vadd.f32 %v259, %v273
  %v279 = vadd.f32 %v260, %v273
  %v280 = vadd.f32 %v261, %v273
  %v281 = vadd.f32 %v262, %v273
  %v282 = vadd.f32 %v263, %v273
  %v283 = vadd.f32 %v264, %v273
  %v284 = vadd.f32 %v265, %v273
  %v285 = vadd.f32 %v266, %v273
  %v286 = vadd.f32 %v267, %v273
  %v287 = vadd.f32 %v268, %v273
  %v288 = vadd.f32 %v269, %v273
  %v289 = vadd.f32 %v270, %v273
  %v290 = vadd.f32 %v271, %v273
  %v291 = vpack.c.bf16 %v276, %v275
  %v292 = vpack.c.bf16 %v278, %v277
  %v293 = vpack.c.bf16 %v280, %v279
  %v294 = vpack.c.bf16 %v282, %v281
  %v295 = vpack.c.bf16 %v284, %v283
  %v296 = vpack.c.bf16 %v286, %v285
  %v297 = vpack.c.bf16 %v288, %v287
  %v298 = vpack.c.bf16 %v290, %v289
  %v299 = vld [vmem:[%s4] sm:$0xf]
  %v300 = vld [vmem:[%s4 + $0x4] sm:$0xf]
  %v301 = vld [vmem:[%s4 + $0x8] sm:$0xf]
  %v302 = vld [vmem:[%s4 + $0xc] sm:$0xf]
  %v303 = vld [vmem:[%s4 + $0x10] sm:$0xf]
  %v304 = vld [vmem:[%s4 + $0x14] sm:$0xf]
  %v305 = vld [vmem:[%s4 + $0x18] sm:$0xf]
  %v306 = vld [vmem:[%s4 + $0x1c] sm:$0xf]
  %v307 = vld [vmem:[%s4 + $0x20] sm:$0xf]
  %v308 = vld [vmem:[%s4 + $0x24] sm:$0xf]
  %v309 = vld [vmem:[%s4 + $0x28] sm:$0xf]
  %v310 = vld [vmem:[%s4 + $0x2c] sm:$0xf]
  %v311 = vld [vmem:[%s4 + $0x30] sm:$0xf]
  %v312 = vld [vmem:[%s4 + $0x34] sm:$0xf]
  %v313 = vld [vmem:[%s4 + $0x38] sm:$0xf]
  %v314 = vld [vmem:[%s4 + $0x3c] sm:$0xf]
  %v331 = vunpack.c.l.b16 %v299
  %v332 = vunpack.c.l.b16 %v300
  %v333 = vunpack.c.l.b16 %v301
  %v334 = vunpack.c.l.b16 %v302
  %v335 = vunpack.c.l.b16 %v303
  %v336 = vunpack.c.l.b16 %v304
  %v337 = vunpack.c.l.b16 %v305
  %v338 = vunpack.c.l.b16 %v306
  %v339 = vunpack.c.l.b16 %v307
  %v340 = vunpack.c.l.b16 %v308
  %v341 = vunpack.c.l.b16 %v309
  %v342 = vunpack.c.l.b16 %v310
  %v343 = vunpack.c.l.b16 %v311
  %v344 = vunpack.c.l.b16 %v312
  %v345 = vunpack.c.l.b16 %v313
  %v346 = vunpack.c.l.b16 %v314
  %v347 = vpack.c.b16 %v332, %v331
  %v348 = vpack.c.b16 %v334, %v333
  %v349 = vpack.c.b16 %v336, %v335
  %v350 = vpack.c.b16 %v338, %v337
  %v351 = vpack.c.b16 %v340, %v339
  %v352 = vpack.c.b16 %v342, %v341
  %v353 = vpack.c.b16 %v344, %v343
  %v354 = vpack.c.b16 %v346, %v345
  %363 = vmatpush.bf16.msra.mxu0 %v354
  %364 = vmatpush.bf16.msra.mxu0 %v353
  %365 = vmatpush.bf16.msra.mxu0 %v352
  %366 = vmatpush.bf16.msra.mxu0 %v351
  %367 = vmatpush.bf16.msra.mxu0 %v350
  %368 = vmatpush.bf16.msra.mxu0 %v349
  %369 = vmatpush.bf16.msra.mxu0 %v348
  %370 = vmatpush.bf16.msra.mxu0 %v347
  %371 = vmatmul.bf16.gmra.mxu0 %v291
  %v372 = vpop.f32.mrf.mxu0
  %v373 = vadd.f32 0.0, %v372
  %v374 = vpop.f32.mrf.mxu0
  %v375 = vadd.f32 0.0, %v374
  %376 = vmatmul.bf16.gmra.mxu0 %v292
  %v377 = vpop.f32.mrf.mxu0
  %v378 = vadd.f32 0.0, %v377
  %v379 = vpop.f32.mrf.mxu0
  %v380 = vadd.f32 0.0, %v379
  %381 = vmatmul.bf16.gmra.mxu0 %v293
  %v382 = vpop.f32.mrf.mxu0
  %v383 = vadd.f32 0.0, %v382
  %v384 = vpop.f32.mrf.mxu0
  %v385 = vadd.f32 0.0, %v384
  %386 = vmatmul.bf16.gmra.mxu0 %v294
  %v387 = vpop.f32.mrf.mxu0
  %v388 = vadd.f32 0.0, %v387
  %v389 = vpop.f32.mrf.mxu0
  %v390 = vadd.f32 0.0, %v389
  %391 = vmatmul.bf16.gmra.mxu0 %v295
  %v392 = vpop.f32.mrf.mxu0
  %v393 = vadd.f32 0.0, %v392
  %v394 = vpop.f32.mrf.mxu0
  %v395 = vadd.f32 0.0, %v394
  %396 = vmatmul.bf16.gmra.mxu0 %v296
  %v397 = vpop.f32.mrf.mxu0
  %v398 = vadd.f32 0.0, %v397
  %v399 = vpop.f32.mrf.mxu0
  %v400 = vadd.f32 0.0, %v399
  %401 = vmatmul.bf16.gmra.mxu0 %v297
  %v402 = vpop.f32.mrf.mxu0
  %v403 = vadd.f32 0.0, %v402
  %v404 = vpop.f32.mrf.mxu0
  %v405 = vadd.f32 0.0, %v404
  %406 = vmatmul.bf16.gmra.mxu0 %v298
  %v407 = vpop.f32.mrf.mxu0
  %v408 = vadd.f32 0.0, %v407
  %v409 = vpop.f32.mrf.mxu0
  %v410 = vadd.f32 0.0, %v409
  %411 = vdwg.mxu0
  %v412 = vmax.f32 %v373, 0.0
  %v413 = vmax.f32 %v375, 0.0
  %v414 = vmax.f32 %v378, 0.0
  %v415 = vmax.f32 %v380, 0.0
  %v416 = vmax.f32 %v383, 0.0
  %v417 = vmax.f32 %v385, 0.0
  %v418 = vmax.f32 %v388, 0.0
  %v419 = vmax.f32 %v390, 0.0
  %v420 = vmax.f32 %v393, 0.0
  %v421 = vmax.f32 %v395, 0.0
  %v422 = vmax.f32 %v398, 0.0
  %v423 = vmax.f32 %v400, 0.0
  %v424 = vmax.f32 %v403, 0.0
  %v425 = vmax.f32 %v405, 0.0
  %v426 = vmax.f32 %v408, 0.0
  %v427 = vmax.f32 %v410, 0.0
  %v428 = vmul.f32 %v412, %v95
  %v429 = vmul.f32 %v413, %v100
  %v430 = vmul.f32 %v414, %v105
  %v431 = vmul.f32 %v415, %v110
  %v432 = vmul.f32 %v416, %v115
  %v433 = vmul.f32 %v417, %v120
  %v434 = vmul.f32 %v418, %v125
  %v435 = vmul.f32 %v419, %v130
  %v436 = vmul.f32 %v420, %v135
  %v437 = vmul.f32 %v421, %v140
  %v438 = vmul.f32 %v422, %v145
  %v439 = vmul.f32 %v423, %v150
  %v440 = vmul.f32 %v424, %v155
  %v441 = vmul.f32 %v425, %v160
  %v442 = vmul.f32 %v426, %v165
  %v443 = vmul.f32 %v427, %v170
  %v444 = vpack.c.bf16 %v428, %v428
  %v445 = vpack.c.bf16 %v429, %v429
  %v446 = vpack.c.bf16 %v430, %v430
  %v447 = vpack.c.bf16 %v431, %v431
  %v448 = vpack.c.bf16 %v432, %v432
  %v449 = vpack.c.bf16 %v433, %v433
  %v450 = vpack.c.bf16 %v434, %v434
  %v451 = vpack.c.bf16 %v435, %v435
  %v452 = vpack.c.bf16 %v436, %v436
  %v453 = vpack.c.bf16 %v437, %v437
  %v454 = vpack.c.bf16 %v438, %v438
  %v455 = vpack.c.bf16 %v439, %v439
  %v456 = vpack.c.bf16 %v440, %v440
  %v457 = vpack.c.bf16 %v441, %v441
  %v458 = vpack.c.bf16 %v442, %v442
  %v459 = vpack.c.bf16 %v443, %v443
  %460 = vst [vmem:[%s5] sm:$0xf] %v444
  %461 = vst [vmem:[%s5 + $0x4] sm:$0xf] %v445
  %462 = vst [vmem:[%s5 + $0x8] sm:$0xf] %v446
  %463 = vst [vmem:[%s5 + $0xc] sm:$0xf] %v447
  %464 = vst [vmem:[%s5 + $0x10] sm:$0xf] %v448
  %465 = vst [vmem:[%s5 + $0x14] sm:$0xf] %v449
  %466 = vst [vmem:[%s5 + $0x18] sm:$0xf] %v450
  %467 = vst [vmem:[%s5 + $0x1c] sm:$0xf] %v451
  %468 = vst [vmem:[%s5 + $0x20] sm:$0xf] %v452
  %469 = vst [vmem:[%s5 + $0x24] sm:$0xf] %v453
  %470 = vst [vmem:[%s5 + $0x28] sm:$0xf] %v454
  %471 = vst [vmem:[%s5 + $0x2c] sm:$0xf] %v455
  %472 = vst [vmem:[%s5 + $0x30] sm:$0xf] %v456
  %473 = vst [vmem:[%s5 + $0x34] sm:$0xf] %v457
  %474 = vst [vmem:[%s5 + $0x38] sm:$0xf] %v458
  %475 = vst [vmem:[%s5 + $0x3c] sm:$0xf] %v459
  // Predicated region
  $region22: #{causal_gin_forward.6} parent=0 // pred_check
    _
  $region23: #{causal_gin_forward.6} parent=0 // pred_check_branch
    %477 = sbr.rel (0) target = $region25
  $region24: #{causal_gin_forward.6} parent=0 // pred_region
    _
  $region25: #{causal_gin_forward.6} parent=0 // pred_fallthru
    _
  // Predicated region
  $region26: #{causal_gin_forward.6} parent=0 // pred_check
    _
  $region27: #{causal_gin_forward.6} parent=0 // pred_check_branch
    %479 = sbr.rel (0) target = $region29
  $region28: #{causal_gin_forward.6} parent=0 // pred_region
    _
  $region29: #{causal_gin_forward.6} parent=0 // pred_fallthru
    _

// kernel: causal_gin_forward.8
$region0: #{causal_gin_forward.8}
  #allocation0 [shape = 'u32[]', space=smem, size = 0x4, offset = 0x4, fixed_abs, tag = 'smem constant byte address 0x4 - core index']
  #allocation1 [shape = 'u32[72,128]{1,0:T(1,128)}', space=vmem, size = 0x9000, scoped, tag = 'internal scratch']
  %s0 = inlined_call_operand.vmem [shape: bf16[128,128], index: 0, kind: input, shape index: {}]
  %s1 = inlined_call_operand.vmem [shape: f32[128,1], index: 1, kind: input, shape index: {}]
  %s2 = inlined_call_operand.vmem [shape: bf16[128,128], index: 2, kind: input, shape index: {}]
  %s3 = inlined_call_operand.vmem [shape: f32[1,128], index: 3, kind: input, shape index: {}]
  %s4 = inlined_call_operand.vmem [shape: f32[1,128], index: 4, kind: input, shape index: {}]
  %s5 = inlined_call_operand.vmem [shape: f32[1,128], index: 5, kind: input, shape index: {}]
  %s6 = inlined_call_operand.vmem [shape: f32[1,128], index: 6, kind: input, shape index: {}]
  %s7 = inlined_call_operand.vmem [shape: f32[1,128], index: 7, kind: input, shape index: {}]
  %s8 = inlined_call_operand.vmem [shape: bf16[128,128], index: 8, kind: output, shape index: {0}]
  %s9 = inlined_call_operand.vmem [shape: bf16[128,128], index: 9, kind: output, shape index: {1}]
  %s10 = inlined_call_operand.vmem [shape: f32[128,128], index: 10, kind: output, shape index: {2}]
  %11 = xla_tuple %s8, %s9, %s10
  %s12 = sld [smem:[#allocation0]]
  $region58: #{causal_gin_forward.8} parent=0
    _
  %s14 = ssub.s32 1, %s12
  %s15 = scalar_select 0, %s14, %s12
  // Predicated region
  $region2: #{causal_gin_forward.8} parent=0 // pred_check
    _
  $region3: #{causal_gin_forward.8} parent=0 // pred_check_branch
    %17 = sbr.rel (0) target = $region5
  $region4: #{causal_gin_forward.8} parent=0 // pred_region
    _
  $region5: #{causal_gin_forward.8} parent=0 // pred_fallthru
    _
  // Predicated region
  $region6: #{causal_gin_forward.8} parent=0 // pred_check
    _
  $region7: #{causal_gin_forward.8} parent=0 // pred_check_branch
    %19 = sbr.rel (0) target = $region9
  $region8: #{causal_gin_forward.8} parent=0 // pred_region
    _
  $region9: #{causal_gin_forward.8} parent=0 // pred_fallthru
    _
  // Predicated region
  $region10: #{causal_gin_forward.8} parent=0 // pred_check
    _
  $region11: #{causal_gin_forward.8} parent=0 // pred_check_branch
    %21 = sbr.rel (0) target = $region13
  $region12: #{causal_gin_forward.8} parent=0 // pred_region
    _
  $region13: #{causal_gin_forward.8} parent=0 // pred_fallthru
    _
  // Predicated region
  $region14: #{causal_gin_forward.8} parent=0 // pred_check
    _
  $region15: #{causal_gin_forward.8} parent=0 // pred_check_branch
    %23 = sbr.rel (0) target = $region17
  $region16: #{causal_gin_forward.8} parent=0 // pred_region
    _
  $region17: #{causal_gin_forward.8} parent=0 // pred_fallthru
    _
  // Predicated region
  $region18: #{causal_gin_forward.8} parent=0 // pred_check
    _
  $region19: #{causal_gin_forward.8} parent=0 // pred_check_branch
    %25 = sbr.rel (0) target = $region21
  $region20: #{causal_gin_forward.8} parent=0 // pred_region
    _
  $region21: #{causal_gin_forward.8} parent=0 // pred_fallthru
    _
  // Predicated region
  $region22: #{causal_gin_forward.8} parent=0 // pred_check
    _
  $region23: #{causal_gin_forward.8} parent=0 // pred_check_branch
    %27 = sbr.rel (0) target = $region25
  $region24: #{causal_gin_forward.8} parent=0 // pred_region
    _
  $region25: #{causal_gin_forward.8} parent=0 // pred_fallthru
    _
  // Predicated region
  $region26: #{causal_gin_forward.8} parent=0 // pred_check
    _
  $region27: #{causal_gin_forward.8} parent=0 // pred_check_branch
    %29 = sbr.rel (0) target = $region29
  $region28: #{causal_gin_forward.8} parent=0 // pred_region
    _
  $region29: #{causal_gin_forward.8} parent=0 // pred_fallthru
    _
  // Predicated region
  $region30: #{causal_gin_forward.8} parent=0 // pred_check
    _
  $region31: #{causal_gin_forward.8} parent=0 // pred_check_branch
    %31 = sbr.rel (0) target = $region33
  $region32: #{causal_gin_forward.8} parent=0 // pred_region
    _
  $region33: #{causal_gin_forward.8} parent=0 // pred_fallthru
    _
  %v32 = vld [vmem:[%s1] sm:$0xff]
  %v33 = vld [vmem:[%s1 + $0x8] sm:$0xff]
  %v34 = vld [vmem:[%s1 + $0x10] sm:$0xff]
  %v35 = vld [vmem:[%s1 + $0x18] sm:$0xff]
  %v36 = vld [vmem:[%s1 + $0x20] sm:$0xff]
  %v37 = vld [vmem:[%s1 + $0x28] sm:$0xff]
  %v38 = vld [vmem:[%s1 + $0x30] sm:$0xff]
  %v39 = vld [vmem:[%s1 + $0x38] sm:$0xff]
  %v40 = vld [vmem:[%s1 + $0x40] sm:$0xff]
  %v41 = vld [vmem:[%s1 + $0x48] sm:$0xff]
  %v42 = vld [vmem:[%s1 + $0x50] sm:$0xff]
  %v43 = vld [vmem:[%s1 + $0x58] sm:$0xff]
  %v44 = vld [vmem:[%s1 + $0x60] sm:$0xff]
  %v45 = vld [vmem:[%s1 + $0x68] sm:$0xff]
  %v46 = vld [vmem:[%s1 + $0x70] sm:$0xff]
  %v47 = vld [vmem:[%s1 + $0x78] sm:$0xff]
  %v48 = vld [vmem:[%s0] sm:$0xf]
  %v49 = vld [vmem:[%s0 + $0x4] sm:$0xf]
  %v50 = vld [vmem:[%s0 + $0x8] sm:$0xf]
  %v51 = vld [vmem:[%s0 + $0xc] sm:$0xf]
  %v52 = vld [vmem:[%s0 + $0x10] sm:$0xf]
  %v53 = vld [vmem:[%s0 + $0x14] sm:$0xf]
  %v54 = vld [vmem:[%s0 + $0x18] sm:$0xf]
  %v55 = vld [vmem:[%s0 + $0x1c] sm:$0xf]
  %v56 = vld [vmem:[%s0 + $0x20] sm:$0xf]
  %v57 = vld [vmem:[%s0 + $0x24] sm:$0xf]
  %v58 = vld [vmem:[%s0 + $0x28] sm:$0xf]
  %v59 = vld [vmem:[%s0 + $0x2c] sm:$0xf]
  %v60 = vld [vmem:[%s0 + $0x30] sm:$0xf]
  %v61 = vld [vmem:[%s0 + $0x34] sm:$0xf]
  %v62 = vld [vmem:[%s0 + $0x38] sm:$0xf]
  %v63 = vld [vmem:[%s0 + $0x3c] sm:$0xf]
  %v64 = vunpack.c.l.bf16 %v48
  %v65 = vunpack.c.l.bf16 %v49
  %v66 = vunpack.c.l.bf16 %v50
  %v67 = vunpack.c.l.bf16 %v51
  %v68 = vunpack.c.l.bf16 %v52
  %v69 = vunpack.c.l.bf16 %v53
  %v70 = vunpack.c.l.bf16 %v54
  %v71 = vunpack.c.l.bf16 %v55
  %v72 = vunpack.c.l.bf16 %v56
  %v73 = vunpack.c.l.bf16 %v57
  %v74 = vunpack.c.l.bf16 %v58
  %v75 = vunpack.c.l.bf16 %v59
  %v76 = vunpack.c.l.bf16 %v60
  %v77 = vunpack.c.l.bf16 %v61
  %v78 = vunpack.c.l.bf16 %v62
  %v79 = vunpack.c.l.bf16 %v63
  %v80 = vld [vmem:[%s2] sm:$0xf]
  %v81 = vld [vmem:[%s2 + $0x4] sm:$0xf]
  %v82 = vld [vmem:[%s2 + $0x8] sm:$0xf]
  %v83 = vld [vmem:[%s2 + $0xc] sm:$0xf]
  %v84 = vld [vmem:[%s2 + $0x10] sm:$0xf]
  %v85 = vld [vmem:[%s2 + $0x14] sm:$0xf]
  %v86 = vld [vmem:[%s2 + $0x18] sm:$0xf]
  %v87 = vld [vmem:[%s2 + $0x1c] sm:$0xf]
  %v88 = vld [vmem:[%s2 + $0x20] sm:$0xf]
  %v89 = vld [vmem:[%s2 + $0x24] sm:$0xf]
  %v90 = vld [vmem:[%s2 + $0x28] sm:$0xf]
  %v91 = vld [vmem:[%s2 + $0x2c] sm:$0xf]
  %v92 = vld [vmem:[%s2 + $0x30] sm:$0xf]
  %v93 = vld [vmem:[%s2 + $0x34] sm:$0xf]
  %v94 = vld [vmem:[%s2 + $0x38] sm:$0xf]
  %v95 = vld [vmem:[%s2 + $0x3c] sm:$0xf]
  %v112 = vunpack.c.l.b16 %v48
  %v113 = vunpack.c.l.b16 %v49
  %v114 = vunpack.c.l.b16 %v50
  %v115 = vunpack.c.l.b16 %v51
  %v116 = vunpack.c.l.b16 %v52
  %v117 = vunpack.c.l.b16 %v53
  %v118 = vunpack.c.l.b16 %v54
  %v119 = vunpack.c.l.b16 %v55
  %v120 = vunpack.c.l.b16 %v56
  %v121 = vunpack.c.l.b16 %v57
  %v122 = vunpack.c.l.b16 %v58
  %v123 = vunpack.c.l.b16 %v59
  %v124 = vunpack.c.l.b16 %v60
  %v125 = vunpack.c.l.b16 %v61
  %v126 = vunpack.c.l.b16 %v62
  %v127 = vunpack.c.l.b16 %v63
  %v128 = vpack.c.b16 %v113, %v112
  %v129 = vpack.c.b16 %v115, %v114
  %v130 = vpack.c.b16 %v117, %v116
  %v131 = vpack.c.b16 %v119, %v118
  %v132 = vpack.c.b16 %v121, %v120
  %v133 = vpack.c.b16 %v123, %v122
  %v134 = vpack.c.b16 %v125, %v124
  %v135 = vpack.c.b16 %v127, %v126
  %v160 = vunpack.c.l.b16 %v80
  %v161 = vunpack.c.l.b16 %v81
  %v162 = vunpack.c.l.b16 %v82
  %v163 = vunpack.c.l.b16 %v83
  %v164 = vunpack.c.l.b16 %v84
  %v165 = vunpack.c.l.b16 %v85
  %v166 = vunpack.c.l.b16 %v86
  %v167 = vunpack.c.l.b16 %v87
  %v168 = vunpack.c.l.b16 %v88
  %v169 = vunpack.c.l.b16 %v89
  %v170 = vunpack.c.l.b16 %v90
  %v171 = vunpack.c.l.b16 %v91
  %v172 = vunpack.c.l.b16 %v92
  %v173 = vunpack.c.l.b16 %v93
  %v174 = vunpack.c.l.b16 %v94
  %v175 = vunpack.c.l.b16 %v95
  %v176 = vpack.c.b16 %v161, %v160
  %v177 = vpack.c.b16 %v163, %v162
  %v178 = vpack.c.b16 %v165, %v164
  %v179 = vpack.c.b16 %v167, %v166
  %v180 = vpack.c.b16 %v169, %v168
  %v181 = vpack.c.b16 %v171, %v170
  %v182 = vpack.c.b16 %v173, %v172
  %v183 = vpack.c.b16 %v175, %v174
  %192 = vmatpush.bf16.msra.mxu0 %v183
  %193 = vmatpush.bf16.msra.mxu0 %v182
  %194 = vmatpush.bf16.msra.mxu0 %v181
  %195 = vmatpush.bf16.msra.mxu0 %v180
  %196 = vmatpush.bf16.msra.mxu0 %v179
  %197 = vmatpush.bf16.msra.mxu0 %v178
  %198 = vmatpush.bf16.msra.mxu0 %v177
  %199 = vmatpush.bf16.msra.mxu0 %v176
  %200 = vmatmul.bf16.gmra.mxu0 %v128
  %v201 = vpop.f32.mrf.mxu0
  %v202 = vadd.f32 0.0, %v201
  %v203 = vpop.f32.mrf.mxu0
  %v204 = vadd.f32 0.0, %v203
  %205 = vmatmul.bf16.gmra.mxu0 %v129
  %v206 = vpop.f32.mrf.mxu0
  %v207 = vadd.f32 0.0, %v206
  %v208 = vpop.f32.mrf.mxu0
  %v209 = vadd.f32 0.0, %v208
  %210 = vmatmul.bf16.gmra.mxu0 %v130
  %v211 = vpop.f32.mrf.mxu0
  %v212 = vadd.f32 0.0, %v211
  %v213 = vpop.f32.mrf.mxu0
  %v214 = vadd.f32 0.0, %v213
  %215 = vmatmul.bf16.gmra.mxu0 %v131
  %v216 = vpop.f32.mrf.mxu0
  %v217 = vadd.f32 0.0, %v216
  %v218 = vpop.f32.mrf.mxu0
  %v219 = vadd.f32 0.0, %v218
  %220 = vmatmul.bf16.gmra.mxu0 %v132
  %v221 = vpop.f32.mrf.mxu0
  %v222 = vadd.f32 0.0, %v221
  %v223 = vpop.f32.mrf.mxu0
  %v224 = vadd.f32 0.0, %v223
  %225 = vmatmul.bf16.gmra.mxu0 %v133
  %v226 = vpop.f32.mrf.mxu0
  %v227 = vadd.f32 0.0, %v226
  %v228 = vpop.f32.mrf.mxu0
  %v229 = vadd.f32 0.0, %v228
  %230 = vmatmul.bf16.gmra.mxu0 %v134
  %v231 = vpop.f32.mrf.mxu0
  %v232 = vadd.f32 0.0, %v231
  %v233 = vpop.f32.mrf.mxu0
  %v234 = vadd.f32 0.0, %v233
  %235 = vmatmul.bf16.gmra.mxu0 %v135
  %v236 = vpop.f32.mrf.mxu0
  %v237 = vadd.f32 0.0, %v236
  %v238 = vpop.f32.mrf.mxu0
  %v239 = vadd.f32 0.0, %v238
  %240 = vdwg.mxu0
  %241 = vst [vmem:[%s10] sm:$0xff] %v202
  %242 = vst [vmem:[%s10 + $0x8] sm:$0xff] %v204
  %243 = vst [vmem:[%s10 + $0x10] sm:$0xff] %v207
  %244 = vst [vmem:[%s10 + $0x18] sm:$0xff] %v209
  %245 = vst [vmem:[%s10 + $0x20] sm:$0xff] %v212
  %246 = vst [vmem:[%s10 + $0x28] sm:$0xff] %v214
  %247 = vst [vmem:[%s10 + $0x30] sm:$0xff] %v217
  %248 = vst [vmem:[%s10 + $0x38] sm:$0xff] %v219
  %249 = vst [vmem:[%s10 + $0x40] sm:$0xff] %v222
  %250 = vst [vmem:[%s10 + $0x48] sm:$0xff] %v224
  %251 = vst [vmem:[%s10 + $0x50] sm:$0xff] %v227
  %252 = vst [vmem:[%s10 + $0x58] sm:$0xff] %v229
  %253 = vst [vmem:[%s10 + $0x60] sm:$0xff] %v232
  %254 = vst [vmem:[%s10 + $0x68] sm:$0xff] %v234
  %255 = vst [vmem:[%s10 + $0x70] sm:$0xff] %v237
  %256 = vst [vmem:[%s10 + $0x78] sm:$0xff] %v239
  %v257 = vld [vmem:[%s3] sm:$0x1]
  %v259 = vperm.slane %v257, 0
  %v261 = vadd.f32 %v202, %v259
  %v262 = vadd.f32 %v204, %v259
  %v263 = vadd.f32 %v207, %v259
  %v264 = vadd.f32 %v209, %v259
  %v265 = vadd.f32 %v212, %v259
  %v266 = vadd.f32 %v214, %v259
  %v267 = vadd.f32 %v217, %v259
  %v268 = vadd.f32 %v219, %v259
  %v269 = vadd.f32 %v222, %v259
  %v270 = vadd.f32 %v224, %v259
  %v271 = vadd.f32 %v227, %v259
  %v272 = vadd.f32 %v229, %v259
  %v273 = vadd.f32 %v232, %v259
  %v274 = vadd.f32 %v234, %v259
  %v275 = vadd.f32 %v237, %v259
  %v276 = vadd.f32 %v239, %v259
  %293 = vrot.lane.b32.xlu0 %v261, 127
  %v294 = vpop.permute.xlu0 %293
  %295 = vrot.lane.b32.xlu0 %v262, 127
  %v296 = vpop.permute.xlu0 %295
  %297 = vrot.lane.b32.xlu0 %v263, 127
  %v298 = vpop.permute.xlu0 %297
  %299 = vrot.lane.b32.xlu0 %v264, 127
  %v300 = vpop.permute.xlu0 %299
  %301 = vrot.lane.b32.xlu0 %v265, 127
  %v302 = vpop.permute.xlu0 %301
  %303 = vrot.lane.b32.xlu0 %v266, 127
  %v304 = vpop.permute.xlu0 %303
  %305 = vrot.lane.b32.xlu0 %v267, 127
  %v306 = vpop.permute.xlu0 %305
  %307 = vrot.lane.b32.xlu0 %v268, 127
  %v308 = vpop.permute.xlu0 %307
  %309 = vrot.lane.b32.xlu0 %v269, 127
  %v310 = vpop.permute.xlu0 %309
  %311 = vrot.lane.b32.xlu0 %v270, 127
  %v312 = vpop.permute.xlu0 %311
  %313 = vrot.lane.b32.xlu0 %v271, 127
  %v314 = vpop.permute.xlu0 %313
  %315 = vrot.lane.b32.xlu0 %v272, 127
  %v316 = vpop.permute.xlu0 %315
  %317 = vrot.lane.b32.xlu0 %v273, 127
  %v318 = vpop.permute.xlu0 %317
  %319 = vrot.lane.b32.xlu0 %v274, 127
  %v320 = vpop.permute.xlu0 %319
  %321 = vrot.lane.b32.xlu0 %v275, 127
  %v322 = vpop.permute.xlu0 %321
  %323 = vrot.lane.b32.xlu0 %v276, 127
  %v324 = vpop.permute.xlu0 %323
  %v341 = vmax.f32 %v261, %v294
  %v342 = vmax.f32 %v262, %v296
  %v343 = vmax.f32 %v263, %v298
  %v344 = vmax.f32 %v264, %v300
  %v345 = vmax.f32 %v265, %v302
  %v346 = vmax.f32 %v266, %v304
  %v347 = vmax.f32 %v267, %v306
  %v348 = vmax.f32 %v268, %v308
  %v349 = vmax.f32 %v269, %v310
  %v350 = vmax.f32 %v270, %v312
  %v351 = vmax.f32 %v271, %v314
  %v352 = vmax.f32 %v272, %v316
  %v353 = vmax.f32 %v273, %v318
  %v354 = vmax.f32 %v274, %v320
  %v355 = vmax.f32 %v275, %v322
  %v356 = vmax.f32 %v276, %v324
  %v357 = vsub.f32 %v261, %v341
  %v358 = vsub.f32 %v262, %v342
  %v359 = vsub.f32 %v263, %v343
  %v360 = vsub.f32 %v264, %v344
  %v361 = vsub.f32 %v265, %v345
  %v362 = vsub.f32 %v266, %v346
  %v363 = vsub.f32 %v267, %v347
  %v364 = vsub.f32 %v268, %v348
  %v365 = vsub.f32 %v269, %v349
  %v366 = vsub.f32 %v270, %v350
  %v367 = vsub.f32 %v271, %v351
  %v368 = vsub.f32 %v272, %v352
  %v369 = vsub.f32 %v273, %v353
  %v370 = vsub.f32 %v274, %v354
  %v371 = vsub.f32 %v275, %v355
  %v372 = vsub.f32 %v276, %v356
  %v373 = vmul.f32 %v357, 1.442695
  %v374 = vpow.pop %v373
  %v375 = vmul.f32 %v358, 1.442695
  %v376 = vpow.pop %v375
  %v377 = vmul.f32 %v359, 1.442695
  %v378 = vpow.pop %v377
  %v379 = vmul.f32 %v360, 1.442695
  %v380 = vpow.pop %v379
  %v381 = vmul.f32 %v361, 1.442695
  %v382 = vpow.pop %v381
  %v383 = vmul.f32 %v362, 1.442695
  %v384 = vpow.pop %v383
  %v385 = vmul.f32 %v363, 1.442695
  %v386 = vpow.pop %v385
  %v387 = vmul.f32 %v364, 1.442695
  %v388 = vpow.pop %v387
  %v389 = vmul.f32 %v365, 1.442695
  %v390 = vpow.pop %v389
  %v391 = vmul.f32 %v366, 1.442695
  %v392 = vpow.pop %v391
  %v393 = vmul.f32 %v367, 1.442695
  %v394 = vpow.pop %v393
  %v395 = vmul.f32 %v368, 1.442695
  %v396 = vpow.pop %v395
  %v397 = vmul.f32 %v369, 1.442695
  %v398 = vpow.pop %v397
  %v399 = vmul.f32 %v370, 1.442695
  %v400 = vpow.pop %v399
  %v401 = vmul.f32 %v371, 1.442695
  %v402 = vpow.pop %v401
  %v403 = vmul.f32 %v372, 1.442695
  %v404 = vpow.pop %v403
  %421 = vrot.lane.b32.xlu0 %v341, 1
  %v422 = vpop.permute.xlu0 %421
  %423 = vrot.lane.b32.xlu0 %v342, 1
  %v424 = vpop.permute.xlu0 %423
  %425 = vrot.lane.b32.xlu0 %v343, 1
  %v426 = vpop.permute.xlu0 %425
  %427 = vrot.lane.b32.xlu0 %v344, 1
  %v428 = vpop.permute.xlu0 %427
  %429 = vrot.lane.b32.xlu0 %v345, 1
  %v430 = vpop.permute.xlu0 %429
  %431 = vrot.lane.b32.xlu0 %v346, 1
  %v432 = vpop.permute.xlu0 %431
  %433 = vrot.lane.b32.xlu0 %v347, 1
  %v434 = vpop.permute.xlu0 %433
  %435 = vrot.lane.b32.xlu0 %v348, 1
  %v436 = vpop.permute.xlu0 %435
  %437 = vrot.lane.b32.xlu0 %v349, 1
  %v438 = vpop.permute.xlu0 %437
  %439 = vrot.lane.b32.xlu0 %v350, 1
  %v440 = vpop.permute.xlu0 %439
  %441 = vrot.lane.b32.xlu0 %v351, 1
  %v442 = vpop.permute.xlu0 %441
  %443 = vrot.lane.b32.xlu0 %v352, 1
  %v444 = vpop.permute.xlu0 %443
  %445 = vrot.lane.b32.xlu0 %v353, 1
  %v446 = vpop.permute.xlu0 %445
  %447 = vrot.lane.b32.xlu0 %v354, 1
  %v448 = vpop.permute.xlu0 %447
  %449 = vrot.lane.b32.xlu0 %v355, 1
  %v450 = vpop.permute.xlu0 %449
  %451 = vrot.lane.b32.xlu0 %v356, 1
  %v452 = vpop.permute.xlu0 %451
  %v469 = vsub.f32 %v261, %v422
  %v470 = vsub.f32 %v262, %v424
  %v471 = vsub.f32 %v263, %v426
  %v472 = vsub.f32 %v264, %v428
  %v473 = vsub.f32 %v265, %v430
  %v474 = vsub.f32 %v266, %v432
  %v475 = vsub.f32 %v267, %v434
  %v476 = vsub.f32 %v268, %v436
  %v477 = vsub.f32 %v269, %v438
  %v478 = vsub.f32 %v270, %v440
  %v479 = vsub.f32 %v271, %v442
  %v480 = vsub.f32 %v272, %v444
  %v481 = vsub.f32 %v273, %v446
  %v482 = vsub.f32 %v274, %v448
  %v483 = vsub.f32 %v275, %v450
  %v484 = vsub.f32 %v276, %v452
  %v485 = vmul.f32 %v469, 1.442695
  %v486 = vpow.pop %v485
  %v487 = vmul.f32 %v470, 1.442695
  %v488 = vpow.pop %v487
  %v489 = vmul.f32 %v471, 1.442695
  %v490 = vpow.pop %v489
  %v491 = vmul.f32 %v472, 1.442695
  %v492 = vpow.pop %v491
  %v493 = vmul.f32 %v473, 1.442695
  %v494 = vpow.pop %v493
  %v495 = vmul.f32 %v474, 1.442695
  %v496 = vpow.pop %v495
  %v497 = vmul.f32 %v475, 1.442695
  %v498 = vpow.pop %v497
  %v499 = vmul.f32 %v476, 1.442695
  %v500 = vpow.pop %v499
  %v501 = vmul.f32 %v477, 1.442695
  %v502 = vpow.pop %v501
  %v503 = vmul.f32 %v478, 1.442695
  %v504 = vpow.pop %v503
  %v505 = vmul.f32 %v479, 1.442695
  %v506 = vpow.pop %v505
  %v507 = vmul.f32 %v480, 1.442695
  %v508 = vpow.pop %v507
  %v509 = vmul.f32 %v481, 1.442695
  %v510 = vpow.pop %v509
  %v511 = vmul.f32 %v482, 1.442695
  %v512 = vpow.pop %v511
  %v513 = vmul.f32 %v483, 1.442695
  %v514 = vpow.pop %v513
  %v515 = vmul.f32 %v484, 1.442695
  %v516 = vpow.pop %v515
  %533 = vrot.lane.b32.xlu0 %v486, 127
  %v534 = vpop.permute.xlu0 %533
  %535 = vrot.lane.b32.xlu0 %v488, 127
  %v536 = vpop.permute.xlu0 %535
  %537 = vrot.lane.b32.xlu0 %v490, 127
  %v538 = vpop.permute.xlu0 %537
  %539 = vrot.lane.b32.xlu0 %v492, 127
  %v540 = vpop.permute.xlu0 %539
  %541 = vrot.lane.b32.xlu0 %v494, 127
  %v542 = vpop.permute.xlu0 %541
  %543 = vrot.lane.b32.xlu0 %v496, 127
  %v544 = vpop.permute.xlu0 %543
  %545 = vrot.lane.b32.xlu0 %v498, 127
  %v546 = vpop.permute.xlu0 %545
  %547 = vrot.lane.b32.xlu0 %v500, 127
  %v548 = vpop.permute.xlu0 %547
  %549 = vrot.lane.b32.xlu0 %v502, 127
  %v550 = vpop.permute.xlu0 %549
  %551 = vrot.lane.b32.xlu0 %v504, 127
  %v552 = vpop.permute.xlu0 %551
  %553 = vrot.lane.b32.xlu0 %v506, 127
  %v554 = vpop.permute.xlu0 %553
  %555 = vrot.lane.b32.xlu0 %v508, 127
  %v556 = vpop.permute.xlu0 %555
  %557 = vrot.lane.b32.xlu0 %v510, 127
  %v558 = vpop.permute.xlu0 %557
  %559 = vrot.lane.b32.xlu0 %v512, 127
  %v560 = vpop.permute.xlu0 %559
  %561 = vrot.lane.b32.xlu0 %v514, 127
  %v562 = vpop.permute.xlu0 %561
  %563 = vrot.lane.b32.xlu0 %v516, 127
  %v564 = vpop.permute.xlu0 %563
  %v581 = vadd.f32 %v374, %v534
  %v582 = vadd.f32 %v376, %v536
  %v583 = vadd.f32 %v378, %v538
  %v584 = vadd.f32 %v380, %v540
  %v585 = vadd.f32 %v382, %v542
  %v586 = vadd.f32 %v384, %v544
  %v587 = vadd.f32 %v386, %v546
  %v588 = vadd.f32 %v388, %v548
  %v589 = vadd.f32 %v390, %v550
  %v590 = vadd.f32 %v392, %v552
  %v591 = vadd.f32 %v394, %v554
  %v592 = vadd.f32 %v396, %v556
  %v593 = vadd.f32 %v398, %v558
  %v594 = vadd.f32 %v400, %v560
  %v595 = vadd.f32 %v402, %v562
  %v596 = vadd.f32 %v404, %v564
  %v597 = vrcp.pop %v581
  %v598 = vrcp.pop %v582
  %v599 = vrcp.pop %v583
  %v600 = vrcp.pop %v584
  %v601 = vrcp.pop %v585
  %v602 = vrcp.pop %v586
  %v603 = vrcp.pop %v587
  %v604 = vrcp.pop %v588
  %v605 = vrcp.pop %v589
  %v606 = vrcp.pop %v590
  %v607 = vrcp.pop %v591
  %v608 = vrcp.pop %v592
  %v609 = vrcp.pop %v593
  %v610 = vrcp.pop %v594
  %v611 = vrcp.pop %v595
  %v612 = vrcp.pop %v596
  %v613 = vmul.f32 %v374, %v597
  %v614 = vmul.f32 %v376, %v598
  %v615 = vmul.f32 %v378, %v599
  %v616 = vmul.f32 %v380, %v600
  %v617 = vmul.f32 %v382, %v601
  %v618 = vmul.f32 %v384, %v602
  %v619 = vmul.f32 %v386, %v603
  %v620 = vmul.f32 %v388, %v604
  %v621 = vmul.f32 %v390, %v605
  %v622 = vmul.f32 %v392, %v606
  %v623 = vmul.f32 %v394, %v607
  %v624 = vmul.f32 %v396, %v608
  %v625 = vmul.f32 %v398, %v609
  %v626 = vmul.f32 %v400, %v610
  %v627 = vmul.f32 %v402, %v611
  %v628 = vmul.f32 %v404, %v612
  %630 = vset.pattern.permute.xlu0 0
  %631 = vperm.xlu0 %630, %v613
  %v632 = vpop.permute.xlu0 %631
  %635 = vset.pattern.permute.xlu0 0
  %636 = vperm.xlu0 %635, %v614
  %v637 = vpop.permute.xlu0 %636
  %640 = vset.pattern.permute.xlu0 0
  %641 = vperm.xlu0 %640, %v615
  %v642 = vpop.permute.xlu0 %641
  %645 = vset.pattern.permute.xlu0 0
  %646 = vperm.xlu0 %645, %v616
  %v647 = vpop.permute.xlu0 %646
  %650 = vset.pattern.permute.xlu0 0
  %651 = vperm.xlu0 %650, %v617
  %v652 = vpop.permute.xlu0 %651
  %655 = vset.pattern.permute.xlu0 0
  %656 = vperm.xlu0 %655, %v618
  %v657 = vpop.permute.xlu0 %656
  %660 = vset.pattern.permute.xlu0 0
  %661 = vperm.xlu0 %660, %v619
  %v662 = vpop.permute.xlu0 %661
  %665 = vset.pattern.permute.xlu0 0
  %666 = vperm.xlu0 %665, %v620
  %v667 = vpop.permute.xlu0 %666
  %670 = vset.pattern.permute.xlu0 0
  %671 = vperm.xlu0 %670, %v621
  %v672 = vpop.permute.xlu0 %671
  %675 = vset.pattern.permute.xlu0 0
  %676 = vperm.xlu0 %675, %v622
  %v677 = vpop.permute.xlu0 %676
  %680 = vset.pattern.permute.xlu0 0
  %681 = vperm.xlu0 %680, %v623
  %v682 = vpop.permute.xlu0 %681
  %685 = vset.pattern.permute.xlu0 0
  %686 = vperm.xlu0 %685, %v624
  %v687 = vpop.permute.xlu0 %686
  %690 = vset.pattern.permute.xlu0 0
  %691 = vperm.xlu0 %690, %v625
  %v692 = vpop.permute.xlu0 %691
  %695 = vset.pattern.permute.xlu0 0
  %696 = vperm.xlu0 %695, %v626
  %v697 = vpop.permute.xlu0 %696
  %700 = vset.pattern.permute.xlu0 0
  %701 = vperm.xlu0 %700, %v627
  %v702 = vpop.permute.xlu0 %701
  %705 = vset.pattern.permute.xlu0 0
  %706 = vperm.xlu0 %705, %v628
  %v707 = vpop.permute.xlu0 %706
  %v709 = vmul.f32 %v632, %v64
  %v710 = vmul.f32 %v637, %v65
  %v711 = vmul.f32 %v642, %v66
  %v712 = vmul.f32 %v647, %v67
  %v713 = vmul.f32 %v652, %v68
  %v714 = vmul.f32 %v657, %v69
  %v715 = vmul.f32 %v662, %v70
  %v716 = vmul.f32 %v667, %v71
  %v717 = vmul.f32 %v672, %v72
  %v718 = vmul.f32 %v677, %v73
  %v719 = vmul.f32 %v682, %v74
  %v720 = vmul.f32 %v687, %v75
  %v721 = vmul.f32 %v692, %v76
  %v722 = vmul.f32 %v697, %v77
  %v723 = vmul.f32 %v702, %v78
  %v724 = vmul.f32 %v707, %v79
  %741 = vrot.lane.b32.xlu0 %v597, 1
  %v742 = vpop.permute.xlu0 %741
  %743 = vrot.lane.b32.xlu0 %v598, 1
  %v744 = vpop.permute.xlu0 %743
  %745 = vrot.lane.b32.xlu0 %v599, 1
  %v746 = vpop.permute.xlu0 %745
  %747 = vrot.lane.b32.xlu0 %v600, 1
  %v748 = vpop.permute.xlu0 %747
  %749 = vrot.lane.b32.xlu0 %v601, 1
  %v750 = vpop.permute.xlu0 %749
  %751 = vrot.lane.b32.xlu0 %v602, 1
  %v752 = vpop.permute.xlu0 %751
  %753 = vrot.lane.b32.xlu0 %v603, 1
  %v754 = vpop.permute.xlu0 %753
  %755 = vrot.lane.b32.xlu0 %v604, 1
  %v756 = vpop.permute.xlu0 %755
  %757 = vrot.lane.b32.xlu0 %v605, 1
  %v758 = vpop.permute.xlu0 %757
  %759 = vrot.lane.b32.xlu0 %v606, 1
  %v760 = vpop.permute.xlu0 %759
  %761 = vrot.lane.b32.xlu0 %v607, 1
  %v762 = vpop.permute.xlu0 %761
  %763 = vrot.lane.b32.xlu0 %v608, 1
  %v764 = vpop.permute.xlu0 %763
  %765 = vrot.lane.b32.xlu0 %v609, 1
  %v766 = vpop.permute.xlu0 %765
  %767 = vrot.lane.b32.xlu0 %v610, 1
  %v768 = vpop.permute.xlu0 %767
  %769 = vrot.lane.b32.xlu0 %v611, 1
  %v770 = vpop.permute.xlu0 %769
  %771 = vrot.lane.b32.xlu0 %v612, 1
  %v772 = vpop.permute.xlu0 %771
  %v789 = vmul.f32 %v486, %v742
  %v790 = vmul.f32 %v488, %v744
  %v791 = vmul.f32 %v490, %v746
  %v792 = vmul.f32 %v492, %v748
  %v793 = vmul.f32 %v494, %v750
  %v794 = vmul.f32 %v496, %v752
  %v795 = vmul.f32 %v498, %v754
  %v796 = vmul.f32 %v500, %v756
  %v797 = vmul.f32 %v502, %v758
  %v798 = vmul.f32 %v504, %v760
  %v799 = vmul.f32 %v506, %v762
  %v800 = vmul.f32 %v508, %v764
  %v801 = vmul.f32 %v510, %v766
  %v802 = vmul.f32 %v512, %v768
  %v803 = vmul.f32 %v514, %v770
  %v804 = vmul.f32 %v516, %v772
  %806 = vset.pattern.permute.xlu0 1
  %807 = vperm.xlu0 %806, %v789
  %v808 = vpop.permute.xlu0 %807
  %811 = vset.pattern.permute.xlu0 1
  %812 = vperm.xlu0 %811, %v790
  %v813 = vpop.permute.xlu0 %812
  %816 = vset.pattern.permute.xlu0 1
  %817 = vperm.xlu0 %816, %v791
  %v818 = vpop.permute.xlu0 %817
  %821 = vset.pattern.permute.xlu0 1
  %822 = vperm.xlu0 %821, %v792
  %v823 = vpop.permute.xlu0 %822
  %826 = vset.pattern.permute.xlu0 1
  %827 = vperm.xlu0 %826, %v793
  %v828 = vpop.permute.xlu0 %827
  %831 = vset.pattern.permute.xlu0 1
  %832 = vperm.xlu0 %831, %v794
  %v833 = vpop.permute.xlu0 %832
  %836 = vset.pattern.permute.xlu0 1
  %837 = vperm.xlu0 %836, %v795
  %v838 = vpop.permute.xlu0 %837
  %841 = vset.pattern.permute.xlu0 1
  %842 = vperm.xlu0 %841, %v796
  %v843 = vpop.permute.xlu0 %842
  %846 = vset.pattern.permute.xlu0 1
  %847 = vperm.xlu0 %846, %v797
  %v848 = vpop.permute.xlu0 %847
  %851 = vset.pattern.permute.xlu0 1
  %852 = vperm.xlu0 %851, %v798
  %v853 = vpop.permute.xlu0 %852
  %856 = vset.pattern.permute.xlu0 1
  %857 = vperm.xlu0 %856, %v799
  %v858 = vpop.permute.xlu0 %857
  %861 = vset.pattern.permute.xlu0 1
  %862 = vperm.xlu0 %861, %v800
  %v863 = vpop.permute.xlu0 %862
  %866 = vset.pattern.permute.xlu0 1
  %867 = vperm.xlu0 %866, %v801
  %v868 = vpop.permute.xlu0 %867
  %871 = vset.pattern.permute.xlu0 1
  %872 = vperm.xlu0 %871, %v802
  %v873 = vpop.permute.xlu0 %872
  %876 = vset.pattern.permute.xlu0 1
  %877 = vperm.xlu0 %876, %v803
  %v878 = vpop.permute.xlu0 %877
  %881 = vset.pattern.permute.xlu0 1
  %882 = vperm.xlu0 %881, %v804
  %v883 = vpop.permute.xlu0 %882
  %v885 = vmul.f32 %v808, %v64
  %v886 = vmul.f32 %v813, %v65
  %v887 = vmul.f32 %v818, %v66
  %v888 = vmul.f32 %v823, %v67
  %v889 = vmul.f32 %v828, %v68
  %v890 = vmul.f32 %v833, %v69
  %v891 = vmul.f32 %v838, %v70
  %v892 = vmul.f32 %v843, %v71
  %v893 = vmul.f32 %v848, %v72
  %v894 = vmul.f32 %v853, %v73
  %v895 = vmul.f32 %v858, %v74
  %v896 = vmul.f32 %v863, %v75
  %v897 = vmul.f32 %v868, %v76
  %v898 = vmul.f32 %v873, %v77
  %v899 = vmul.f32 %v878, %v78
  %v900 = vmul.f32 %v883, %v79
  %v901 = vld [vmem:[%s4] sm:$0x1]
  %v902 = vld [vmem:[%s5] sm:$0x1]
  %v903 = vadd.f32 %v709, %v710
  %v904 = vadd.f32 %v903, %v711
  %v905 = vadd.f32 %v904, %v712
  %v906 = vadd.f32 %v905, %v713
  %v907 = vadd.f32 %v906, %v714
  %v908 = vadd.f32 %v907, %v715
  %v909 = vadd.f32 %v908, %v716
  %v910 = vadd.f32 %v909, %v717
  %v911 = vadd.f32 %v910, %v718
  %v912 = vadd.f32 %v911, %v719
  %v913 = vadd.f32 %v912, %v720
  %v914 = vadd.f32 %v913, %v721
  %v915 = vadd.f32 %v914, %v722
  %v916 = vadd.f32 %v915, %v723
  %v917 = vadd.f32 %v916, %v724
  %v918 = vrot.slane %v917, 4
  %v919 = vadd.f32 %v917, %v918
  %v920 = vrot.slane %v919, 2
  %v921 = vadd.f32 %v919, %v920
  %v922 = vrot.slane %v921, 1
  %v923 = vadd.f32 %v921, %v922
  %v924 = vmul.f32 %v923, 0.0625
  %v925 = vsub.f32 %v709, %v924
  %v926 = vsub.f32 %v710, %v924
  %v927 = vsub.f32 %v711, %v924
  %v928 = vsub.f32 %v712, %v924
  %v929 = vsub.f32 %v713, %v924
  %v930 = vsub.f32 %v714, %v924
  %v931 = vsub.f32 %v715, %v924
  %v932 = vsub.f32 %v716, %v924
  %v933 = vsub.f32 %v717, %v924
  %v934 = vsub.f32 %v718, %v924
  %v935 = vsub.f32 %v719, %v924
  %v936 = vsub.f32 %v720, %v924
  %v937 = vsub.f32 %v721, %v924
  %v938 = vsub.f32 %v722, %v924
  %v939 = vsub.f32 %v723, %v924
  %v940 = vsub.f32 %v724, %v924
  %942 = vset.pattern.permute.xlu0 0
  %943 = vperm.xlu0 %942, %v32
  %v944 = vpop.permute.xlu0 %943
  %947 = vset.pattern.permute.xlu0 0
  %948 = vperm.xlu0 %947, %v33
  %v949 = vpop.permute.xlu0 %948
  %952 = vset.pattern.permute.xlu0 0
  %953 = vperm.xlu0 %952, %v34
  %v954 = vpop.permute.xlu0 %953
  %957 = vset.pattern.permute.xlu0 0
  %958 = vperm.xlu0 %957, %v35
  %v959 = vpop.permute.xlu0 %958
  %962 = vset.pattern.permute.xlu0 0
  %963 = vperm.xlu0 %962, %v36
  %v964 = vpop.permute.xlu0 %963
  %967 = vset.pattern.permute.xlu0 0
  %968 = vperm.xlu0 %967, %v37
  %v969 = vpop.permute.xlu0 %968
  %972 = vset.pattern.permute.xlu0 0
  %973 = vperm.xlu0 %972, %v38
  %v974 = vpop.permute.xlu0 %973
  %977 = vset.pattern.permute.xlu0 0
  %978 = vperm.xlu0 %977, %v39
  %v979 = vpop.permute.xlu0 %978
  %982 = vset.pattern.permute.xlu0 0
  %983 = vperm.xlu0 %982, %v40
  %v984 = vpop.permute.xlu0 %983
  %987 = vset.pattern.permute.xlu0 0
  %988 = vperm.xlu0 %987, %v41
  %v989 = vpop.permute.xlu0 %988
  %992 = vset.pattern.permute.xlu0 0
  %993 = vperm.xlu0 %992, %v42
  %v994 = vpop.permute.xlu0 %993
  %997 = vset.pattern.permute.xlu0 0
  %998 = vperm.xlu0 %997, %v43
  %v999 = vpop.permute.xlu0 %998
  %1002 = vset.pattern.permute.xlu0 0
  %1003 = vperm.xlu0 %1002, %v44
  %v1004 = vpop.permute.xlu0 %1003
  %1007 = vset.pattern.permute.xlu0 0
  %1008 = vperm.xlu0 %1007, %v45
  %v1009 = vpop.permute.xlu0 %1008
  %1012 = vset.pattern.permute.xlu0 0
  %1013 = vperm.xlu0 %1012, %v46
  %v1014 = vpop.permute.xlu0 %1013
  %1017 = vset.pattern.permute.xlu0 0
  %1018 = vperm.xlu0 %1017, %v47
  %v1019 = vpop.permute.xlu0 %1018
  %v1021 = vmul.f32 %v925, %v944
  %v1022 = vmul.f32 %v926, %v949
  %v1023 = vmul.f32 %v927, %v954
  %v1024 = vmul.f32 %v928, %v959
  %v1025 = vmul.f32 %v929, %v964
  %v1026 = vmul.f32 %v930, %v969
  %v1027 = vmul.f32 %v931, %v974
  %v1028 = vmul.f32 %v932, %v979
  %v1029 = vmul.f32 %v933, %v984
  %v1030 = vmul.f32 %v934, %v989
  %v1031 = vmul.f32 %v935, %v994
  %v1032 = vmul.f32 %v936, %v999
  %v1033 = vmul.f32 %v937, %v1004
  %v1034 = vmul.f32 %v938, %v1009
  %v1035 = vmul.f32 %v939, %v1014
  %v1036 = vmul.f32 %v940, %v1019
  %v1037 = vmul.f32 %v1021, %v1021
  %v1038 = vmul.f32 %v1022, %v1022
  %v1039 = vmul.f32 %v1023, %v1023
  %v1040 = vmul.f32 %v1024, %v1024
  %v1041 = vmul.f32 %v1025, %v1025
  %v1042 = vmul.f32 %v1026, %v1026
  %v1043 = vmul.f32 %v1027, %v1027
  %v1044 = vmul.f32 %v1028, %v1028
  %v1045 = vmul.f32 %v1029, %v1029
  %v1046 = vmul.f32 %v1030, %v1030
  %v1047 = vmul.f32 %v1031, %v1031
  %v1048 = vmul.f32 %v1032, %v1032
  %v1049 = vmul.f32 %v1033, %v1033
  %v1050 = vmul.f32 %v1034, %v1034
  %v1051 = vmul.f32 %v1035, %v1035
  %v1052 = vmul.f32 %v1036, %v1036
  %v1053 = vadd.f32 %v1037, %v1038
  %v1054 = vadd.f32 %v1053, %v1039
  %v1055 = vadd.f32 %v1054, %v1040
  %v1056 = vadd.f32 %v1055, %v1041
  %v1057 = vadd.f32 %v1056, %v1042
  %v1058 = vadd.f32 %v1057, %v1043
  %v1059 = vadd.f32 %v1058, %v1044
  %v1060 = vadd.f32 %v1059, %v1045
  %v1061 = vadd.f32 %v1060, %v1046
  %v1062 = vadd.f32 %v1061, %v1047
  %v1063 = vadd.f32 %v1062, %v1048
  %v1064 = vadd.f32 %v1063, %v1049
  %v1065 = vadd.f32 %v1064, %v1050
  %v1066 = vadd.f32 %v1065, %v1051
  %v1067 = vadd.f32 %v1066, %v1052
  %v1068 = vrot.slane %v1067, 4
  %v1069 = vadd.f32 %v1067, %v1068
  %v1070 = vrot.slane %v1069, 2
  %v1071 = vadd.f32 %v1069, %v1070
  %v1072 = vrot.slane %v1071, 1
  %v1073 = vadd.f32 %v1071, %v1072
  %v1074 = vmul.f32 %v1073, 0.0625
  %v1075 = vadd.f32 %v1074, 1e-05
  %v1076 = vrsqrt.pop %v1075
  %v1077 = vmul.f32 %v1076, %v1075
  %v1078 = vmul.f32 %v1077, %v1076
  %v1079 = vmul.f32 0.5, %v1078
  %v1080 = vsub.f32 1.5, %v1079
  %v1081 = vmul.f32 %v1076, %v1080
  %vm1082 = vweird.f32 %v1075
  %vm1083 = vweird.f32 %v1076
  %vm1084 = vmor %vm1082, %vm1083
  %v1085 = vsel %vm1084, %v1076, %v1081
  %v1086 = vmul.f32 %v925, %v1085
  %v1087 = vmul.f32 %v926, %v1085
  %v1088 = vmul.f32 %v927, %v1085
  %v1089 = vmul.f32 %v928, %v1085
  %v1090 = vmul.f32 %v929, %v1085
  %v1091 = vmul.f32 %v930, %v1085
  %v1092 = vmul.f32 %v931, %v1085
  %v1093 = vmul.f32 %v932, %v1085
  %v1094 = vmul.f32 %v933, %v1085
  %v1095 = vmul.f32 %v934, %v1085
  %v1096 = vmul.f32 %v935, %v1085
  %v1097 = vmul.f32 %v936, %v1085
  %v1098 = vmul.f32 %v937, %v1085
  %v1099 = vmul.f32 %v938, %v1085
  %v1100 = vmul.f32 %v939, %v1085
  %v1101 = vmul.f32 %v940, %v1085
  %v1103 = vperm.slane %v901, 0
  %v1105 = vmul.f32 %v1086, %v1103
  %v1106 = vmul.f32 %v1087, %v1103
  %v1107 = vmul.f32 %v1088, %v1103
  %v1108 = vmul.f32 %v1089, %v1103
  %v1109 = vmul.f32 %v1090, %v1103
  %v1110 = vmul.f32 %v1091, %v1103
  %v1111 = vmul.f32 %v1092, %v1103
  %v1112 = vmul.f32 %v1093, %v1103
  %v1113 = vmul.f32 %v1094, %v1103
  %v1114 = vmul.f32 %v1095, %v1103
  %v1115 = vmul.f32 %v1096, %v1103
  %v1116 = vmul.f32 %v1097, %v1103
  %v1117 = vmul.f32 %v1098, %v1103
  %v1118 = vmul.f32 %v1099, %v1103
  %v1119 = vmul.f32 %v1100, %v1103
  %v1120 = vmul.f32 %v1101, %v1103
  %v1122 = vperm.slane %v902, 0
  %v1124 = vadd.f32 %v1105, %v1122
  %v1125 = vadd.f32 %v1106, %v1122
  %v1126 = vadd.f32 %v1107, %v1122
  %v1127 = vadd.f32 %v1108, %v1122
  %v1128 = vadd.f32 %v1109, %v1122
  %v1129 = vadd.f32 %v1110, %v1122
  %v1130 = vadd.f32 %v1111, %v1122
  %v1131 = vadd.f32 %v1112, %v1122
  %v1132 = vadd.f32 %v1113, %v1122
  %v1133 = vadd.f32 %v1114, %v1122
  %v1134 = vadd.f32 %v1115, %v1122
  %v1135 = vadd.f32 %v1116, %v1122
  %v1136 = vadd.f32 %v1117, %v1122
  %v1137 = vadd.f32 %v1118, %v1122
  %v1138 = vadd.f32 %v1119, %v1122
  %v1139 = vadd.f32 %v1120, %v1122
  %v1140 = vpack.c.bf16 %v1124, %v1124
  %v1141 = vpack.c.bf16 %v1125, %v1125
  %v1142 = vpack.c.bf16 %v1126, %v1126
  %v1143 = vpack.c.bf16 %v1127, %v1127
  %v1144 = vpack.c.bf16 %v1128, %v1128
  %v1145 = vpack.c.bf16 %v1129, %v1129
  %v1146 = vpack.c.bf16 %v1130, %v1130
  %v1147 = vpack.c.bf16 %v1131, %v1131
  %v1148 = vpack.c.bf16 %v1132, %v1132
  %v1149 = vpack.c.bf16 %v1133, %v1133
  %v1150 = vpack.c.bf16 %v1134, %v1134
  %v1151 = vpack.c.bf16 %v1135, %v1135
  %v1152 = vpack.c.bf16 %v1136, %v1136
  %v1153 = vpack.c.bf16 %v1137, %v1137
  %v1154 = vpack.c.bf16 %v1138, %v1138
  %v1155 = vpack.c.bf16 %v1139, %v1139
  %1156 = vst [vmem:[%s8] sm:$0xf] %v1140
  %1157 = vst [vmem:[%s8 + $0x4] sm:$0xf] %v1141
  %1158 = vst [vmem:[%s8 + $0x8] sm:$0xf] %v1142
  %1159 = vst [vmem:[%s8 + $0xc] sm:$0xf] %v1143
  %1160 = vst [vmem:[%s8 + $0x10] sm:$0xf] %v1144
  %1161 = vst [vmem:[%s8 + $0x14] sm:$0xf] %v1145
  %1162 = vst [vmem:[%s8 + $0x18] sm:$0xf] %v1146
  %1163 = vst [vmem:[%s8 + $0x1c] sm:$0xf] %v1147
  %1164 = vst [vmem:[%s8 + $0x20] sm:$0xf] %v1148
  %1165 = vst [vmem:[%s8 + $0x24] sm:$0xf] %v1149
  %1166 = vst [vmem:[%s8 + $0x28] sm:$0xf] %v1150
  %1167 = vst [vmem:[%s8 + $0x2c] sm:$0xf] %v1151
  %1168 = vst [vmem:[%s8 + $0x30] sm:$0xf] %v1152
  %1169 = vst [vmem:[%s8 + $0x34] sm:$0xf] %v1153
  %1170 = vst [vmem:[%s8 + $0x38] sm:$0xf] %v1154
  %1171 = vst [vmem:[%s8 + $0x3c] sm:$0xf] %v1155
  %v1172 = vld [vmem:[%s6] sm:$0x1]
  %v1173 = vld [vmem:[%s7] sm:$0x1]
  %v1174 = vadd.f32 %v885, %v886
  %v1175 = vadd.f32 %v1174, %v887
  %v1176 = vadd.f32 %v1175, %v888
  %v1177 = vadd.f32 %v1176, %v889
  %v1178 = vadd.f32 %v1177, %v890
  %v1179 = vadd.f32 %v1178, %v891
  %v1180 = vadd.f32 %v1179, %v892
  %v1181 = vadd.f32 %v1180, %v893
  %v1182 = vadd.f32 %v1181, %v894
  %v1183 = vadd.f32 %v1182, %v895
  %v1184 = vadd.f32 %v1183, %v896
  %v1185 = vadd.f32 %v1184, %v897
  %v1186 = vadd.f32 %v1185, %v898
  %v1187 = vadd.f32 %v1186, %v899
  %v1188 = vadd.f32 %v1187, %v900
  %v1189 = vrot.slane %v1188, 4
  %v1190 = vadd.f32 %v1188, %v1189
  %v1191 = vrot.slane %v1190, 2
  %v1192 = vadd.f32 %v1190, %v1191
  %v1193 = vrot.slane %v1192, 1
  %v1194 = vadd.f32 %v1192, %v1193
  %v1195 = vmul.f32 %v1194, 0.0625
  %v1196 = vsub.f32 %v885, %v1195
  %v1197 = vsub.f32 %v886, %v1195
  %v1198 = vsub.f32 %v887, %v1195
  %v1199 = vsub.f32 %v888, %v1195
  %v1200 = vsub.f32 %v889, %v1195
  %v1201 = vsub.f32 %v890, %v1195
  %v1202 = vsub.f32 %v891, %v1195
  %v1203 = vsub.f32 %v892, %v1195
  %v1204 = vsub.f32 %v893, %v1195
  %v1205 = vsub.f32 %v894, %v1195
  %v1206 = vsub.f32 %v895, %v1195
  %v1207 = vsub.f32 %v896, %v1195
  %v1208 = vsub.f32 %v897, %v1195
  %v1209 = vsub.f32 %v898, %v1195
  %v1210 = vsub.f32 %v899, %v1195
  %v1211 = vsub.f32 %v900, %v1195
  %v1212 = vmul.f32 %v1196, %v944
  %v1213 = vmul.f32 %v1197, %v949
  %v1214 = vmul.f32 %v1198, %v954
  %v1215 = vmul.f32 %v1199, %v959
  %v1216 = vmul.f32 %v1200, %v964
  %v1217 = vmul.f32 %v1201, %v969
  %v1218 = vmul.f32 %v1202, %v974
  %v1219 = vmul.f32 %v1203, %v979
  %v1220 = vmul.f32 %v1204, %v984
  %v1221 = vmul.f32 %v1205, %v989
  %v1222 = vmul.f32 %v1206, %v994
  %v1223 = vmul.f32 %v1207, %v999
  %v1224 = vmul.f32 %v1208, %v1004
  %v1225 = vmul.f32 %v1209, %v1009
  %v1226 = vmul.f32 %v1210, %v1014
  %v1227 = vmul.f32 %v1211, %v1019
  %v1228 = vmul.f32 %v1212, %v1212
  %v1229 = vmul.f32 %v1213, %v1213
  %v1230 = vmul.f32 %v1214, %v1214
  %v1231 = vmul.f32 %v1215, %v1215
  %v1232 = vmul.f32 %v1216, %v1216
  %v1233 = vmul.f32 %v1217, %v1217
  %v1234 = vmul.f32 %v1218, %v1218
  %v1235 = vmul.f32 %v1219, %v1219
  %v1236 = vmul.f32 %v1220, %v1220
  %v1237 = vmul.f32 %v1221, %v1221
  %v1238 = vmul.f32 %v1222, %v1222
  %v1239 = vmul.f32 %v1223, %v1223
  %v1240 = vmul.f32 %v1224, %v1224
  %v1241 = vmul.f32 %v1225, %v1225
  %v1242 = vmul.f32 %v1226, %v1226
  %v1243 = vmul.f32 %v1227, %v1227
  %v1244 = vadd.f32 %v1228, %v1229
  %v1245 = vadd.f32 %v1244, %v1230
  %v1246 = vadd.f32 %v1245, %v1231
  %v1247 = vadd.f32 %v1246, %v1232
  %v1248 = vadd.f32 %v1247, %v1233
  %v1249 = vadd.f32 %v1248, %v1234
  %v1250 = vadd.f32 %v1249, %v1235
  %v1251 = vadd.f32 %v1250, %v1236
  %v1252 = vadd.f32 %v1251, %v1237
  %v1253 = vadd.f32 %v1252, %v1238
  %v1254 = vadd.f32 %v1253, %v1239
  %v1255 = vadd.f32 %v1254, %v1240
  %v1256 = vadd.f32 %v1255, %v1241
  %v1257 = vadd.f32 %v1256, %v1242
  %v1258 = vadd.f32 %v1257, %v1243
  %v1259 = vrot.slane %v1258, 4
  %v1260 = vadd.f32 %v1258, %v1259
  %v1261 = vrot.slane %v1260, 2
  %v1262 = vadd.f32 %v1260, %v1261
  %v1263 = vrot.slane %v1262, 1
  %v1264 = vadd.f32 %v1262, %v1263
  %v1265 = vmul.f32 %v1264, 0.0625
  %v1266 = vadd.f32 %v1265, 1e-05
  %v1267 = vrsqrt.pop %v1266
  %v1268 = vmul.f32 %v1267, %v1266
  %v1269 = vmul.f32 %v1268, %v1267
  %v1270 = vmul.f32 0.5, %v1269
  %v1271 = vsub.f32 1.5, %v1270
  %v1272 = vmul.f32 %v1267, %v1271
  %vm1273 = vweird.f32 %v1266
  %vm1274 = vweird.f32 %v1267
  %vm1275 = vmor %vm1273, %vm1274
  %v1276 = vsel %vm1275, %v1267, %v1272
  %v1277 = vmul.f32 %v1196, %v1276
  %v1278 = vmul.f32 %v1197, %v1276
  %v1279 = vmul.f32 %v1198, %v1276
  %v1280 = vmul.f32 %v1199, %v1276
  %v1281 = vmul.f32 %v1200, %v1276
  %v1282 = vmul.f32 %v1201, %v1276
  %v1283 = vmul.f32 %v1202, %v1276
  %v1284 = vmul.f32 %v1203, %v1276
  %v1285 = vmul.f32 %v1204, %v1276
  %v1286 = vmul.f32 %v1205, %v1276
  %v1287 = vmul.f32 %v1206, %v1276
  %v1288 = vmul.f32 %v1207, %v1276
  %v1289 = vmul.f32 %v1208, %v1276
  %v1290 = vmul.f32 %v1209, %v1276
  %v1291 = vmul.f32 %v1210, %v1276
  %v1292 = vmul.f32 %v1211, %v1276
  %v1294 = vperm.slane %v1172, 0
  %v1296 = vmul.f32 %v1277, %v1294
  %v1297 = vmul.f32 %v1278, %v1294
  %v1298 = vmul.f32 %v1279, %v1294
  %v1299 = vmul.f32 %v1280, %v1294
  %v1300 = vmul.f32 %v1281, %v1294
  %v1301 = vmul.f32 %v1282, %v1294
  %v1302 = vmul.f32 %v1283, %v1294
  %v1303 = vmul.f32 %v1284, %v1294
  %v1304 = vmul.f32 %v1285, %v1294
  %v1305 = vmul.f32 %v1286, %v1294
  %v1306 = vmul.f32 %v1287, %v1294
  %v1307 = vmul.f32 %v1288, %v1294
  %v1308 = vmul.f32 %v1289, %v1294
  %v1309 = vmul.f32 %v1290, %v1294
  %v1310 = vmul.f32 %v1291, %v1294
  %v1311 = vmul.f32 %v1292, %v1294
  %v1313 = vperm.slane %v1173, 0
  %v1315 = vadd.f32 %v1296, %v1313
  %v1316 = vadd.f32 %v1297, %v1313
  %v1317 = vadd.f32 %v1298, %v1313
  %v1318 = vadd.f32 %v1299, %v1313
  %v1319 = vadd.f32 %v1300, %v1313
  %v1320 = vadd.f32 %v1301, %v1313
  %v1321 = vadd.f32 %v1302, %v1313
  %v1322 = vadd.f32 %v1303, %v1313
  %v1323 = vadd.f32 %v1304, %v1313
  %v1324 = vadd.f32 %v1305, %v1313
  %v1325 = vadd.f32 %v1306, %v1313
  %v1326 = vadd.f32 %v1307, %v1313
  %v1327 = vadd.f32 %v1308, %v1313
  %v1328 = vadd.f32 %v1309, %v1313
  %v1329 = vadd.f32 %v1310, %v1313
  %v1330 = vadd.f32 %v1311, %v1313
  %v1331 = vpack.c.bf16 %v1315, %v1315
  %v1332 = vpack.c.bf16 %v1316, %v1316
  %v1333 = vpack.c.bf16 %v1317, %v1317
  %v1334 = vpack.c.bf16 %v1318, %v1318
  %v1335 = vpack.c.bf16 %v1319, %v1319
  %v1336 = vpack.c.bf16 %v1320, %v1320
  %v1337 = vpack.c.bf16 %v1321, %v1321
  %v1338 = vpack.c.bf16 %v1322, %v1322
  %v1339 = vpack.c.bf16 %v1323, %v1323
  %v1340 = vpack.c.bf16 %v1324, %v1324
  %v1341 = vpack.c.bf16 %v1325, %v1325
  %v1342 = vpack.c.bf16 %v1326, %v1326
  %v1343 = vpack.c.bf16 %v1327, %v1327
  %v1344 = vpack.c.bf16 %v1328, %v1328
  %v1345 = vpack.c.bf16 %v1329, %v1329
  %v1346 = vpack.c.bf16 %v1330, %v1330
  %1347 = vst [vmem:[%s9] sm:$0xf] %v1331
  %1348 = vst [vmem:[%s9 + $0x4] sm:$0xf] %v1332
  %1349 = vst [vmem:[%s9 + $0x8] sm:$0xf] %v1333
  %1350 = vst [vmem:[%s9 + $0xc] sm:$0xf] %v1334
  %1351 = vst [vmem:[%s9 + $0x10] sm:$0xf] %v1335
  %1352 = vst [vmem:[%s9 + $0x14] sm:$0xf] %v1336
  %1353 = vst [vmem:[%s9 + $0x18] sm:$0xf] %v1337
  %1354 = vst [vmem:[%s9 + $0x1c] sm:$0xf] %v1338
  %1355 = vst [vmem:[%s9 + $0x20] sm:$0xf] %v1339
  %1356 = vst [vmem:[%s9 + $0x24] sm:$0xf] %v1340
  %1357 = vst [vmem:[%s9 + $0x28] sm:$0xf] %v1341
  %1358 = vst [vmem:[%s9 + $0x2c] sm:$0xf] %v1342
  %1359 = vst [vmem:[%s9 + $0x30] sm:$0xf] %v1343
  %1360 = vst [vmem:[%s9 + $0x34] sm:$0xf] %v1344
  %1361 = vst [vmem:[%s9 + $0x38] sm:$0xf] %v1345
  %1362 = vst [vmem:[%s9 + $0x3c] sm:$0xf] %v1346
  // Predicated region
  $region34: #{causal_gin_forward.8} parent=0 // pred_check
    _
  $region35: #{causal_gin_forward.8} parent=0 // pred_check_branch
    %1364 = sbr.rel (0) target = $region37
  $region36: #{causal_gin_forward.8} parent=0 // pred_region
    _
  $region37: #{causal_gin_forward.8} parent=0 // pred_fallthru
    _
  // Predicated region
  $region38: #{causal_gin_forward.8} parent=0 // pred_check
    _
  $region39: #{causal_gin_forward.8} parent=0 // pred_check_branch
    %1366 = sbr.rel (0) target = $region41
  $region40: #{causal_gin_forward.8} parent=0 // pred_region
    _
  $region41: #{causal_gin_forward.8} parent=0 // pred_fallthru
    _
  // Predicated region
  $region42: #{causal_gin_forward.8} parent=0 // pred_check
    _
  $region43: #{causal_gin_forward.8} parent=0 // pred_check_branch
    %1368 = sbr.rel (0) target = $region45
  $region44: #{causal_gin_forward.8} parent=0 // pred_region
    _
  $region45: #{causal_gin_forward.8} parent=0 // pred_fallthru
    _
  // Predicated region
  $region46: #{causal_gin_forward.8} parent=0 // pred_check
    _
  $region47: #{causal_gin_forward.8} parent=0 // pred_check_branch
    %1370 = sbr.rel (0) target = $region49
  $region48: #{causal_gin_forward.8} parent=0 // pred_region
    _
  $region49: #{causal_gin_forward.8} parent=0 // pred_fallthru
    _
  // Predicated region
  $region50: #{causal_gin_forward.8} parent=0 // pred_check
    _
  $region51: #{causal_gin_forward.8} parent=0 // pred_check_branch
    %1372 = sbr.rel (0) target = $region53
  $region52: #{causal_gin_forward.8} parent=0 // pred_region
    _
  $region53: #{causal_gin_forward.8} parent=0 // pred_fallthru
    _
  // Predicated region
  $region54: #{causal_gin_forward.8} parent=0 // pred_check
    _
  $region55: #{causal_gin_forward.8} parent=0 // pred_check_branch
    %1374 = sbr.rel (0) target = $region57
  $region56: #{causal_gin_forward.8} parent=0 // pred_region
    _
  $region57: #{causal_gin_forward.8} parent=0 // pred_fallthru
    _

// kernel: causal_gin_forward.7
$region0: #{causal_gin_forward.7}
  #allocation0 [shape = 'u32[]', space=smem, size = 0x4, offset = 0x4, fixed_abs, tag = 'smem constant byte address 0x4 - core index']
  #allocation1 [shape = 'u32[72,128]{1,0:T(1,128)}', space=vmem, size = 0x9000, scoped, tag = 'internal scratch']
  %s0 = inlined_call_operand.vmem [shape: bf16[128,128], index: 0, kind: input, shape index: {}]
  %s1 = inlined_call_operand.vmem [shape: bf16[128,128], index: 1, kind: input, shape index: {}]
  %s2 = inlined_call_operand.vmem [shape: f32[128,1], index: 2, kind: input, shape index: {}]
  %s3 = inlined_call_operand.vmem [shape: bf16[2,128,128], index: 3, kind: input, shape index: {}]
  %s4 = inlined_call_operand.vmem [shape: f32[2,1,128], index: 4, kind: input, shape index: {}]
  %s5 = inlined_call_operand.vmem [shape: f32[2,1,128], index: 5, kind: input, shape index: {}]
  %s6 = inlined_call_operand.vmem [shape: bf16[2,128,128], index: 6, kind: input, shape index: {}]
  %s7 = inlined_call_operand.vmem [shape: f32[2,1,128], index: 7, kind: input, shape index: {}]
  %s8 = inlined_call_operand.vmem [shape: bf16[128,128], index: 8, kind: output, shape index: {}]
  %s9 = sld [smem:[#allocation0]]
  $region73: #{causal_gin_forward.7} parent=0
    _
  %s11 = ssub.s32 1, %s9
  %s12 = scalar_select 0, %s11, %s9
  loop: start=0, step=1, limit=4
  $region2: #{causal_gin_forward.7} parent=0 // loop_pre_header
    _
  $region3: #{causal_gin_forward.7} parent=0 // loop_header
    %s14 = sphi 0, %s18
    %p15 = scmp.ge.s32.totalorder %s14, 4
    %s22 = sphi 0, %s22
    %s24 = sphi 0, %s22
    %s25 = sphi 0, %s24
    %s39 = sphi 0, %s25
    %s43 = sphi 0, %s43
    %s45 = sphi 0, %s43
    %s46 = sphi 0, %s45
    %s60 = sphi 0, %s46
    %s64 = sphi 0, %s64
    %s66 = sphi 0, %s64
    %s67 = sphi 0, %s66
    %s81 = sphi 0, %s67
    %s87 = sphi 0, %s89
    %s90 = sphi 0, %s87
    %s91 = sphi 0, %s90
    %s107 = sphi 0, %s91
    %s113 = sphi 0, %s115
    %s116 = sphi 0, %s113
    %s117 = sphi 0, %s116
    %s133 = sphi 0, %s117
    %s139 = sphi 0, %s141
    %s142 = sphi 0, %s139
    %s143 = sphi 0, %s142
    %s159 = sphi 0, %s143
    %s165 = sphi 0, %s167
    %s168 = sphi 0, %s165
    %s169 = sphi 0, %s168
    %s185 = sphi 0, %s169
    %s191 = sphi 0, %s193
    %s194 = sphi 0, %s191
    %s195 = sphi 0, %s194
    %s211 = sphi 0, %s195
    %s215 = sphi 0, %s215
    %s217 = sphi 0, %s215
    %s218 = sphi 0, %s217
    %s232 = sphi 0, %s218
  $region4: #{causal_gin_forward.7} parent=0 // loop_header_branch
    %17 = sbr.rel (%p15) target = $region8
  $region5: #{causal_gin_forward.7} parent=0 // loop_body
    %s19 = ssub.s32 %s14, 1
    %s20 = ssub.s32 %s14, 2
    %s21 = sadd.s32 %s14, 1
    %s23 = sadd.s32 %s22, 1
    %p26 = scmp.eq.s32.totalorder %s14, 1
    %p27 = scmp.ne.s32.totalorder %s22, %s24
    %p28 = scmp.eq.s32.totalorder %s14, 0
    %p29 = por %p27, %p28
    %p30 = scmp.ne.s32.totalorder %s22, %s24
    %p31 = scmp.eq.s32.totalorder %s19, 1
    %p32 = por %p30, %p31
    %p33 = scmp.ne.s32.totalorder %s24, %s25
    %p34 = scmp.eq.s32.totalorder %s19, 0
    %p35 = por %p33, %p34
    %p36 = scmp.ne.s32.totalorder %s24, %s25
    %p37 = scmp.eq.s32.totalorder %s20, 1
    %p38 = por %p36, %p37
    %p40 = scmp.ne.s32.totalorder %s25, %s39
    %p41 = scmp.eq.s32.totalorder %s20, 0
    %p42 = por %p40, %p41
    %s44 = sadd.s32 %s43, 1
    %p47 = scmp.eq.s32.totalorder %s14, 1
    %p48 = scmp.ne.s32.totalorder %s43, %s45
    %p49 = scmp.eq.s32.totalorder %s14, 0
    %p50 = por %p48, %p49
    %p51 = scmp.ne.s32.totalorder %s43, %s45
    %p52 = scmp.eq.s32.totalorder %s19, 1
    %p53 = por %p51, %p52
    %p54 = scmp.ne.s32.totalorder %s45, %s46
    %p55 = scmp.eq.s32.totalorder %s19, 0
    %p56 = por %p54, %p55
    %p57 = scmp.ne.s32.totalorder %s45, %s46
    %p58 = scmp.eq.s32.totalorder %s20, 1
    %p59 = por %p57, %p58
    %p61 = scmp.ne.s32.totalorder %s46, %s60
    %p62 = scmp.eq.s32.totalorder %s20, 0
    %p63 = por %p61, %p62
    %s65 = sadd.s32 %s64, 1
    %p68 = scmp.eq.s32.totalorder %s14, 1
    %p69 = scmp.ne.s32.totalorder %s64, %s66
    %p70 = scmp.eq.s32.totalorder %s14, 0
    %p71 = por %p69, %p70
    %p72 = scmp.ne.s32.totalorder %s64, %s66
    %p73 = scmp.eq.s32.totalorder %s19, 1
    %p74 = por %p72, %p73
    %p75 = scmp.ne.s32.totalorder %s66, %s67
    %p76 = scmp.eq.s32.totalorder %s19, 0
    %p77 = por %p75, %p76
    %p78 = scmp.ne.s32.totalorder %s66, %s67
    %p79 = scmp.eq.s32.totalorder %s20, 1
    %p80 = por %p78, %p79
    %p82 = scmp.ne.s32.totalorder %s67, %s81
    %p83 = scmp.eq.s32.totalorder %s20, 0
    %p84 = por %p82, %p83
    %s85 = ssub.s32 %s14, %s21
    %p86 = scmp.eq.s32.totalorder %s85, 0
    %s88 = sadd.s32 %s87, 1
    %s89 = scalar_select %p86, %s87, %s88
    %p92 = pneg %p86
    %p93 = scmp.eq.s32.totalorder %s14, 1
    %p94 = por %p92, %p93
    %p95 = scmp.ne.s32.totalorder %s87, %s90
    %p96 = scmp.eq.s32.totalorder %s14, 0
    %p97 = por %p95, %p96
    %p98 = scmp.ne.s32.totalorder %s87, %s90
    %p99 = scmp.eq.s32.totalorder %s19, 1
    %p100 = por %p98, %p99
    %p101 = scmp.ne.s32.totalorder %s90, %s91
    %p102 = scmp.eq.s32.totalorder %s19, 0
    %p103 = por %p101, %p102
    %p104 = scmp.ne.s32.totalorder %s90, %s91
    %p105 = scmp.eq.s32.totalorder %s20, 1
    %p106 = por %p104, %p105
    %p108 = scmp.ne.s32.totalorder %s91, %s107
    %p109 = scmp.eq.s32.totalorder %s20, 0
    %p110 = por %p108, %p109
    %s111 = ssub.s32 %s14, %s21
    %p112 = scmp.eq.s32.totalorder %s111, 0
    %s114 = sadd.s32 %s113, 1
    %s115 = scalar_select %p112, %s113, %s114
    %p118 = pneg %p112
    %p119 = scmp.eq.s32.totalorder %s14, 1
    %p120 = por %p118, %p119
    %p121 = scmp.ne.s32.totalorder %s113, %s116
    %p122 = scmp.eq.s32.totalorder %s14, 0
    %p123 = por %p121, %p122
    %p124 = scmp.ne.s32.totalorder %s113, %s116
    %p125 = scmp.eq.s32.totalorder %s19, 1
    %p126 = por %p124, %p125
    %p127 = scmp.ne.s32.totalorder %s116, %s117
    %p128 = scmp.eq.s32.totalorder %s19, 0
    %p129 = por %p127, %p128
    %p130 = scmp.ne.s32.totalorder %s116, %s117
    %p131 = scmp.eq.s32.totalorder %s20, 1
    %p132 = por %p130, %p131
    %p134 = scmp.ne.s32.totalorder %s117, %s133
    %p135 = scmp.eq.s32.totalorder %s20, 0
    %p136 = por %p134, %p135
    %s137 = ssub.s32 %s14, %s21
    %p138 = scmp.eq.s32.totalorder %s137, 0
    %s140 = sadd.s32 %s139, 1
    %s141 = scalar_select %p138, %s139, %s140
    %p144 = pneg %p138
    %p145 = scmp.eq.s32.totalorder %s14, 1
    %p146 = por %p144, %p145
    %p147 = scmp.ne.s32.totalorder %s139, %s142
    %p148 = scmp.eq.s32.totalorder %s14, 0
    %p149 = por %p147, %p148
    %p150 = scmp.ne.s32.totalorder %s139, %s142
    %p151 = scmp.eq.s32.totalorder %s19, 1
    %p152 = por %p150, %p151
    %p153 = scmp.ne.s32.totalorder %s142, %s143
    %p154 = scmp.eq.s32.totalorder %s19, 0
    %p155 = por %p153, %p154
    %p156 = scmp.ne.s32.totalorder %s142, %s143
    %p157 = scmp.eq.s32.totalorder %s20, 1
    %p158 = por %p156, %p157
    %p160 = scmp.ne.s32.totalorder %s143, %s159
    %p161 = scmp.eq.s32.totalorder %s20, 0
    %p162 = por %p160, %p161
    %s163 = ssub.s32 %s14, %s21
    %p164 = scmp.eq.s32.totalorder %s163, 0
    %s166 = sadd.s32 %s165, 1
    %s167 = scalar_select %p164, %s165, %s166
    %p170 = pneg %p164
    %p171 = scmp.eq.s32.totalorder %s14, 1
    %p172 = por %p170, %p171
    %p173 = scmp.ne.s32.totalorder %s165, %s168
    %p174 = scmp.eq.s32.totalorder %s14, 0
    %p175 = por %p173, %p174
    %p176 = scmp.ne.s32.totalorder %s165, %s168
    %p177 = scmp.eq.s32.totalorder %s19, 1
    %p178 = por %p176, %p177
    %p179 = scmp.ne.s32.totalorder %s168, %s169
    %p180 = scmp.eq.s32.totalorder %s19, 0
    %p181 = por %p179, %p180
    %p182 = scmp.ne.s32.totalorder %s168, %s169
    %p183 = scmp.eq.s32.totalorder %s20, 1
    %p184 = por %p182, %p183
    %p186 = scmp.ne.s32.totalorder %s169, %s185
    %p187 = scmp.eq.s32.totalorder %s20, 0
    %p188 = por %p186, %p187
    %s189 = ssub.s32 %s14, %s21
    %p190 = scmp.eq.s32.totalorder %s189, 0
    %s192 = sadd.s32 %s191, 1
    %s193 = scalar_select %p190, %s191, %s192
    %p196 = pneg %p190
    %p197 = scmp.eq.s32.totalorder %s14, 1
    %p198 = por %p196, %p197
    %p199 = scmp.ne.s32.totalorder %s191, %s194
    %p200 = scmp.eq.s32.totalorder %s14, 0
    %p201 = por %p199, %p200
    %p202 = scmp.ne.s32.totalorder %s191, %s194
    %p203 = scmp.eq.s32.totalorder %s19, 1
    %p204 = por %p202, %p203
    %p205 = scmp.ne.s32.totalorder %s194, %s195
    %p206 = scmp.eq.s32.totalorder %s19, 0
    %p207 = por %p205, %p206
    %p208 = scmp.ne.s32.totalorder %s194, %s195
    %p209 = scmp.eq.s32.totalorder %s20, 1
    %p210 = por %p208, %p209
    %p212 = scmp.ne.s32.totalorder %s195, %s211
    %p213 = scmp.eq.s32.totalorder %s20, 0
    %p214 = por %p212, %p213
    %s216 = sadd.s32 %s215, 1
    %p219 = scmp.eq.s32.totalorder %s14, 1
    %p220 = scmp.ne.s32.totalorder %s215, %s217
    %p221 = scmp.eq.s32.totalorder %s14, 0
    %p222 = por %p220, %p221
    %p223 = scmp.ne.s32.totalorder %s215, %s217
    %p224 = scmp.eq.s32.totalorder %s19, 1
    %p225 = por %p223, %p224
    %p226 = scmp.ne.s32.totalorder %s217, %s218
    %p227 = scmp.eq.s32.totalorder %s19, 0
    %p228 = por %p226, %p227
    %p229 = scmp.ne.s32.totalorder %s217, %s218
    %p230 = scmp.eq.s32.totalorder %s20, 1
    %p231 = por %p229, %p230
    %p233 = scmp.ne.s32.totalorder %s218, %s232
    %p234 = scmp.eq.s32.totalorder %s20, 0
    %p235 = por %p233, %p234
    %p236 = scmp.le.s32.totalorder 1, %s14
    %p237 = scmp.lt.s32.totalorder %s14, 3
    %p238 = pnand %p236, %p237
    %p239 = pneg %p238
    // Predicated region
    $region9: #{causal_gin_forward.7} parent=5 // pred_check
      _
    $region10: #{causal_gin_forward.7} parent=5 // pred_check_branch
      %241 = sbr.rel (%p238) target = $region12
    $region11: #{causal_gin_forward.7} parent=5 // pred_region
      %s242 = ssub.s32 %s14, 1
      // Predicated region
      $region13: #{causal_gin_forward.7} parent=11 // pred_check
        %p243 = pneg %p35
      $region14: #{causal_gin_forward.7} parent=11 // pred_check_branch
        %245 = sbr.rel (%p243) target = $region16
      $region15: #{causal_gin_forward.7} parent=11 // pred_region
        _
      $region16: #{causal_gin_forward.7} parent=11 // pred_fallthru
        _
      // Predicated region
      $region17: #{causal_gin_forward.7} parent=11 // pred_check
        %p246 = pneg %p56
      $region18: #{causal_gin_forward.7} parent=11 // pred_check_branch
        %248 = sbr.rel (%p246) target = $region20
      $region19: #{causal_gin_forward.7} parent=11 // pred_region
        _
      $region20: #{causal_gin_forward.7} parent=11 // pred_fallthru
        _
      // Predicated region
      $region21: #{causal_gin_forward.7} parent=11 // pred_check
        %p249 = pneg %p77
      $region22: #{causal_gin_forward.7} parent=11 // pred_check_branch
        %251 = sbr.rel (%p249) target = $region24
      $region23: #{causal_gin_forward.7} parent=11 // pred_region
        _
      $region24: #{causal_gin_forward.7} parent=11 // pred_fallthru
        _
    $region12: #{causal_gin_forward.7} parent=5 // pred_fallthru
      _
    %p252 = scmp.lt.s32.totalorder %s14, 2
    // Predicated region
    $region25: #{causal_gin_forward.7} parent=5 // pred_check
      %p253 = pneg %p252
    $region26: #{causal_gin_forward.7} parent=5 // pred_check_branch
      %255 = sbr.rel (%p253) target = $region28
    $region27: #{causal_gin_forward.7} parent=5 // pred_region
      // Predicated region
      $region29: #{causal_gin_forward.7} parent=27 // pred_check
        %p256 = pneg %p97
      $region30: #{causal_gin_forward.7} parent=27 // pred_check_branch
        %258 = sbr.rel (%p256) target = $region32
      $region31: #{causal_gin_forward.7} parent=27 // pred_region
        %p259 = scmp.lt.s32.totalorder %s14, 1
        %s260 = scalar_select %p259, %s14, 1
        %s261 = smul.addr %s260, 16
        %s262 = smul.addr %s261, 4
        %s263 = scalar_lea.vmem %s3, %s262
      $region32: #{causal_gin_forward.7} parent=27 // pred_fallthru
        _
      // Predicated region
      $region33: #{causal_gin_forward.7} parent=27 // pred_check
        %p264 = pneg %p123
      $region34: #{causal_gin_forward.7} parent=27 // pred_check_branch
        %266 = sbr.rel (%p264) target = $region36
      $region35: #{causal_gin_forward.7} parent=27 // pred_region
        %p267 = scmp.lt.s32.totalorder %s14, 1
        %s268 = scalar_select %p267, %s14, 1
        %s269 = scalar_lea.vmem %s4, %s268
      $region36: #{causal_gin_forward.7} parent=27 // pred_fallthru
        _
      // Predicated region
      $region37: #{causal_gin_forward.7} parent=27 // pred_check
        %p270 = pneg %p149
      $region38: #{causal_gin_forward.7} parent=27 // pred_check_branch
        %272 = sbr.rel (%p270) target = $region40
      $region39: #{causal_gin_forward.7} parent=27 // pred_region
        %p273 = scmp.lt.s32.totalorder %s14, 1
        %s274 = scalar_select %p273, %s14, 1
        %s275 = scalar_lea.vmem %s5, %s274
      $region40: #{causal_gin_forward.7} parent=27 // pred_fallthru
        _
      // Predicated region
      $region41: #{causal_gin_forward.7} parent=27 // pred_check
        %p276 = pneg %p175
      $region42: #{causal_gin_forward.7} parent=27 // pred_check_branch
        %278 = sbr.rel (%p276) target = $region44
      $region43: #{causal_gin_forward.7} parent=27 // pred_region
        %p279 = scmp.lt.s32.totalorder %s14, 1
        %s280 = scalar_select %p279, %s14, 1
        %s281 = smul.addr %s280, 16
        %s282 = smul.addr %s281, 4
        %s283 = scalar_lea.vmem %s6, %s282
      $region44: #{causal_gin_forward.7} parent=27 // pred_fallthru
        _
      // Predicated region
      $region45: #{causal_gin_forward.7} parent=27 // pred_check
        %p284 = pneg %p201
      $region46: #{causal_gin_forward.7} parent=27 // pred_check_branch
        %286 = sbr.rel (%p284) target = $region48
      $region47: #{causal_gin_forward.7} parent=27 // pred_region
        %p287 = scmp.lt.s32.totalorder %s14, 1
        %s288 = scalar_select %p287, %s14, 1
        %s289 = scalar_lea.vmem %s7, %s288
      $region48: #{causal_gin_forward.7} parent=27 // pred_fallthru
        _
    $region28: #{causal_gin_forward.7} parent=5 // pred_fallthru
      _
    %p290 = scmp.le.s32.totalorder 1, %s14
    %p291 = scmp.lt.s32.totalorder %s14, 3
    %p292 = pnand %p290, %p291
    %p293 = pneg %p292
    // Predicated region
    $region49: #{causal_gin_forward.7} parent=5 // pred_check
      _
    $region50: #{causal_gin_forward.7} parent=5 // pred_check_branch
      %295 = sbr.rel (%p292) target = $region52
    $region51: #{causal_gin_forward.7} parent=5 // pred_region
      %s296 = ssub.s32 %s14, 1
      %p297 = pneg %p35
      %p298 = pneg %p32
      %p299 = pneg %p56
      %p300 = pneg %p53
      %p301 = pneg %p77
      %p302 = pneg %p74
      %p303 = scmp.lt.s32.totalorder %s19, 1
      %s304 = scalar_select %p303, %s19, 1
      %s305 = smul.addr %s304, 16
      %s306 = smul.addr %s305, 4
      %s307 = scalar_lea.vmem %s3, %s306
      %p308 = pneg %p103
      %p309 = pneg %p100
      %p310 = scmp.lt.s32.totalorder %s19, 1
      %s311 = scalar_select %p310, %s19, 1
      %s312 = scalar_lea.vmem %s4, %s311
      %p313 = pneg %p129
      %p314 = pneg %p126
      %p315 = scmp.lt.s32.totalorder %s19, 1
      %s316 = scalar_select %p315, %s19, 1
      %s317 = scalar_lea.vmem %s5, %s316
      %p318 = pneg %p155
      %p319 = pneg %p152
      %p320 = scmp.lt.s32.totalorder %s19, 1
      %s321 = scalar_select %p320, %s19, 1
      %s322 = smul.addr %s321, 16
      %s323 = smul.addr %s322, 4
      %s324 = scalar_lea.vmem %s6, %s323
      %p325 = pneg %p181
      %p326 = pneg %p178
      %p327 = scmp.lt.s32.totalorder %s19, 1
      %s328 = scalar_select %p327, %s19, 1
      %s329 = scalar_lea.vmem %s7, %s328
      %p330 = pneg %p207
      %p331 = pneg %p204
      %p332 = pneg %p228
      %p333 = pneg %p225
      %p334 = scmp.lt.s32.totalorder %s19, 1
      %s335 = scalar_select %p334, %s19, 1
      %s336 = smul.addr %s335, 16
      %s337 = smul.addr %s336, 4
      %s338 = scalar_lea.vmem %s3, %s337
      %p339 = scmp.lt.s32.totalorder %s19, 1
      %s340 = scalar_select %p339, %s19, 1
      %s341 = scalar_lea.vmem %s4, %s340
      %p342 = scmp.lt.s32.totalorder %s19, 1
      %s343 = scalar_select %p342, %s19, 1
      %s344 = scalar_lea.vmem %s5, %s343
      %p345 = scmp.lt.s32.totalorder %s19, 1
      %s346 = scalar_select %p345, %s19, 1
      %s347 = smul.addr %s346, 16
      %s348 = smul.addr %s347, 4
      %s349 = scalar_lea.vmem %s6, %s348
      %p350 = scmp.lt.s32.totalorder %s19, 1
      %s351 = scalar_select %p350, %s19, 1
      %s352 = scalar_lea.vmem %s7, %s351
      %v353 = vld [vmem:[%s2] sm:$0xff]
      %v354 = vld [vmem:[%s2 + $0x8] sm:$0xff]
      %v355 = vld [vmem:[%s2 + $0x10] sm:$0xff]
      %v356 = vld [vmem:[%s2 + $0x18] sm:$0xff]
      %v357 = vld [vmem:[%s2 + $0x20] sm:$0xff]
      %v358 = vld [vmem:[%s2 + $0x28] sm:$0xff]
      %v359 = vld [vmem:[%s2 + $0x30] sm:$0xff]
      %v360 = vld [vmem:[%s2 + $0x38] sm:$0xff]
      %v361 = vld [vmem:[%s2 + $0x40] sm:$0xff]
      %v362 = vld [vmem:[%s2 + $0x48] sm:$0xff]
      %v363 = vld [vmem:[%s2 + $0x50] sm:$0xff]
      %v364 = vld [vmem:[%s2 + $0x58] sm:$0xff]
      %v365 = vld [vmem:[%s2 + $0x60] sm:$0xff]
      %v366 = vld [vmem:[%s2 + $0x68] sm:$0xff]
      %v367 = vld [vmem:[%s2 + $0x70] sm:$0xff]
      %v368 = vld [vmem:[%s2 + $0x78] sm:$0xff]
      %p369 = scmp.eq.s32.totalorder %s19, 0
      // Predicated region
      $region53: #{causal_gin_forward.7} parent=51 // pred_check
        %p370 = pneg %p369
      $region54: #{causal_gin_forward.7} parent=51 // pred_check_branch
        %372 = sbr.rel (%p370) target = $region56
      $region55: #{causal_gin_forward.7} parent=51 // pred_region
        %v373 = vld [vmem:[%s1] sm:$0xf]
        %v374 = vld [vmem:[%s1 + $0x4] sm:$0xf]
        %v375 = vld [vmem:[%s1 + $0x8] sm:$0xf]
        %v376 = vld [vmem:[%s1 + $0xc] sm:$0xf]
        %v377 = vld [vmem:[%s1 + $0x10] sm:$0xf]
        %v378 = vld [vmem:[%s1 + $0x14] sm:$0xf]
        %v379 = vld [vmem:[%s1 + $0x18] sm:$0xf]
        %v380 = vld [vmem:[%s1 + $0x1c] sm:$0xf]
        %v381 = vld [vmem:[%s1 + $0x20] sm:$0xf]
        %v382 = vld [vmem:[%s1 + $0x24] sm:$0xf]
        %v383 = vld [vmem:[%s1 + $0x28] sm:$0xf]
        %v384 = vld [vmem:[%s1 + $0x2c] sm:$0xf]
        %v385 = vld [vmem:[%s1 + $0x30] sm:$0xf]
        %v386 = vld [vmem:[%s1 + $0x34] sm:$0xf]
        %v387 = vld [vmem:[%s1 + $0x38] sm:$0xf]
        %v388 = vld [vmem:[%s1 + $0x3c] sm:$0xf]
        %v389 = vld [vmem:[%s338] sm:$0xf]
        %v390 = vld [vmem:[%s338 + $0x4] sm:$0xf]
        %v391 = vld [vmem:[%s338 + $0x8] sm:$0xf]
        %v392 = vld [vmem:[%s338 + $0xc] sm:$0xf]
        %v393 = vld [vmem:[%s338 + $0x10] sm:$0xf]
        %v394 = vld [vmem:[%s338 + $0x14] sm:$0xf]
        %v395 = vld [vmem:[%s338 + $0x18] sm:$0xf]
        %v396 = vld [vmem:[%s338 + $0x1c] sm:$0xf]
        %v397 = vld [vmem:[%s338 + $0x20] sm:$0xf]
        %v398 = vld [vmem:[%s338 + $0x24] sm:$0xf]
        %v399 = vld [vmem:[%s338 + $0x28] sm:$0xf]
        %v400 = vld [vmem:[%s338 + $0x2c] sm:$0xf]
        %v401 = vld [vmem:[%s338 + $0x30] sm:$0xf]
        %v402 = vld [vmem:[%s338 + $0x34] sm:$0xf]
        %v403 = vld [vmem:[%s338 + $0x38] sm:$0xf]
        %v404 = vld [vmem:[%s338 + $0x3c] sm:$0xf]
        %v421 = vunpack.c.l.b16 %v373
        %v422 = vunpack.c.l.b16 %v374
        %v423 = vunpack.c.l.b16 %v375
        %v424 = vunpack.c.l.b16 %v376
        %v425 = vunpack.c.l.b16 %v377
        %v426 = vunpack.c.l.b16 %v378
        %v427 = vunpack.c.l.b16 %v379
        %v428 = vunpack.c.l.b16 %v380
        %v429 = vunpack.c.l.b16 %v381
        %v430 = vunpack.c.l.b16 %v382
        %v431 = vunpack.c.l.b16 %v383
        %v432 = vunpack.c.l.b16 %v384
        %v433 = vunpack.c.l.b16 %v385
        %v434 = vunpack.c.l.b16 %v386
        %v435 = vunpack.c.l.b16 %v387
        %v436 = vunpack.c.l.b16 %v388
        %v437 = vpack.c.b16 %v422, %v421
        %v438 = vpack.c.b16 %v424, %v423
        %v439 = vpack.c.b16 %v426, %v425
        %v440 = vpack.c.b16 %v428, %v427
        %v441 = vpack.c.b16 %v430, %v429
        %v442 = vpack.c.b16 %v432, %v431
        %v443 = vpack.c.b16 %v434, %v433
        %v444 = vpack.c.b16 %v436, %v435
        %v469 = vunpack.c.l.b16 %v389
        %v470 = vunpack.c.l.b16 %v390
        %v471 = vunpack.c.l.b16 %v391
        %v472 = vunpack.c.l.b16 %v392
        %v473 = vunpack.c.l.b16 %v393
        %v474 = vunpack.c.l.b16 %v394
        %v475 = vunpack.c.l.b16 %v395
        %v476 = vunpack.c.l.b16 %v396
        %v477 = vunpack.c.l.b16 %v397
        %v478 = vunpack.c.l.b16 %v398
        %v479 = vunpack.c.l.b16 %v399
        %v480 = vunpack.c.l.b16 %v400
        %v481 = vunpack.c.l.b16 %v401
        %v482 = vunpack.c.l.b16 %v402
        %v483 = vunpack.c.l.b16 %v403
        %v484 = vunpack.c.l.b16 %v404
        %v485 = vpack.c.b16 %v470, %v469
        %v486 = vpack.c.b16 %v472, %v471
        %v487 = vpack.c.b16 %v474, %v473
        %v488 = vpack.c.b16 %v476, %v475
        %v489 = vpack.c.b16 %v478, %v477
        %v490 = vpack.c.b16 %v480, %v479
        %v491 = vpack.c.b16 %v482, %v481
        %v492 = vpack.c.b16 %v484, %v483
        %501 = vmatpush.bf16.msra.mxu0 %v492
        %502 = vmatpush.bf16.msra.mxu0 %v491
        %503 = vmatpush.bf16.msra.mxu0 %v490
        %504 = vmatpush.bf16.msra.mxu0 %v489
        %505 = vmatpush.bf16.msra.mxu0 %v488
        %506 = vmatpush.bf16.msra.mxu0 %v487
        %507 = vmatpush.bf16.msra.mxu0 %v486
        %508 = vmatpush.bf16.msra.mxu0 %v485
        %509 = vmatmul.bf16.gmra.mxu0 %v437
        %v510 = vpop.f32.mrf.mxu0
        %v511 = vadd.f32 0.0, %v510
        %v512 = vpop.f32.mrf.mxu0
        %v513 = vadd.f32 0.0, %v512
        %514 = vmatmul.bf16.gmra.mxu0 %v438
        %v515 = vpop.f32.mrf.mxu0
        %v516 = vadd.f32 0.0, %v515
        %v517 = vpop.f32.mrf.mxu0
        %v518 = vadd.f32 0.0, %v517
        %519 = vmatmul.bf16.gmra.mxu0 %v439
        %v520 = vpop.f32.mrf.mxu0
        %v521 = vadd.f32 0.0, %v520
        %v522 = vpop.f32.mrf.mxu0
        %v523 = vadd.f32 0.0, %v522
        %524 = vmatmul.bf16.gmra.mxu0 %v440
        %v525 = vpop.f32.mrf.mxu0
        %v526 = vadd.f32 0.0, %v525
        %v527 = vpop.f32.mrf.mxu0
        %v528 = vadd.f32 0.0, %v527
        %529 = vmatmul.bf16.gmra.mxu0 %v441
        %v530 = vpop.f32.mrf.mxu0
        %v531 = vadd.f32 0.0, %v530
        %v532 = vpop.f32.mrf.mxu0
        %v533 = vadd.f32 0.0, %v532
        %534 = vmatmul.bf16.gmra.mxu0 %v442
        %v535 = vpop.f32.mrf.mxu0
        %v536 = vadd.f32 0.0, %v535
        %v537 = vpop.f32.mrf.mxu0
        %v538 = vadd.f32 0.0, %v537
        %539 = vmatmul.bf16.gmra.mxu0 %v443
        %v540 = vpop.f32.mrf.mxu0
        %v541 = vadd.f32 0.0, %v540
        %v542 = vpop.f32.mrf.mxu0
        %v543 = vadd.f32 0.0, %v542
        %544 = vmatmul.bf16.gmra.mxu0 %v444
        %v545 = vpop.f32.mrf.mxu0
        %v546 = vadd.f32 0.0, %v545
        %v547 = vpop.f32.mrf.mxu0
        %v548 = vadd.f32 0.0, %v547
        %549 = vdwg.mxu0
        %v550 = vld [vmem:[%s0] sm:$0xf]
        %v551 = vld [vmem:[%s0 + $0x4] sm:$0xf]
        %v552 = vld [vmem:[%s0 + $0x8] sm:$0xf]
        %v553 = vld [vmem:[%s0 + $0xc] sm:$0xf]
        %v554 = vld [vmem:[%s0 + $0x10] sm:$0xf]
        %v555 = vld [vmem:[%s0 + $0x14] sm:$0xf]
        %v556 = vld [vmem:[%s0 + $0x18] sm:$0xf]
        %v557 = vld [vmem:[%s0 + $0x1c] sm:$0xf]
        %v558 = vld [vmem:[%s0 + $0x20] sm:$0xf]
        %v559 = vld [vmem:[%s0 + $0x24] sm:$0xf]
        %v560 = vld [vmem:[%s0 + $0x28] sm:$0xf]
        %v561 = vld [vmem:[%s0 + $0x2c] sm:$0xf]
        %v562 = vld [vmem:[%s0 + $0x30] sm:$0xf]
        %v563 = vld [vmem:[%s0 + $0x34] sm:$0xf]
        %v564 = vld [vmem:[%s0 + $0x38] sm:$0xf]
        %v565 = vld [vmem:[%s0 + $0x3c] sm:$0xf]
        %v566 = vpack.c.bf16 %v513, %v511
        %v567 = vpack.c.bf16 %v518, %v516
        %v568 = vpack.c.bf16 %v523, %v521
        %v569 = vpack.c.bf16 %v528, %v526
        %v570 = vpack.c.bf16 %v533, %v531
        %v571 = vpack.c.bf16 %v538, %v536
        %v572 = vpack.c.bf16 %v543, %v541
        %v573 = vpack.c.bf16 %v548, %v546
        %v590 = vunpack.c.l.b16 %v550
        %v591 = vunpack.c.l.b16 %v551
        %v592 = vunpack.c.l.b16 %v552
        %v593 = vunpack.c.l.b16 %v553
        %v594 = vunpack.c.l.b16 %v554
        %v595 = vunpack.c.l.b16 %v555
        %v596 = vunpack.c.l.b16 %v556
        %v597 = vunpack.c.l.b16 %v557
        %v598 = vunpack.c.l.b16 %v558
        %v599 = vunpack.c.l.b16 %v559
        %v600 = vunpack.c.l.b16 %v560
        %v601 = vunpack.c.l.b16 %v561
        %v602 = vunpack.c.l.b16 %v562
        %v603 = vunpack.c.l.b16 %v563
        %v604 = vunpack.c.l.b16 %v564
        %v605 = vunpack.c.l.b16 %v565
        %v606 = vpack.c.b16 %v591, %v590
        %v607 = vpack.c.b16 %v593, %v592
        %v608 = vpack.c.b16 %v595, %v594
        %v609 = vpack.c.b16 %v597, %v596
        %v610 = vpack.c.b16 %v599, %v598
        %v611 = vpack.c.b16 %v601, %v600
        %v612 = vpack.c.b16 %v603, %v602
        %v613 = vpack.c.b16 %v605, %v604
        %622 = vmatpush.bf16.msra.mxu0 %v573
        %623 = vmatpush.bf16.msra.mxu0 %v572
        %624 = vmatpush.bf16.msra.mxu0 %v571
        %625 = vmatpush.bf16.msra.mxu0 %v570
        %626 = vmatpush.bf16.msra.mxu0 %v569
        %627 = vmatpush.bf16.msra.mxu0 %v568
        %628 = vmatpush.bf16.msra.mxu0 %v567
        %629 = vmatpush.bf16.msra.mxu0 %v566
        %630 = vmatmul.bf16.gmra.mxu0 %v606
        %v631 = vpop.f32.mrf.mxu0
        %v632 = vadd.f32 0.0, %v631
        %v633 = vpop.f32.mrf.mxu0
        %v634 = vadd.f32 0.0, %v633
        %635 = vmatmul.bf16.gmra.mxu0 %v607
        %v636 = vpop.f32.mrf.mxu0
        %v637 = vadd.f32 0.0, %v636
        %v638 = vpop.f32.mrf.mxu0
        %v639 = vadd.f32 0.0, %v638
        %640 = vmatmul.bf16.gmra.mxu0 %v608
        %v641 = vpop.f32.mrf.mxu0
        %v642 = vadd.f32 0.0, %v641
        %v643 = vpop.f32.mrf.mxu0
        %v644 = vadd.f32 0.0, %v643
        %645 = vmatmul.bf16.gmra.mxu0 %v609
        %v646 = vpop.f32.mrf.mxu0
        %v647 = vadd.f32 0.0, %v646
        %v648 = vpop.f32.mrf.mxu0
        %v649 = vadd.f32 0.0, %v648
        %650 = vmatmul.bf16.gmra.mxu0 %v610
        %v651 = vpop.f32.mrf.mxu0
        %v652 = vadd.f32 0.0, %v651
        %v653 = vpop.f32.mrf.mxu0
        %v654 = vadd.f32 0.0, %v653
        %655 = vmatmul.bf16.gmra.mxu0 %v611
        %v656 = vpop.f32.mrf.mxu0
        %v657 = vadd.f32 0.0, %v656
        %v658 = vpop.f32.mrf.mxu0
        %v659 = vadd.f32 0.0, %v658
        %660 = vmatmul.bf16.gmra.mxu0 %v612
        %v661 = vpop.f32.mrf.mxu0
        %v662 = vadd.f32 0.0, %v661
        %v663 = vpop.f32.mrf.mxu0
        %v664 = vadd.f32 0.0, %v663
        %665 = vmatmul.bf16.gmra.mxu0 %v613
        %v666 = vpop.f32.mrf.mxu0
        %v667 = vadd.f32 0.0, %v666
        %v668 = vpop.f32.mrf.mxu0
        %v669 = vadd.f32 0.0, %v668
        %670 = vdwg.mxu0
        %v671 = vld [vmem:[%s341] sm:$0x1]
        %v672 = vld [vmem:[%s344] sm:$0x1]
        %v673 = vadd.f32 %v632, %v634
        %v674 = vadd.f32 %v673, %v637
        %v675 = vadd.f32 %v674, %v639
        %v676 = vadd.f32 %v675, %v642
        %v677 = vadd.f32 %v676, %v644
        %v678 = vadd.f32 %v677, %v647
        %v679 = vadd.f32 %v678, %v649
        %v680 = vadd.f32 %v679, %v652
        %v681 = vadd.f32 %v680, %v654
        %v682 = vadd.f32 %v681, %v657
        %v683 = vadd.f32 %v682, %v659
        %v684 = vadd.f32 %v683, %v662
        %v685 = vadd.f32 %v684, %v664
        %v686 = vadd.f32 %v685, %v667
        %v687 = vadd.f32 %v686, %v669
        %v688 = vrot.slane %v687, 4
        %v689 = vadd.f32 %v687, %v688
        %v690 = vrot.slane %v689, 2
        %v691 = vadd.f32 %v689, %v690
        %v692 = vrot.slane %v691, 1
        %v693 = vadd.f32 %v691, %v692
        %v694 = vmul.f32 %v693, 0.0625
        %v695 = vsub.f32 %v632, %v694
        %v696 = vsub.f32 %v634, %v694
        %v697 = vsub.f32 %v637, %v694
        %v698 = vsub.f32 %v639, %v694
        %v699 = vsub.f32 %v642, %v694
        %v700 = vsub.f32 %v644, %v694
        %v701 = vsub.f32 %v647, %v694
        %v702 = vsub.f32 %v649, %v694
        %v703 = vsub.f32 %v652, %v694
        %v704 = vsub.f32 %v654, %v694
        %v705 = vsub.f32 %v657, %v694
        %v706 = vsub.f32 %v659, %v694
        %v707 = vsub.f32 %v662, %v694
        %v708 = vsub.f32 %v664, %v694
        %v709 = vsub.f32 %v667, %v694
        %v710 = vsub.f32 %v669, %v694
        %712 = vset.pattern.permute.xlu0 0
        %713 = vperm.xlu0 %712, %v353
        %v714 = vpop.permute.xlu0 %713
        %717 = vset.pattern.permute.xlu0 0
        %718 = vperm.xlu0 %717, %v354
        %v719 = vpop.permute.xlu0 %718
        %722 = vset.pattern.permute.xlu0 0
        %723 = vperm.xlu0 %722, %v355
        %v724 = vpop.permute.xlu0 %723
        %727 = vset.pattern.permute.xlu0 0
        %728 = vperm.xlu0 %727, %v356
        %v729 = vpop.permute.xlu0 %728
        %732 = vset.pattern.permute.xlu0 0
        %733 = vperm.xlu0 %732, %v357
        %v734 = vpop.permute.xlu0 %733
        %737 = vset.pattern.permute.xlu0 0
        %738 = vperm.xlu0 %737, %v358
        %v739 = vpop.permute.xlu0 %738
        %742 = vset.pattern.permute.xlu0 0
        %743 = vperm.xlu0 %742, %v359
        %v744 = vpop.permute.xlu0 %743
        %747 = vset.pattern.permute.xlu0 0
        %748 = vperm.xlu0 %747, %v360
        %v749 = vpop.permute.xlu0 %748
        %752 = vset.pattern.permute.xlu0 0
        %753 = vperm.xlu0 %752, %v361
        %v754 = vpop.permute.xlu0 %753
        %757 = vset.pattern.permute.xlu0 0
        %758 = vperm.xlu0 %757, %v362
        %v759 = vpop.permute.xlu0 %758
        %762 = vset.pattern.permute.xlu0 0
        %763 = vperm.xlu0 %762, %v363
        %v764 = vpop.permute.xlu0 %763
        %767 = vset.pattern.permute.xlu0 0
        %768 = vperm.xlu0 %767, %v364
        %v769 = vpop.permute.xlu0 %768
        %772 = vset.pattern.permute.xlu0 0
        %773 = vperm.xlu0 %772, %v365
        %v774 = vpop.permute.xlu0 %773
        %777 = vset.pattern.permute.xlu0 0
        %778 = vperm.xlu0 %777, %v366
        %v779 = vpop.permute.xlu0 %778
        %782 = vset.pattern.permute.xlu0 0
        %783 = vperm.xlu0 %782, %v367
        %v784 = vpop.permute.xlu0 %783
        %787 = vset.pattern.permute.xlu0 0
        %788 = vperm.xlu0 %787, %v368
        %v789 = vpop.permute.xlu0 %788
        %v791 = vmul.f32 %v695, %v714
        %v792 = vmul.f32 %v696, %v719
        %v793 = vmul.f32 %v697, %v724
        %v794 = vmul.f32 %v698, %v729
        %v795 = vmul.f32 %v699, %v734
        %v796 = vmul.f32 %v700, %v739
        %v797 = vmul.f32 %v701, %v744
        %v798 = vmul.f32 %v702, %v749
        %v799 = vmul.f32 %v703, %v754
        %v800 = vmul.f32 %v704, %v759
        %v801 = vmul.f32 %v705, %v764
        %v802 = vmul.f32 %v706, %v769
        %v803 = vmul.f32 %v707, %v774
        %v804 = vmul.f32 %v708, %v779
        %v805 = vmul.f32 %v709, %v784
        %v806 = vmul.f32 %v710, %v789
        %v807 = vmul.f32 %v791, %v791
        %v808 = vmul.f32 %v792, %v792
        %v809 = vmul.f32 %v793, %v793
        %v810 = vmul.f32 %v794, %v794
        %v811 = vmul.f32 %v795, %v795
        %v812 = vmul.f32 %v796, %v796
        %v813 = vmul.f32 %v797, %v797
        %v814 = vmul.f32 %v798, %v798
        %v815 = vmul.f32 %v799, %v799
        %v816 = vmul.f32 %v800, %v800
        %v817 = vmul.f32 %v801, %v801
        %v818 = vmul.f32 %v802, %v802
        %v819 = vmul.f32 %v803, %v803
        %v820 = vmul.f32 %v804, %v804
        %v821 = vmul.f32 %v805, %v805
        %v822 = vmul.f32 %v806, %v806
        %v823 = vadd.f32 %v807, %v808
        %v824 = vadd.f32 %v823, %v809
        %v825 = vadd.f32 %v824, %v810
        %v826 = vadd.f32 %v825, %v811
        %v827 = vadd.f32 %v826, %v812
        %v828 = vadd.f32 %v827, %v813
        %v829 = vadd.f32 %v828, %v814
        %v830 = vadd.f32 %v829, %v815
        %v831 = vadd.f32 %v830, %v816
        %v832 = vadd.f32 %v831, %v817
        %v833 = vadd.f32 %v832, %v818
        %v834 = vadd.f32 %v833, %v819
        %v835 = vadd.f32 %v834, %v820
        %v836 = vadd.f32 %v835, %v821
        %v837 = vadd.f32 %v836, %v822
        %v838 = vrot.slane %v837, 4
        %v839 = vadd.f32 %v837, %v838
        %v840 = vrot.slane %v839, 2
        %v841 = vadd.f32 %v839, %v840
        %v842 = vrot.slane %v841, 1
        %v843 = vadd.f32 %v841, %v842
        %v844 = vmul.f32 %v843, 0.0625
        %v845 = vadd.f32 %v844, 1e-05
        %v846 = vrsqrt.pop %v845
        %v847 = vmul.f32 %v846, %v845
        %v848 = vmul.f32 %v847, %v846
        %v849 = vmul.f32 0.5, %v848
        %v850 = vsub.f32 1.5, %v849
        %v851 = vmul.f32 %v846, %v850
        %vm852 = vweird.f32 %v845
        %vm853 = vweird.f32 %v846
        %vm854 = vmor %vm852, %vm853
        %v855 = vsel %vm854, %v846, %v851
        %v856 = vmul.f32 %v695, %v855
        %v857 = vmul.f32 %v696, %v855
        %v858 = vmul.f32 %v697, %v855
        %v859 = vmul.f32 %v698, %v855
        %v860 = vmul.f32 %v699, %v855
        %v861 = vmul.f32 %v700, %v855
        %v862 = vmul.f32 %v701, %v855
        %v863 = vmul.f32 %v702, %v855
        %v864 = vmul.f32 %v703, %v855
        %v865 = vmul.f32 %v704, %v855
        %v866 = vmul.f32 %v705, %v855
        %v867 = vmul.f32 %v706, %v855
        %v868 = vmul.f32 %v707, %v855
        %v869 = vmul.f32 %v708, %v855
        %v870 = vmul.f32 %v709, %v855
        %v871 = vmul.f32 %v710, %v855
        %v873 = vperm.slane %v671, 0
        %v875 = vmul.f32 %v856, %v873
        %v876 = vmul.f32 %v857, %v873
        %v877 = vmul.f32 %v858, %v873
        %v878 = vmul.f32 %v859, %v873
        %v879 = vmul.f32 %v860, %v873
        %v880 = vmul.f32 %v861, %v873
        %v881 = vmul.f32 %v862, %v873
        %v882 = vmul.f32 %v863, %v873
        %v883 = vmul.f32 %v864, %v873
        %v884 = vmul.f32 %v865, %v873
        %v885 = vmul.f32 %v866, %v873
        %v886 = vmul.f32 %v867, %v873
        %v887 = vmul.f32 %v868, %v873
        %v888 = vmul.f32 %v869, %v873
        %v889 = vmul.f32 %v870, %v873
        %v890 = vmul.f32 %v871, %v873
        %v892 = vperm.slane %v672, 0
        %v894 = vadd.f32 %v875, %v892
        %v895 = vadd.f32 %v876, %v892
        %v896 = vadd.f32 %v877, %v892
        %v897 = vadd.f32 %v878, %v892
        %v898 = vadd.f32 %v879, %v892
        %v899 = vadd.f32 %v880, %v892
        %v900 = vadd.f32 %v881, %v892
        %v901 = vadd.f32 %v882, %v892
        %v902 = vadd.f32 %v883, %v892
        %v903 = vadd.f32 %v884, %v892
        %v904 = vadd.f32 %v885, %v892
        %v905 = vadd.f32 %v886, %v892
        %v906 = vadd.f32 %v887, %v892
        %v907 = vadd.f32 %v888, %v892
        %v908 = vadd.f32 %v889, %v892
        %v909 = vadd.f32 %v890, %v892
        %v910 = vmax.f32 %v894, 0.0
        %v911 = vmax.f32 %v895, 0.0
        %v912 = vmax.f32 %v896, 0.0
        %v913 = vmax.f32 %v897, 0.0
        %v914 = vmax.f32 %v898, 0.0
        %v915 = vmax.f32 %v899, 0.0
        %v916 = vmax.f32 %v900, 0.0
        %v917 = vmax.f32 %v901, 0.0
        %v918 = vmax.f32 %v902, 0.0
        %v919 = vmax.f32 %v903, 0.0
        %v920 = vmax.f32 %v904, 0.0
        %v921 = vmax.f32 %v905, 0.0
        %v922 = vmax.f32 %v906, 0.0
        %v923 = vmax.f32 %v907, 0.0
        %v924 = vmax.f32 %v908, 0.0
        %v925 = vmax.f32 %v909, 0.0
        %v926 = vpack.c.bf16 %v911, %v910
        %v927 = vpack.c.bf16 %v913, %v912
        %v928 = vpack.c.bf16 %v915, %v914
        %v929 = vpack.c.bf16 %v917, %v916
        %v930 = vpack.c.bf16 %v919, %v918
        %v931 = vpack.c.bf16 %v921, %v920
        %v932 = vpack.c.bf16 %v923, %v922
        %v933 = vpack.c.bf16 %v925, %v924
        %v934 = vld [vmem:[%s349] sm:$0xf]
        %v935 = vld [vmem:[%s349 + $0x4] sm:$0xf]
        %v936 = vld [vmem:[%s349 + $0x8] sm:$0xf]
        %v937 = vld [vmem:[%s349 + $0xc] sm:$0xf]
        %v938 = vld [vmem:[%s349 + $0x10] sm:$0xf]
        %v939 = vld [vmem:[%s349 + $0x14] sm:$0xf]
        %v940 = vld [vmem:[%s349 + $0x18] sm:$0xf]
        %v941 = vld [vmem:[%s349 + $0x1c] sm:$0xf]
        %v942 = vld [vmem:[%s349 + $0x20] sm:$0xf]
        %v943 = vld [vmem:[%s349 + $0x24] sm:$0xf]
        %v944 = vld [vmem:[%s349 + $0x28] sm:$0xf]
        %v945 = vld [vmem:[%s349 + $0x2c] sm:$0xf]
        %v946 = vld [vmem:[%s349 + $0x30] sm:$0xf]
        %v947 = vld [vmem:[%s349 + $0x34] sm:$0xf]
        %v948 = vld [vmem:[%s349 + $0x38] sm:$0xf]
        %v949 = vld [vmem:[%s349 + $0x3c] sm:$0xf]
        %v950 = vld [vmem:[%s352] sm:$0x1]
        %v952 = vperm.slane %v950, 0
        %v970 = vunpack.c.l.b16 %v934
        %v971 = vunpack.c.l.b16 %v935
        %v972 = vunpack.c.l.b16 %v936
        %v973 = vunpack.c.l.b16 %v937
        %v974 = vunpack.c.l.b16 %v938
        %v975 = vunpack.c.l.b16 %v939
        %v976 = vunpack.c.l.b16 %v940
        %v977 = vunpack.c.l.b16 %v941
        %v978 = vunpack.c.l.b16 %v942
        %v979 = vunpack.c.l.b16 %v943
        %v980 = vunpack.c.l.b16 %v944
        %v981 = vunpack.c.l.b16 %v945
        %v982 = vunpack.c.l.b16 %v946
        %v983 = vunpack.c.l.b16 %v947
        %v984 = vunpack.c.l.b16 %v948
        %v985 = vunpack.c.l.b16 %v949
        %v986 = vpack.c.b16 %v971, %v970
        %v987 = vpack.c.b16 %v973, %v972
        %v988 = vpack.c.b16 %v975, %v974
        %v989 = vpack.c.b16 %v977, %v976
        %v990 = vpack.c.b16 %v979, %v978
        %v991 = vpack.c.b16 %v981, %v980
        %v992 = vpack.c.b16 %v983, %v982
        %v993 = vpack.c.b16 %v985, %v984
        %1002 = vmatpush.bf16.msra.mxu0 %v993
        %1003 = vmatpush.bf16.msra.mxu0 %v992
        %1004 = vmatpush.bf16.msra.mxu0 %v991
        %1005 = vmatpush.bf16.msra.mxu0 %v990
        %1006 = vmatpush.bf16.msra.mxu0 %v989
        %1007 = vmatpush.bf16.msra.mxu0 %v988
        %1008 = vmatpush.bf16.msra.mxu0 %v987
        %1009 = vmatpush.bf16.msra.mxu0 %v986
        %1010 = vmatmul.bf16.gmra.mxu0 %v926
        %v1011 = vpop.f32.mrf.mxu0
        %v1012 = vadd.f32 %v952, %v1011
        %v1013 = vpop.f32.mrf.mxu0
        %v1014 = vadd.f32 %v952, %v1013
        %1015 = vmatmul.bf16.gmra.mxu0 %v927
        %v1016 = vpop.f32.mrf.mxu0
        %v1017 = vadd.f32 %v952, %v1016
        %v1018 = vpop.f32.mrf.mxu0
        %v1019 = vadd.f32 %v952, %v1018
        %1020 = vmatmul.bf16.gmra.mxu0 %v928
        %v1021 = vpop.f32.mrf.mxu0
        %v1022 = vadd.f32 %v952, %v1021
        %v1023 = vpop.f32.mrf.mxu0
        %v1024 = vadd.f32 %v952, %v1023
        %1025 = vmatmul.bf16.gmra.mxu0 %v929
        %v1026 = vpop.f32.mrf.mxu0
        %v1027 = vadd.f32 %v952, %v1026
        %v1028 = vpop.f32.mrf.mxu0
        %v1029 = vadd.f32 %v952, %v1028
        %1030 = vmatmul.bf16.gmra.mxu0 %v930
        %v1031 = vpop.f32.mrf.mxu0
        %v1032 = vadd.f32 %v952, %v1031
        %v1033 = vpop.f32.mrf.mxu0
        %v1034 = vadd.f32 %v952, %v1033
        %1035 = vmatmul.bf16.gmra.mxu0 %v931
        %v1036 = vpop.f32.mrf.mxu0
        %v1037 = vadd.f32 %v952, %v1036
        %v1038 = vpop.f32.mrf.mxu0
        %v1039 = vadd.f32 %v952, %v1038
        %1040 = vmatmul.bf16.gmra.mxu0 %v932
        %v1041 = vpop.f32.mrf.mxu0
        %v1042 = vadd.f32 %v952, %v1041
        %v1043 = vpop.f32.mrf.mxu0
        %v1044 = vadd.f32 %v952, %v1043
        %1045 = vmatmul.bf16.gmra.mxu0 %v933
        %v1046 = vpop.f32.mrf.mxu0
        %v1047 = vadd.f32 %v952, %v1046
        %v1048 = vpop.f32.mrf.mxu0
        %v1049 = vadd.f32 %v952, %v1048
        %1050 = vdwg.mxu0
        %v1051 = vmax.f32 %v1012, 0.0
        %v1052 = vmax.f32 %v1014, 0.0
        %v1053 = vmax.f32 %v1017, 0.0
        %v1054 = vmax.f32 %v1019, 0.0
        %v1055 = vmax.f32 %v1022, 0.0
        %v1056 = vmax.f32 %v1024, 0.0
        %v1057 = vmax.f32 %v1027, 0.0
        %v1058 = vmax.f32 %v1029, 0.0
        %v1059 = vmax.f32 %v1032, 0.0
        %v1060 = vmax.f32 %v1034, 0.0
        %v1061 = vmax.f32 %v1037, 0.0
        %v1062 = vmax.f32 %v1039, 0.0
        %v1063 = vmax.f32 %v1042, 0.0
        %v1064 = vmax.f32 %v1044, 0.0
        %v1065 = vmax.f32 %v1047, 0.0
        %v1066 = vmax.f32 %v1049, 0.0
        %v1067 = vmul.f32 %v1051, %v714
        %v1068 = vmul.f32 %v1052, %v719
        %v1069 = vmul.f32 %v1053, %v724
        %v1070 = vmul.f32 %v1054, %v729
        %v1071 = vmul.f32 %v1055, %v734
        %v1072 = vmul.f32 %v1056, %v739
        %v1073 = vmul.f32 %v1057, %v744
        %v1074 = vmul.f32 %v1058, %v749
        %v1075 = vmul.f32 %v1059, %v754
        %v1076 = vmul.f32 %v1060, %v759
        %v1077 = vmul.f32 %v1061, %v764
        %v1078 = vmul.f32 %v1062, %v769
        %v1079 = vmul.f32 %v1063, %v774
        %v1080 = vmul.f32 %v1064, %v779
        %v1081 = vmul.f32 %v1065, %v784
        %v1082 = vmul.f32 %v1066, %v789
        %v1083 = vpack.c.bf16 %v1067, %v1067
        %v1084 = vpack.c.bf16 %v1068, %v1068
        %v1085 = vpack.c.bf16 %v1069, %v1069
        %v1086 = vpack.c.bf16 %v1070, %v1070
        %v1087 = vpack.c.bf16 %v1071, %v1071
        %v1088 = vpack.c.bf16 %v1072, %v1072
        %v1089 = vpack.c.bf16 %v1073, %v1073
        %v1090 = vpack.c.bf16 %v1074, %v1074
        %v1091 = vpack.c.bf16 %v1075, %v1075
        %v1092 = vpack.c.bf16 %v1076, %v1076
        %v1093 = vpack.c.bf16 %v1077, %v1077
        %v1094 = vpack.c.bf16 %v1078, %v1078
        %v1095 = vpack.c.bf16 %v1079, %v1079
        %v1096 = vpack.c.bf16 %v1080, %v1080
        %v1097 = vpack.c.bf16 %v1081, %v1081
        %v1098 = vpack.c.bf16 %v1082, %v1082
        %1099 = vst [vmem:[%s8] sm:$0xf] %v1083
        %1100 = vst [vmem:[%s8 + $0x4] sm:$0xf] %v1084
        %1101 = vst [vmem:[%s8 + $0x8] sm:$0xf] %v1085
        %1102 = vst [vmem:[%s8 + $0xc] sm:$0xf] %v1086
        %1103 = vst [vmem:[%s8 + $0x10] sm:$0xf] %v1087
        %1104 = vst [vmem:[%s8 + $0x14] sm:$0xf] %v1088
        %1105 = vst [vmem:[%s8 + $0x18] sm:$0xf] %v1089
        %1106 = vst [vmem:[%s8 + $0x1c] sm:$0xf] %v1090
        %1107 = vst [vmem:[%s8 + $0x20] sm:$0xf] %v1091
        %1108 = vst [vmem:[%s8 + $0x24] sm:$0xf] %v1092
        %1109 = vst [vmem:[%s8 + $0x28] sm:$0xf] %v1093
        %1110 = vst [vmem:[%s8 + $0x2c] sm:$0xf] %v1094
        %1111 = vst [vmem:[%s8 + $0x30] sm:$0xf] %v1095
        %1112 = vst [vmem:[%s8 + $0x34] sm:$0xf] %v1096
        %1113 = vst [vmem:[%s8 + $0x38] sm:$0xf] %v1097
        %1114 = vst [vmem:[%s8 + $0x3c] sm:$0xf] %v1098
      $region56: #{causal_gin_forward.7} parent=51 // pred_fallthru
        _
      %p1115 = scmp.ne.s32.totalorder %s19, 0
      // Predicated region
      $region57: #{causal_gin_forward.7} parent=51 // pred_check
        %p1116 = pneg %p1115
      $region58: #{causal_gin_forward.7} parent=51 // pred_check_branch
        %1118 = sbr.rel (%p1116) target = $region60
      $region59: #{causal_gin_forward.7} parent=51 // pred_region
        %v1119 = vld [vmem:[%s8] sm:$0xf]
        %v1120 = vld [vmem:[%s8 + $0x4] sm:$0xf]
        %v1121 = vld [vmem:[%s8 + $0x8] sm:$0xf]
        %v1122 = vld [vmem:[%s8 + $0xc] sm:$0xf]
        %v1123 = vld [vmem:[%s8 + $0x10] sm:$0xf]
        %v1124 = vld [vmem:[%s8 + $0x14] sm:$0xf]
        %v1125 = vld [vmem:[%s8 + $0x18] sm:$0xf]
        %v1126 = vld [vmem:[%s8 + $0x1c] sm:$0xf]
        %v1127 = vld [vmem:[%s8 + $0x20] sm:$0xf]
        %v1128 = vld [vmem:[%s8 + $0x24] sm:$0xf]
        %v1129 = vld [vmem:[%s8 + $0x28] sm:$0xf]
        %v1130 = vld [vmem:[%s8 + $0x2c] sm:$0xf]
        %v1131 = vld [vmem:[%s8 + $0x30] sm:$0xf]
        %v1132 = vld [vmem:[%s8 + $0x34] sm:$0xf]
        %v1133 = vld [vmem:[%s8 + $0x38] sm:$0xf]
        %v1134 = vld [vmem:[%s8 + $0x3c] sm:$0xf]
        %v1135 = vld [vmem:[%s338] sm:$0xf]
        %v1136 = vld [vmem:[%s338 + $0x4] sm:$0xf]
        %v1137 = vld [vmem:[%s338 + $0x8] sm:$0xf]
        %v1138 = vld [vmem:[%s338 + $0xc] sm:$0xf]
        %v1139 = vld [vmem:[%s338 + $0x10] sm:$0xf]
        %v1140 = vld [vmem:[%s338 + $0x14] sm:$0xf]
        %v1141 = vld [vmem:[%s338 + $0x18] sm:$0xf]
        %v1142 = vld [vmem:[%s338 + $0x1c] sm:$0xf]
        %v1143 = vld [vmem:[%s338 + $0x20] sm:$0xf]
        %v1144 = vld [vmem:[%s338 + $0x24] sm:$0xf]
        %v1145 = vld [vmem:[%s338 + $0x28] sm:$0xf]
        %v1146 = vld [vmem:[%s338 + $0x2c] sm:$0xf]
        %v1147 = vld [vmem:[%s338 + $0x30] sm:$0xf]
        %v1148 = vld [vmem:[%s338 + $0x34] sm:$0xf]
        %v1149 = vld [vmem:[%s338 + $0x38] sm:$0xf]
        %v1150 = vld [vmem:[%s338 + $0x3c] sm:$0xf]
        %v1167 = vunpack.c.l.b16 %v1119
        %v1168 = vunpack.c.l.b16 %v1120
        %v1169 = vunpack.c.l.b16 %v1121
        %v1170 = vunpack.c.l.b16 %v1122
        %v1171 = vunpack.c.l.b16 %v1123
        %v1172 = vunpack.c.l.b16 %v1124
        %v1173 = vunpack.c.l.b16 %v1125
        %v1174 = vunpack.c.l.b16 %v1126
        %v1175 = vunpack.c.l.b16 %v1127
        %v1176 = vunpack.c.l.b16 %v1128
        %v1177 = vunpack.c.l.b16 %v1129
        %v1178 = vunpack.c.l.b16 %v1130
        %v1179 = vunpack.c.l.b16 %v1131
        %v1180 = vunpack.c.l.b16 %v1132
        %v1181 = vunpack.c.l.b16 %v1133
        %v1182 = vunpack.c.l.b16 %v1134
        %v1183 = vpack.c.b16 %v1168, %v1167
        %v1184 = vpack.c.b16 %v1170, %v1169
        %v1185 = vpack.c.b16 %v1172, %v1171
        %v1186 = vpack.c.b16 %v1174, %v1173
        %v1187 = vpack.c.b16 %v1176, %v1175
        %v1188 = vpack.c.b16 %v1178, %v1177
        %v1189 = vpack.c.b16 %v1180, %v1179
        %v1190 = vpack.c.b16 %v1182, %v1181
        %v1215 = vunpack.c.l.b16 %v1135
        %v1216 = vunpack.c.l.b16 %v1136
        %v1217 = vunpack.c.l.b16 %v1137
        %v1218 = vunpack.c.l.b16 %v1138
        %v1219 = vunpack.c.l.b16 %v1139
        %v1220 = vunpack.c.l.b16 %v1140
        %v1221 = vunpack.c.l.b16 %v1141
        %v1222 = vunpack.c.l.b16 %v1142
        %v1223 = vunpack.c.l.b16 %v1143
        %v1224 = vunpack.c.l.b16 %v1144
        %v1225 = vunpack.c.l.b16 %v1145
        %v1226 = vunpack.c.l.b16 %v1146
        %v1227 = vunpack.c.l.b16 %v1147
        %v1228 = vunpack.c.l.b16 %v1148
        %v1229 = vunpack.c.l.b16 %v1149
        %v1230 = vunpack.c.l.b16 %v1150
        %v1231 = vpack.c.b16 %v1216, %v1215
        %v1232 = vpack.c.b16 %v1218, %v1217
        %v1233 = vpack.c.b16 %v1220, %v1219
        %v1234 = vpack.c.b16 %v1222, %v1221
        %v1235 = vpack.c.b16 %v1224, %v1223
        %v1236 = vpack.c.b16 %v1226, %v1225
        %v1237 = vpack.c.b16 %v1228, %v1227
        %v1238 = vpack.c.b16 %v1230, %v1229
        %1247 = vmatpush.bf16.msra.mxu0 %v1238
        %1248 = vmatpush.bf16.msra.mxu0 %v1237
        %1249 = vmatpush.bf16.msra.mxu0 %v1236
        %1250 = vmatpush.bf16.msra.mxu0 %v1235
        %1251 = vmatpush.bf16.msra.mxu0 %v1234
        %1252 = vmatpush.bf16.msra.mxu0 %v1233
        %1253 = vmatpush.bf16.msra.mxu0 %v1232
        %1254 = vmatpush.bf16.msra.mxu0 %v1231
        %1255 = vmatmul.bf16.gmra.mxu0 %v1183
        %v1256 = vpop.f32.mrf.mxu0
        %v1257 = vadd.f32 0.0, %v1256
        %v1258 = vpop.f32.mrf.mxu0
        %v1259 = vadd.f32 0.0, %v1258
        %1260 = vmatmul.bf16.gmra.mxu0 %v1184
        %v1261 = vpop.f32.mrf.mxu0
        %v1262 = vadd.f32 0.0, %v1261
        %v1263 = vpop.f32.mrf.mxu0
        %v1264 = vadd.f32 0.0, %v1263
        %1265 = vmatmul.bf16.gmra.mxu0 %v1185
        %v1266 = vpop.f32.mrf.mxu0
        %v1267 = vadd.f32 0.0, %v1266
        %v1268 = vpop.f32.mrf.mxu0
        %v1269 = vadd.f32 0.0, %v1268
        %1270 = vmatmul.bf16.gmra.mxu0 %v1186
        %v1271 = vpop.f32.mrf.mxu0
        %v1272 = vadd.f32 0.0, %v1271
        %v1273 = vpop.f32.mrf.mxu0
        %v1274 = vadd.f32 0.0, %v1273
        %1275 = vmatmul.bf16.gmra.mxu0 %v1187
        %v1276 = vpop.f32.mrf.mxu0
        %v1277 = vadd.f32 0.0, %v1276
        %v1278 = vpop.f32.mrf.mxu0
        %v1279 = vadd.f32 0.0, %v1278
        %1280 = vmatmul.bf16.gmra.mxu0 %v1188
        %v1281 = vpop.f32.mrf.mxu0
        %v1282 = vadd.f32 0.0, %v1281
        %v1283 = vpop.f32.mrf.mxu0
        %v1284 = vadd.f32 0.0, %v1283
        %1285 = vmatmul.bf16.gmra.mxu0 %v1189
        %v1286 = vpop.f32.mrf.mxu0
        %v1287 = vadd.f32 0.0, %v1286
        %v1288 = vpop.f32.mrf.mxu0
        %v1289 = vadd.f32 0.0, %v1288
        %1290 = vmatmul.bf16.gmra.mxu0 %v1190
        %v1291 = vpop.f32.mrf.mxu0
        %v1292 = vadd.f32 0.0, %v1291
        %v1293 = vpop.f32.mrf.mxu0
        %v1294 = vadd.f32 0.0, %v1293
        %1295 = vdwg.mxu0
        %v1296 = vld [vmem:[%s0] sm:$0xf]
        %v1297 = vld [vmem:[%s0 + $0x4] sm:$0xf]
        %v1298 = vld [vmem:[%s0 + $0x8] sm:$0xf]
        %v1299 = vld [vmem:[%s0 + $0xc] sm:$0xf]
        %v1300 = vld [vmem:[%s0 + $0x10] sm:$0xf]
        %v1301 = vld [vmem:[%s0 + $0x14] sm:$0xf]
        %v1302 = vld [vmem:[%s0 + $0x18] sm:$0xf]
        %v1303 = vld [vmem:[%s0 + $0x1c] sm:$0xf]
        %v1304 = vld [vmem:[%s0 + $0x20] sm:$0xf]
        %v1305 = vld [vmem:[%s0 + $0x24] sm:$0xf]
        %v1306 = vld [vmem:[%s0 + $0x28] sm:$0xf]
        %v1307 = vld [vmem:[%s0 + $0x2c] sm:$0xf]
        %v1308 = vld [vmem:[%s0 + $0x30] sm:$0xf]
        %v1309 = vld [vmem:[%s0 + $0x34] sm:$0xf]
        %v1310 = vld [vmem:[%s0 + $0x38] sm:$0xf]
        %v1311 = vld [vmem:[%s0 + $0x3c] sm:$0xf]
        %v1312 = vpack.c.bf16 %v1259, %v1257
        %v1313 = vpack.c.bf16 %v1264, %v1262
        %v1314 = vpack.c.bf16 %v1269, %v1267
        %v1315 = vpack.c.bf16 %v1274, %v1272
        %v1316 = vpack.c.bf16 %v1279, %v1277
        %v1317 = vpack.c.bf16 %v1284, %v1282
        %v1318 = vpack.c.bf16 %v1289, %v1287
        %v1319 = vpack.c.bf16 %v1294, %v1292
        %v1336 = vunpack.c.l.b16 %v1296
        %v1337 = vunpack.c.l.b16 %v1297
        %v1338 = vunpack.c.l.b16 %v1298
        %v1339 = vunpack.c.l.b16 %v1299
        %v1340 = vunpack.c.l.b16 %v1300
        %v1341 = vunpack.c.l.b16 %v1301
        %v1342 = vunpack.c.l.b16 %v1302
        %v1343 = vunpack.c.l.b16 %v1303
        %v1344 = vunpack.c.l.b16 %v1304
        %v1345 = vunpack.c.l.b16 %v1305
        %v1346 = vunpack.c.l.b16 %v1306
        %v1347 = vunpack.c.l.b16 %v1307
        %v1348 = vunpack.c.l.b16 %v1308
        %v1349 = vunpack.c.l.b16 %v1309
        %v1350 = vunpack.c.l.b16 %v1310
        %v1351 = vunpack.c.l.b16 %v1311
        %v1352 = vpack.c.b16 %v1337, %v1336
        %v1353 = vpack.c.b16 %v1339, %v1338
        %v1354 = vpack.c.b16 %v1341, %v1340
        %v1355 = vpack.c.b16 %v1343, %v1342
        %v1356 = vpack.c.b16 %v1345, %v1344
        %v1357 = vpack.c.b16 %v1347, %v1346
        %v1358 = vpack.c.b16 %v1349, %v1348
        %v1359 = vpack.c.b16 %v1351, %v1350
        %1368 = vmatpush.bf16.msra.mxu0 %v1319
        %1369 = vmatpush.bf16.msra.mxu0 %v1318
        %1370 = vmatpush.bf16.msra.mxu0 %v1317
        %1371 = vmatpush.bf16.msra.mxu0 %v1316
        %1372 = vmatpush.bf16.msra.mxu0 %v1315
        %1373 = vmatpush.bf16.msra.mxu0 %v1314
        %1374 = vmatpush.bf16.msra.mxu0 %v1313
        %1375 = vmatpush.bf16.msra.mxu0 %v1312
        %1376 = vmatmul.bf16.gmra.mxu0 %v1352
        %v1377 = vpop.f32.mrf.mxu0
        %v1378 = vadd.f32 0.0, %v1377
        %v1379 = vpop.f32.mrf.mxu0
        %v1380 = vadd.f32 0.0, %v1379
        %1381 = vmatmul.bf16.gmra.mxu0 %v1353
        %v1382 = vpop.f32.mrf.mxu0
        %v1383 = vadd.f32 0.0, %v1382
        %v1384 = vpop.f32.mrf.mxu0
        %v1385 = vadd.f32 0.0, %v1384
        %1386 = vmatmul.bf16.gmra.mxu0 %v1354
        %v1387 = vpop.f32.mrf.mxu0
        %v1388 = vadd.f32 0.0, %v1387
        %v1389 = vpop.f32.mrf.mxu0
        %v1390 = vadd.f32 0.0, %v1389
        %1391 = vmatmul.bf16.gmra.mxu0 %v1355
        %v1392 = vpop.f32.mrf.mxu0
        %v1393 = vadd.f32 0.0, %v1392
        %v1394 = vpop.f32.mrf.mxu0
        %v1395 = vadd.f32 0.0, %v1394
        %1396 = vmatmul.bf16.gmra.mxu0 %v1356
        %v1397 = vpop.f32.mrf.mxu0
        %v1398 = vadd.f32 0.0, %v1397
        %v1399 = vpop.f32.mrf.mxu0
        %v1400 = vadd.f32 0.0, %v1399
        %1401 = vmatmul.bf16.gmra.mxu0 %v1357
        %v1402 = vpop.f32.mrf.mxu0
        %v1403 = vadd.f32 0.0, %v1402
        %v1404 = vpop.f32.mrf.mxu0
        %v1405 = vadd.f32 0.0, %v1404
        %1406 = vmatmul.bf16.gmra.mxu0 %v1358
        %v1407 = vpop.f32.mrf.mxu0
        %v1408 = vadd.f32 0.0, %v1407
        %v1409 = vpop.f32.mrf.mxu0
        %v1410 = vadd.f32 0.0, %v1409
        %1411 = vmatmul.bf16.gmra.mxu0 %v1359
        %v1412 = vpop.f32.mrf.mxu0
        %v1413 = vadd.f32 0.0, %v1412
        %v1414 = vpop.f32.mrf.mxu0
        %v1415 = vadd.f32 0.0, %v1414
        %1416 = vdwg.mxu0
        %v1417 = vld [vmem:[%s341] sm:$0x1]
        %v1418 = vld [vmem:[%s344] sm:$0x1]
        %v1419 = vadd.f32 %v1378, %v1380
        %v1420 = vadd.f32 %v1419, %v1383
        %v1421 = vadd.f32 %v1420, %v1385
        %v1422 = vadd.f32 %v1421, %v1388
        %v1423 = vadd.f32 %v1422, %v1390
        %v1424 = vadd.f32 %v1423, %v1393
        %v1425 = vadd.f32 %v1424, %v1395
        %v1426 = vadd.f32 %v1425, %v1398
        %v1427 = vadd.f32 %v1426, %v1400
        %v1428 = vadd.f32 %v1427, %v1403
        %v1429 = vadd.f32 %v1428, %v1405
        %v1430 = vadd.f32 %v1429, %v1408
        %v1431 = vadd.f32 %v1430, %v1410
        %v1432 = vadd.f32 %v1431, %v1413
        %v1433 = vadd.f32 %v1432, %v1415
        %v1434 = vrot.slane %v1433, 4
        %v1435 = vadd.f32 %v1433, %v1434
        %v1436 = vrot.slane %v1435, 2
        %v1437 = vadd.f32 %v1435, %v1436
        %v1438 = vrot.slane %v1437, 1
        %v1439 = vadd.f32 %v1437, %v1438
        %v1440 = vmul.f32 %v1439, 0.0625
        %v1441 = vsub.f32 %v1378, %v1440
        %v1442 = vsub.f32 %v1380, %v1440
        %v1443 = vsub.f32 %v1383, %v1440
        %v1444 = vsub.f32 %v1385, %v1440
        %v1445 = vsub.f32 %v1388, %v1440
        %v1446 = vsub.f32 %v1390, %v1440
        %v1447 = vsub.f32 %v1393, %v1440
        %v1448 = vsub.f32 %v1395, %v1440
        %v1449 = vsub.f32 %v1398, %v1440
        %v1450 = vsub.f32 %v1400, %v1440
        %v1451 = vsub.f32 %v1403, %v1440
        %v1452 = vsub.f32 %v1405, %v1440
        %v1453 = vsub.f32 %v1408, %v1440
        %v1454 = vsub.f32 %v1410, %v1440
        %v1455 = vsub.f32 %v1413, %v1440
        %v1456 = vsub.f32 %v1415, %v1440
        %1458 = vset.pattern.permute.xlu0 0
        %1459 = vperm.xlu0 %1458, %v353
        %v1460 = vpop.permute.xlu0 %1459
        %1463 = vset.pattern.permute.xlu0 0
        %1464 = vperm.xlu0 %1463, %v354
        %v1465 = vpop.permute.xlu0 %1464
        %1468 = vset.pattern.permute.xlu0 0
        %1469 = vperm.xlu0 %1468, %v355
        %v1470 = vpop.permute.xlu0 %1469
        %1473 = vset.pattern.permute.xlu0 0
        %1474 = vperm.xlu0 %1473, %v356
        %v1475 = vpop.permute.xlu0 %1474
        %1478 = vset.pattern.permute.xlu0 0
        %1479 = vperm.xlu0 %1478, %v357
        %v1480 = vpop.permute.xlu0 %1479
        %1483 = vset.pattern.permute.xlu0 0
        %1484 = vperm.xlu0 %1483, %v358
        %v1485 = vpop.permute.xlu0 %1484
        %1488 = vset.pattern.permute.xlu0 0
        %1489 = vperm.xlu0 %1488, %v359
        %v1490 = vpop.permute.xlu0 %1489
        %1493 = vset.pattern.permute.xlu0 0
        %1494 = vperm.xlu0 %1493, %v360
        %v1495 = vpop.permute.xlu0 %1494
        %1498 = vset.pattern.permute.xlu0 0
        %1499 = vperm.xlu0 %1498, %v361
        %v1500 = vpop.permute.xlu0 %1499
        %1503 = vset.pattern.permute.xlu0 0
        %1504 = vperm.xlu0 %1503, %v362
        %v1505 = vpop.permute.xlu0 %1504
        %1508 = vset.pattern.permute.xlu0 0
        %1509 = vperm.xlu0 %1508, %v363
        %v1510 = vpop.permute.xlu0 %1509
        %1513 = vset.pattern.permute.xlu0 0
        %1514 = vperm.xlu0 %1513, %v364
        %v1515 = vpop.permute.xlu0 %1514
        %1518 = vset.pattern.permute.xlu0 0
        %1519 = vperm.xlu0 %1518, %v365
        %v1520 = vpop.permute.xlu0 %1519
        %1523 = vset.pattern.permute.xlu0 0
        %1524 = vperm.xlu0 %1523, %v366
        %v1525 = vpop.permute.xlu0 %1524
        %1528 = vset.pattern.permute.xlu0 0
        %1529 = vperm.xlu0 %1528, %v367
        %v1530 = vpop.permute.xlu0 %1529
        %1533 = vset.pattern.permute.xlu0 0
        %1534 = vperm.xlu0 %1533, %v368
        %v1535 = vpop.permute.xlu0 %1534
        %v1537 = vmul.f32 %v1441, %v1460
        %v1538 = vmul.f32 %v1442, %v1465
        %v1539 = vmul.f32 %v1443, %v1470
        %v1540 = vmul.f32 %v1444, %v1475
        %v1541 = vmul.f32 %v1445, %v1480
        %v1542 = vmul.f32 %v1446, %v1485
        %v1543 = vmul.f32 %v1447, %v1490
        %v1544 = vmul.f32 %v1448, %v1495
        %v1545 = vmul.f32 %v1449, %v1500
        %v1546 = vmul.f32 %v1450, %v1505
        %v1547 = vmul.f32 %v1451, %v1510
        %v1548 = vmul.f32 %v1452, %v1515
        %v1549 = vmul.f32 %v1453, %v1520
        %v1550 = vmul.f32 %v1454, %v1525
        %v1551 = vmul.f32 %v1455, %v1530
        %v1552 = vmul.f32 %v1456, %v1535
        %v1553 = vmul.f32 %v1537, %v1537
        %v1554 = vmul.f32 %v1538, %v1538
        %v1555 = vmul.f32 %v1539, %v1539
        %v1556 = vmul.f32 %v1540, %v1540
        %v1557 = vmul.f32 %v1541, %v1541
        %v1558 = vmul.f32 %v1542, %v1542
        %v1559 = vmul.f32 %v1543, %v1543
        %v1560 = vmul.f32 %v1544, %v1544
        %v1561 = vmul.f32 %v1545, %v1545
        %v1562 = vmul.f32 %v1546, %v1546
        %v1563 = vmul.f32 %v1547, %v1547
        %v1564 = vmul.f32 %v1548, %v1548
        %v1565 = vmul.f32 %v1549, %v1549
        %v1566 = vmul.f32 %v1550, %v1550
        %v1567 = vmul.f32 %v1551, %v1551
        %v1568 = vmul.f32 %v1552, %v1552
        %v1569 = vadd.f32 %v1553, %v1554
        %v1570 = vadd.f32 %v1569, %v1555
        %v1571 = vadd.f32 %v1570, %v1556
        %v1572 = vadd.f32 %v1571, %v1557
        %v1573 = vadd.f32 %v1572, %v1558
        %v1574 = vadd.f32 %v1573, %v1559
        %v1575 = vadd.f32 %v1574, %v1560
        %v1576 = vadd.f32 %v1575, %v1561
        %v1577 = vadd.f32 %v1576, %v1562
        %v1578 = vadd.f32 %v1577, %v1563
        %v1579 = vadd.f32 %v1578, %v1564
        %v1580 = vadd.f32 %v1579, %v1565
        %v1581 = vadd.f32 %v1580, %v1566
        %v1582 = vadd.f32 %v1581, %v1567
        %v1583 = vadd.f32 %v1582, %v1568
        %v1584 = vrot.slane %v1583, 4
        %v1585 = vadd.f32 %v1583, %v1584
        %v1586 = vrot.slane %v1585, 2
        %v1587 = vadd.f32 %v1585, %v1586
        %v1588 = vrot.slane %v1587, 1
        %v1589 = vadd.f32 %v1587, %v1588
        %v1590 = vmul.f32 %v1589, 0.0625
        %v1591 = vadd.f32 %v1590, 1e-05
        %v1592 = vrsqrt.pop %v1591
        %v1593 = vmul.f32 %v1592, %v1591
        %v1594 = vmul.f32 %v1593, %v1592
        %v1595 = vmul.f32 0.5, %v1594
        %v1596 = vsub.f32 1.5, %v1595
        %v1597 = vmul.f32 %v1592, %v1596
        %vm1598 = vweird.f32 %v1591
        %vm1599 = vweird.f32 %v1592
        %vm1600 = vmor %vm1598, %vm1599
        %v1601 = vsel %vm1600, %v1592, %v1597
        %v1602 = vmul.f32 %v1441, %v1601
        %v1603 = vmul.f32 %v1442, %v1601
        %v1604 = vmul.f32 %v1443, %v1601
        %v1605 = vmul.f32 %v1444, %v1601
        %v1606 = vmul.f32 %v1445, %v1601
        %v1607 = vmul.f32 %v1446, %v1601
        %v1608 = vmul.f32 %v1447, %v1601
        %v1609 = vmul.f32 %v1448, %v1601
        %v1610 = vmul.f32 %v1449, %v1601
        %v1611 = vmul.f32 %v1450, %v1601
        %v1612 = vmul.f32 %v1451, %v1601
        %v1613 = vmul.f32 %v1452, %v1601
        %v1614 = vmul.f32 %v1453, %v1601
        %v1615 = vmul.f32 %v1454, %v1601
        %v1616 = vmul.f32 %v1455, %v1601
        %v1617 = vmul.f32 %v1456, %v1601
        %v1619 = vperm.slane %v1417, 0
        %v1621 = vmul.f32 %v1602, %v1619
        %v1622 = vmul.f32 %v1603, %v1619
        %v1623 = vmul.f32 %v1604, %v1619
        %v1624 = vmul.f32 %v1605, %v1619
        %v1625 = vmul.f32 %v1606, %v1619
        %v1626 = vmul.f32 %v1607, %v1619
        %v1627 = vmul.f32 %v1608, %v1619
        %v1628 = vmul.f32 %v1609, %v1619
        %v1629 = vmul.f32 %v1610, %v1619
        %v1630 = vmul.f32 %v1611, %v1619
        %v1631 = vmul.f32 %v1612, %v1619
        %v1632 = vmul.f32 %v1613, %v1619
        %v1633 = vmul.f32 %v1614, %v1619
        %v1634 = vmul.f32 %v1615, %v1619
        %v1635 = vmul.f32 %v1616, %v1619
        %v1636 = vmul.f32 %v1617, %v1619
        %v1638 = vperm.slane %v1418, 0
        %v1640 = vadd.f32 %v1621, %v1638
        %v1641 = vadd.f32 %v1622, %v1638
        %v1642 = vadd.f32 %v1623, %v1638
        %v1643 = vadd.f32 %v1624, %v1638
        %v1644 = vadd.f32 %v1625, %v1638
        %v1645 = vadd.f32 %v1626, %v1638
        %v1646 = vadd.f32 %v1627, %v1638
        %v1647 = vadd.f32 %v1628, %v1638
        %v1648 = vadd.f32 %v1629, %v1638
        %v1649 = vadd.f32 %v1630, %v1638
        %v1650 = vadd.f32 %v1631, %v1638
        %v1651 = vadd.f32 %v1632, %v1638
        %v1652 = vadd.f32 %v1633, %v1638
        %v1653 = vadd.f32 %v1634, %v1638
        %v1654 = vadd.f32 %v1635, %v1638
        %v1655 = vadd.f32 %v1636, %v1638
        %v1656 = vmax.f32 %v1640, 0.0
        %v1657 = vmax.f32 %v1641, 0.0
        %v1658 = vmax.f32 %v1642, 0.0
        %v1659 = vmax.f32 %v1643, 0.0
        %v1660 = vmax.f32 %v1644, 0.0
        %v1661 = vmax.f32 %v1645, 0.0
        %v1662 = vmax.f32 %v1646, 0.0
        %v1663 = vmax.f32 %v1647, 0.0
        %v1664 = vmax.f32 %v1648, 0.0
        %v1665 = vmax.f32 %v1649, 0.0
        %v1666 = vmax.f32 %v1650, 0.0
        %v1667 = vmax.f32 %v1651, 0.0
        %v1668 = vmax.f32 %v1652, 0.0
        %v1669 = vmax.f32 %v1653, 0.0
        %v1670 = vmax.f32 %v1654, 0.0
        %v1671 = vmax.f32 %v1655, 0.0
        %v1672 = vpack.c.bf16 %v1657, %v1656
        %v1673 = vpack.c.bf16 %v1659, %v1658
        %v1674 = vpack.c.bf16 %v1661, %v1660
        %v1675 = vpack.c.bf16 %v1663, %v1662
        %v1676 = vpack.c.bf16 %v1665, %v1664
        %v1677 = vpack.c.bf16 %v1667, %v1666
        %v1678 = vpack.c.bf16 %v1669, %v1668
        %v1679 = vpack.c.bf16 %v1671, %v1670
        %v1680 = vld [vmem:[%s349] sm:$0xf]
        %v1681 = vld [vmem:[%s349 + $0x4] sm:$0xf]
        %v1682 = vld [vmem:[%s349 + $0x8] sm:$0xf]
        %v1683 = vld [vmem:[%s349 + $0xc] sm:$0xf]
        %v1684 = vld [vmem:[%s349 + $0x10] sm:$0xf]
        %v1685 = vld [vmem:[%s349 + $0x14] sm:$0xf]
        %v1686 = vld [vmem:[%s349 + $0x18] sm:$0xf]
        %v1687 = vld [vmem:[%s349 + $0x1c] sm:$0xf]
        %v1688 = vld [vmem:[%s349 + $0x20] sm:$0xf]
        %v1689 = vld [vmem:[%s349 + $0x24] sm:$0xf]
        %v1690 = vld [vmem:[%s349 + $0x28] sm:$0xf]
        %v1691 = vld [vmem:[%s349 + $0x2c] sm:$0xf]
        %v1692 = vld [vmem:[%s349 + $0x30] sm:$0xf]
        %v1693 = vld [vmem:[%s349 + $0x34] sm:$0xf]
        %v1694 = vld [vmem:[%s349 + $0x38] sm:$0xf]
        %v1695 = vld [vmem:[%s349 + $0x3c] sm:$0xf]
        %v1696 = vld [vmem:[%s352] sm:$0x1]
        %v1698 = vperm.slane %v1696, 0
        %v1716 = vunpack.c.l.b16 %v1680
        %v1717 = vunpack.c.l.b16 %v1681
        %v1718 = vunpack.c.l.b16 %v1682
        %v1719 = vunpack.c.l.b16 %v1683
        %v1720 = vunpack.c.l.b16 %v1684
        %v1721 = vunpack.c.l.b16 %v1685
        %v1722 = vunpack.c.l.b16 %v1686
        %v1723 = vunpack.c.l.b16 %v1687
        %v1724 = vunpack.c.l.b16 %v1688
        %v1725 = vunpack.c.l.b16 %v1689
        %v1726 = vunpack.c.l.b16 %v1690
        %v1727 = vunpack.c.l.b16 %v1691
        %v1728 = vunpack.c.l.b16 %v1692
        %v1729 = vunpack.c.l.b16 %v1693
        %v1730 = vunpack.c.l.b16 %v1694
        %v1731 = vunpack.c.l.b16 %v1695
        %v1732 = vpack.c.b16 %v1717, %v1716
        %v1733 = vpack.c.b16 %v1719, %v1718
        %v1734 = vpack.c.b16 %v1721, %v1720
        %v1735 = vpack.c.b16 %v1723, %v1722
        %v1736 = vpack.c.b16 %v1725, %v1724
        %v1737 = vpack.c.b16 %v1727, %v1726
        %v1738 = vpack.c.b16 %v1729, %v1728
        %v1739 = vpack.c.b16 %v1731, %v1730
        %1748 = vmatpush.bf16.msra.mxu0 %v1739
        %1749 = vmatpush.bf16.msra.mxu0 %v1738
        %1750 = vmatpush.bf16.msra.mxu0 %v1737
        %1751 = vmatpush.bf16.msra.mxu0 %v1736
        %1752 = vmatpush.bf16.msra.mxu0 %v1735
        %1753 = vmatpush.bf16.msra.mxu0 %v1734
        %1754 = vmatpush.bf16.msra.mxu0 %v1733
        %1755 = vmatpush.bf16.msra.mxu0 %v1732
        %1756 = vmatmul.bf16.gmra.mxu0 %v1672
        %v1757 = vpop.f32.mrf.mxu0
        %v1758 = vadd.f32 %v1698, %v1757
        %v1759 = vpop.f32.mrf.mxu0
        %v1760 = vadd.f32 %v1698, %v1759
        %1761 = vmatmul.bf16.gmra.mxu0 %v1673
        %v1762 = vpop.f32.mrf.mxu0
        %v1763 = vadd.f32 %v1698, %v1762
        %v1764 = vpop.f32.mrf.mxu0
        %v1765 = vadd.f32 %v1698, %v1764
        %1766 = vmatmul.bf16.gmra.mxu0 %v1674
        %v1767 = vpop.f32.mrf.mxu0
        %v1768 = vadd.f32 %v1698, %v1767
        %v1769 = vpop.f32.mrf.mxu0
        %v1770 = vadd.f32 %v1698, %v1769
        %1771 = vmatmul.bf16.gmra.mxu0 %v1675
        %v1772 = vpop.f32.mrf.mxu0
        %v1773 = vadd.f32 %v1698, %v1772
        %v1774 = vpop.f32.mrf.mxu0
        %v1775 = vadd.f32 %v1698, %v1774
        %1776 = vmatmul.bf16.gmra.mxu0 %v1676
        %v1777 = vpop.f32.mrf.mxu0
        %v1778 = vadd.f32 %v1698, %v1777
        %v1779 = vpop.f32.mrf.mxu0
        %v1780 = vadd.f32 %v1698, %v1779
        %1781 = vmatmul.bf16.gmra.mxu0 %v1677
        %v1782 = vpop.f32.mrf.mxu0
        %v1783 = vadd.f32 %v1698, %v1782
        %v1784 = vpop.f32.mrf.mxu0
        %v1785 = vadd.f32 %v1698, %v1784
        %1786 = vmatmul.bf16.gmra.mxu0 %v1678
        %v1787 = vpop.f32.mrf.mxu0
        %v1788 = vadd.f32 %v1698, %v1787
        %v1789 = vpop.f32.mrf.mxu0
        %v1790 = vadd.f32 %v1698, %v1789
        %1791 = vmatmul.bf16.gmra.mxu0 %v1679
        %v1792 = vpop.f32.mrf.mxu0
        %v1793 = vadd.f32 %v1698, %v1792
        %v1794 = vpop.f32.mrf.mxu0
        %v1795 = vadd.f32 %v1698, %v1794
        %1796 = vdwg.mxu0
        %v1797 = vmax.f32 %v1758, 0.0
        %v1798 = vmax.f32 %v1760, 0.0
        %v1799 = vmax.f32 %v1763, 0.0
        %v1800 = vmax.f32 %v1765, 0.0
        %v1801 = vmax.f32 %v1768, 0.0
        %v1802 = vmax.f32 %v1770, 0.0
        %v1803 = vmax.f32 %v1773, 0.0
        %v1804 = vmax.f32 %v1775, 0.0
        %v1805 = vmax.f32 %v1778, 0.0
        %v1806 = vmax.f32 %v1780, 0.0
        %v1807 = vmax.f32 %v1783, 0.0
        %v1808 = vmax.f32 %v1785, 0.0
        %v1809 = vmax.f32 %v1788, 0.0
        %v1810 = vmax.f32 %v1790, 0.0
        %v1811 = vmax.f32 %v1793, 0.0
        %v1812 = vmax.f32 %v1795, 0.0
        %v1813 = vmul.f32 %v1797, %v1460
        %v1814 = vmul.f32 %v1798, %v1465
        %v1815 = vmul.f32 %v1799, %v1470
        %v1816 = vmul.f32 %v1800, %v1475
        %v1817 = vmul.f32 %v1801, %v1480
        %v1818 = vmul.f32 %v1802, %v1485
        %v1819 = vmul.f32 %v1803, %v1490
        %v1820 = vmul.f32 %v1804, %v1495
        %v1821 = vmul.f32 %v1805, %v1500
        %v1822 = vmul.f32 %v1806, %v1505
        %v1823 = vmul.f32 %v1807, %v1510
        %v1824 = vmul.f32 %v1808, %v1515
        %v1825 = vmul.f32 %v1809, %v1520
        %v1826 = vmul.f32 %v1810, %v1525
        %v1827 = vmul.f32 %v1811, %v1530
        %v1828 = vmul.f32 %v1812, %v1535
        %v1829 = vpack.c.bf16 %v1813, %v1813
        %v1830 = vpack.c.bf16 %v1814, %v1814
        %v1831 = vpack.c.bf16 %v1815, %v1815
        %v1832 = vpack.c.bf16 %v1816, %v1816
        %v1833 = vpack.c.bf16 %v1817, %v1817
        %v1834 = vpack.c.bf16 %v1818, %v1818
        %v1835 = vpack.c.bf16 %v1819, %v1819
        %v1836 = vpack.c.bf16 %v1820, %v1820
        %v1837 = vpack.c.bf16 %v1821, %v1821
        %v1838 = vpack.c.bf16 %v1822, %v1822
        %v1839 = vpack.c.bf16 %v1823, %v1823
        %v1840 = vpack.c.bf16 %v1824, %v1824
        %v1841 = vpack.c.bf16 %v1825, %v1825
        %v1842 = vpack.c.bf16 %v1826, %v1826
        %v1843 = vpack.c.bf16 %v1827, %v1827
        %v1844 = vpack.c.bf16 %v1828, %v1828
        %1845 = vst [vmem:[%s8] sm:$0xf] %v1829
        %1846 = vst [vmem:[%s8 + $0x4] sm:$0xf] %v1830
        %1847 = vst [vmem:[%s8 + $0x8] sm:$0xf] %v1831
        %1848 = vst [vmem:[%s8 + $0xc] sm:$0xf] %v1832
        %1849 = vst [vmem:[%s8 + $0x10] sm:$0xf] %v1833
        %1850 = vst [vmem:[%s8 + $0x14] sm:$0xf] %v1834
        %1851 = vst [vmem:[%s8 + $0x18] sm:$0xf] %v1835
        %1852 = vst [vmem:[%s8 + $0x1c] sm:$0xf] %v1836
        %1853 = vst [vmem:[%s8 + $0x20] sm:$0xf] %v1837
        %1854 = vst [vmem:[%s8 + $0x24] sm:$0xf] %v1838
        %1855 = vst [vmem:[%s8 + $0x28] sm:$0xf] %v1839
        %1856 = vst [vmem:[%s8 + $0x2c] sm:$0xf] %v1840
        %1857 = vst [vmem:[%s8 + $0x30] sm:$0xf] %v1841
        %1858 = vst [vmem:[%s8 + $0x34] sm:$0xf] %v1842
        %1859 = vst [vmem:[%s8 + $0x38] sm:$0xf] %v1843
        %1860 = vst [vmem:[%s8 + $0x3c] sm:$0xf] %v1844
      $region60: #{causal_gin_forward.7} parent=51 // pred_fallthru
        _
      // Predicated region
      $region61: #{causal_gin_forward.7} parent=51 // pred_check
        %p1861 = pneg %p225
      $region62: #{causal_gin_forward.7} parent=51 // pred_check_branch
        %1863 = sbr.rel (%p1861) target = $region64
      $region63: #{causal_gin_forward.7} parent=51 // pred_region
        _
      $region64: #{causal_gin_forward.7} parent=51 // pred_fallthru
        _
      // Predicated region
      $region65: #{causal_gin_forward.7} parent=51 // pred_check
        %p1864 = pneg %p225
      $region66: #{causal_gin_forward.7} parent=51 // pred_check_branch
        %1866 = sbr.rel (%p1864) target = $region68
      $region67: #{causal_gin_forward.7} parent=51 // pred_region
        _
      $region68: #{causal_gin_forward.7} parent=51 // pred_fallthru
        _
    $region52: #{causal_gin_forward.7} parent=5 // pred_fallthru
      _
    %p1867 = scmp.le.s32.totalorder 2, %s14
    // Predicated region
    $region69: #{causal_gin_forward.7} parent=5 // pred_check
      %p1868 = pneg %p1867
    $region70: #{causal_gin_forward.7} parent=5 // pred_check_branch
      %1870 = sbr.rel (%p1868) target = $region72
    $region71: #{causal_gin_forward.7} parent=5 // pred_region
      %s1871 = ssub.s32 %s14, 2
    $region72: #{causal_gin_forward.7} parent=5 // pred_fallthru
      _
  $region6: #{causal_gin_forward.7} parent=0 // loop_footer
    %s18 = sadd.s32 1, %s14
  $region7: #{causal_gin_forward.7} parent=0 // loop_footer_branch
    %13 = sbr.rel target = $region3
  $region8: #{causal_gin_forward.7} parent=0 // loop_exit
    _

// kernel: causal_gin_forward.9
$region0: #{causal_gin_forward.9}
  #allocation0 [shape = 'u32[]', space=smem, size = 0x4, offset = 0x4, fixed_abs, tag = 'smem constant byte address 0x4 - core index']
  #allocation1 [shape = 'u32[72,128]{1,0:T(1,128)}', space=vmem, size = 0x9000, scoped, tag = 'internal scratch']
  %s0 = inlined_call_operand.vmem [shape: bf16[2,128,128], index: 0, kind: input, shape index: {}]
  %s1 = inlined_call_operand.vmem [shape: bf16[2,128,128], index: 1, kind: input, shape index: {}]
  %s2 = inlined_call_operand.vmem [shape: f32[128,1], index: 2, kind: input, shape index: {}]
  %s3 = inlined_call_operand.vmem [shape: bf16[128,128], index: 3, kind: input, shape index: {}]
  %s4 = inlined_call_operand.vmem [shape: f32[1,128], index: 4, kind: input, shape index: {}]
  %s5 = inlined_call_operand.vmem [shape: bf16[2,128,128], index: 5, kind: output, shape index: {}]
  %s6 = sld [smem:[#allocation0]]
  $region53: #{causal_gin_forward.9} parent=0
    _
  %s8 = ssub.s32 1, %s6
  %s9 = scalar_select 0, %s8, %s6
  loop: start=0, step=1, limit=4
  $region2: #{causal_gin_forward.9} parent=0 // loop_pre_header
    _
  $region3: #{causal_gin_forward.9} parent=0 // loop_header
    %s11 = sphi 0, %s15
    %p12 = scmp.ge.s32.totalorder %s11, 4
    %s21 = sphi 0, %s23
    %s24 = sphi 0, %s21
    %s25 = sphi 0, %s24
    %s41 = sphi 0, %s25
    %s47 = sphi 0, %s49
    %s50 = sphi 0, %s47
    %s51 = sphi 0, %s50
    %s67 = sphi 0, %s51
    %s71 = sphi 0, %s71
    %s73 = sphi 0, %s71
    %s74 = sphi 0, %s73
    %s88 = sphi 0, %s74
    %s92 = sphi 0, %s92
    %s94 = sphi 0, %s92
    %s95 = sphi 0, %s94
    %s109 = sphi 0, %s95
    %s113 = sphi 0, %s113
    %s115 = sphi 0, %s113
    %s116 = sphi 0, %s115
    %s130 = sphi 0, %s116
    %s136 = sphi 0, %s138
    %s139 = sphi 0, %s136
    %s140 = sphi 0, %s139
    %s156 = sphi 0, %s140
  $region4: #{causal_gin_forward.9} parent=0 // loop_header_branch
    %14 = sbr.rel (%p12) target = $region8
  $region5: #{causal_gin_forward.9} parent=0 // loop_body
    %s16 = ssub.s32 %s11, 1
    %s17 = ssub.s32 %s11, 2
    %s18 = sadd.s32 %s11, 1
    %s19 = ssub.s32 %s11, %s18
    %p20 = scmp.eq.s32.totalorder %s19, 0
    %s22 = sadd.s32 %s21, 1
    %s23 = scalar_select %p20, %s21, %s22
    %p26 = pneg %p20
    %p27 = scmp.eq.s32.totalorder %s11, 1
    %p28 = por %p26, %p27
    %p29 = scmp.ne.s32.totalorder %s21, %s24
    %p30 = scmp.eq.s32.totalorder %s11, 0
    %p31 = por %p29, %p30
    %p32 = scmp.ne.s32.totalorder %s21, %s24
    %p33 = scmp.eq.s32.totalorder %s16, 1
    %p34 = por %p32, %p33
    %p35 = scmp.ne.s32.totalorder %s24, %s25
    %p36 = scmp.eq.s32.totalorder %s16, 0
    %p37 = por %p35, %p36
    %p38 = scmp.ne.s32.totalorder %s24, %s25
    %p39 = scmp.eq.s32.totalorder %s17, 1
    %p40 = por %p38, %p39
    %p42 = scmp.ne.s32.totalorder %s25, %s41
    %p43 = scmp.eq.s32.totalorder %s17, 0
    %p44 = por %p42, %p43
    %s45 = ssub.s32 %s11, %s18
    %p46 = scmp.eq.s32.totalorder %s45, 0
    %s48 = sadd.s32 %s47, 1
    %s49 = scalar_select %p46, %s47, %s48
    %p52 = pneg %p46
    %p53 = scmp.eq.s32.totalorder %s11, 1
    %p54 = por %p52, %p53
    %p55 = scmp.ne.s32.totalorder %s47, %s50
    %p56 = scmp.eq.s32.totalorder %s11, 0
    %p57 = por %p55, %p56
    %p58 = scmp.ne.s32.totalorder %s47, %s50
    %p59 = scmp.eq.s32.totalorder %s16, 1
    %p60 = por %p58, %p59
    %p61 = scmp.ne.s32.totalorder %s50, %s51
    %p62 = scmp.eq.s32.totalorder %s16, 0
    %p63 = por %p61, %p62
    %p64 = scmp.ne.s32.totalorder %s50, %s51
    %p65 = scmp.eq.s32.totalorder %s17, 1
    %p66 = por %p64, %p65
    %p68 = scmp.ne.s32.totalorder %s51, %s67
    %p69 = scmp.eq.s32.totalorder %s17, 0
    %p70 = por %p68, %p69
    %s72 = sadd.s32 %s71, 1
    %p75 = scmp.eq.s32.totalorder %s11, 1
    %p76 = scmp.ne.s32.totalorder %s71, %s73
    %p77 = scmp.eq.s32.totalorder %s11, 0
    %p78 = por %p76, %p77
    %p79 = scmp.ne.s32.totalorder %s71, %s73
    %p80 = scmp.eq.s32.totalorder %s16, 1
    %p81 = por %p79, %p80
    %p82 = scmp.ne.s32.totalorder %s73, %s74
    %p83 = scmp.eq.s32.totalorder %s16, 0
    %p84 = por %p82, %p83
    %p85 = scmp.ne.s32.totalorder %s73, %s74
    %p86 = scmp.eq.s32.totalorder %s17, 1
    %p87 = por %p85, %p86
    %p89 = scmp.ne.s32.totalorder %s74, %s88
    %p90 = scmp.eq.s32.totalorder %s17, 0
    %p91 = por %p89, %p90
    %s93 = sadd.s32 %s92, 1
    %p96 = scmp.eq.s32.totalorder %s11, 1
    %p97 = scmp.ne.s32.totalorder %s92, %s94
    %p98 = scmp.eq.s32.totalorder %s11, 0
    %p99 = por %p97, %p98
    %p100 = scmp.ne.s32.totalorder %s92, %s94
    %p101 = scmp.eq.s32.totalorder %s16, 1
    %p102 = por %p100, %p101
    %p103 = scmp.ne.s32.totalorder %s94, %s95
    %p104 = scmp.eq.s32.totalorder %s16, 0
    %p105 = por %p103, %p104
    %p106 = scmp.ne.s32.totalorder %s94, %s95
    %p107 = scmp.eq.s32.totalorder %s17, 1
    %p108 = por %p106, %p107
    %p110 = scmp.ne.s32.totalorder %s95, %s109
    %p111 = scmp.eq.s32.totalorder %s17, 0
    %p112 = por %p110, %p111
    %s114 = sadd.s32 %s113, 1
    %p117 = scmp.eq.s32.totalorder %s11, 1
    %p118 = scmp.ne.s32.totalorder %s113, %s115
    %p119 = scmp.eq.s32.totalorder %s11, 0
    %p120 = por %p118, %p119
    %p121 = scmp.ne.s32.totalorder %s113, %s115
    %p122 = scmp.eq.s32.totalorder %s16, 1
    %p123 = por %p121, %p122
    %p124 = scmp.ne.s32.totalorder %s115, %s116
    %p125 = scmp.eq.s32.totalorder %s16, 0
    %p126 = por %p124, %p125
    %p127 = scmp.ne.s32.totalorder %s115, %s116
    %p128 = scmp.eq.s32.totalorder %s17, 1
    %p129 = por %p127, %p128
    %p131 = scmp.ne.s32.totalorder %s116, %s130
    %p132 = scmp.eq.s32.totalorder %s17, 0
    %p133 = por %p131, %p132
    %s134 = ssub.s32 %s11, %s18
    %p135 = scmp.eq.s32.totalorder %s134, 0
    %s137 = sadd.s32 %s136, 1
    %s138 = scalar_select %p135, %s136, %s137
    %p141 = pneg %p135
    %p142 = scmp.eq.s32.totalorder %s11, 1
    %p143 = por %p141, %p142
    %p144 = scmp.ne.s32.totalorder %s136, %s139
    %p145 = scmp.eq.s32.totalorder %s11, 0
    %p146 = por %p144, %p145
    %p147 = scmp.ne.s32.totalorder %s136, %s139
    %p148 = scmp.eq.s32.totalorder %s16, 1
    %p149 = por %p147, %p148
    %p150 = scmp.ne.s32.totalorder %s139, %s140
    %p151 = scmp.eq.s32.totalorder %s16, 0
    %p152 = por %p150, %p151
    %p153 = scmp.ne.s32.totalorder %s139, %s140
    %p154 = scmp.eq.s32.totalorder %s17, 1
    %p155 = por %p153, %p154
    %p157 = scmp.ne.s32.totalorder %s140, %s156
    %p158 = scmp.eq.s32.totalorder %s17, 0
    %p159 = por %p157, %p158
    %p160 = scmp.le.s32.totalorder 1, %s11
    %p161 = scmp.lt.s32.totalorder %s11, 3
    %p162 = pnand %p160, %p161
    %p163 = pneg %p162
    // Predicated region
    $region9: #{causal_gin_forward.9} parent=5 // pred_check
      _
    $region10: #{causal_gin_forward.9} parent=5 // pred_check_branch
      %165 = sbr.rel (%p162) target = $region12
    $region11: #{causal_gin_forward.9} parent=5 // pred_region
      %s166 = ssub.s32 %s11, 1
      // Predicated region
      $region13: #{causal_gin_forward.9} parent=11 // pred_check
        %p167 = pneg %p84
      $region14: #{causal_gin_forward.9} parent=11 // pred_check_branch
        %169 = sbr.rel (%p167) target = $region16
      $region15: #{causal_gin_forward.9} parent=11 // pred_region
        _
      $region16: #{causal_gin_forward.9} parent=11 // pred_fallthru
        _
      // Predicated region
      $region17: #{causal_gin_forward.9} parent=11 // pred_check
        %p170 = pneg %p105
      $region18: #{causal_gin_forward.9} parent=11 // pred_check_branch
        %172 = sbr.rel (%p170) target = $region20
      $region19: #{causal_gin_forward.9} parent=11 // pred_region
        _
      $region20: #{causal_gin_forward.9} parent=11 // pred_fallthru
        _
      // Predicated region
      $region21: #{causal_gin_forward.9} parent=11 // pred_check
        %p173 = pneg %p126
      $region22: #{causal_gin_forward.9} parent=11 // pred_check_branch
        %175 = sbr.rel (%p173) target = $region24
      $region23: #{causal_gin_forward.9} parent=11 // pred_region
        _
      $region24: #{causal_gin_forward.9} parent=11 // pred_fallthru
        _
    $region12: #{causal_gin_forward.9} parent=5 // pred_fallthru
      _
    %p176 = scmp.lt.s32.totalorder %s11, 2
    // Predicated region
    $region25: #{causal_gin_forward.9} parent=5 // pred_check
      %p177 = pneg %p176
    $region26: #{causal_gin_forward.9} parent=5 // pred_check_branch
      %179 = sbr.rel (%p177) target = $region28
    $region27: #{causal_gin_forward.9} parent=5 // pred_region
      // Predicated region
      $region29: #{causal_gin_forward.9} parent=27 // pred_check
        %p180 = pneg %p31
      $region30: #{causal_gin_forward.9} parent=27 // pred_check_branch
        %182 = sbr.rel (%p180) target = $region32
      $region31: #{causal_gin_forward.9} parent=27 // pred_region
        %p183 = scmp.lt.s32.totalorder %s11, 1
        %s184 = scalar_select %p183, %s11, 1
        %s185 = smul.addr %s184, 16
        %s186 = smul.addr %s185, 4
        %s187 = scalar_lea.vmem %s0, %s186
      $region32: #{causal_gin_forward.9} parent=27 // pred_fallthru
        _
      // Predicated region
      $region33: #{causal_gin_forward.9} parent=27 // pred_check
        %p188 = pneg %p57
      $region34: #{causal_gin_forward.9} parent=27 // pred_check_branch
        %190 = sbr.rel (%p188) target = $region36
      $region35: #{causal_gin_forward.9} parent=27 // pred_region
        %p191 = scmp.lt.s32.totalorder %s11, 1
        %s192 = scalar_select %p191, %s11, 1
        %s193 = smul.addr %s192, 16
        %s194 = smul.addr %s193, 4
        %s195 = scalar_lea.vmem %s1, %s194
      $region36: #{causal_gin_forward.9} parent=27 // pred_fallthru
        _
    $region28: #{causal_gin_forward.9} parent=5 // pred_fallthru
      _
    %p196 = scmp.le.s32.totalorder 1, %s11
    %p197 = scmp.lt.s32.totalorder %s11, 3
    %p198 = pnand %p196, %p197
    %p199 = pneg %p198
    // Predicated region
    $region37: #{causal_gin_forward.9} parent=5 // pred_check
      _
    $region38: #{causal_gin_forward.9} parent=5 // pred_check_branch
      %201 = sbr.rel (%p198) target = $region40
    $region39: #{causal_gin_forward.9} parent=5 // pred_region
      %s202 = ssub.s32 %s11, 1
      %p203 = scmp.lt.s32.totalorder %s16, 1
      %s204 = scalar_select %p203, %s16, 1
      %s205 = smul.addr %s204, 16
      %s206 = smul.addr %s205, 4
      %s207 = scalar_lea.vmem %s0, %s206
      %p208 = pneg %p37
      %p209 = pneg %p34
      %p210 = scmp.lt.s32.totalorder %s16, 1
      %s211 = scalar_select %p210, %s16, 1
      %s212 = smul.addr %s211, 16
      %s213 = smul.addr %s212, 4
      %s214 = scalar_lea.vmem %s1, %s213
      %p215 = pneg %p63
      %p216 = pneg %p60
      %p217 = pneg %p84
      %p218 = pneg %p81
      %p219 = pneg %p105
      %p220 = pneg %p102
      %p221 = pneg %p126
      %p222 = pneg %p123
      %p223 = pneg %p152
      %p224 = pneg %p149
      %p225 = scmp.lt.s32.totalorder %s16, 1
      %s226 = scalar_select %p225, %s16, 1
      %s227 = smul.addr %s226, 16
      %s228 = smul.addr %s227, 4
      %s229 = scalar_lea.vmem %s5, %s228
      %p230 = scmp.lt.s32.totalorder %s16, 1
      %s231 = scalar_select %p230, %s16, 1
      %s232 = smul.addr %s231, 16
      %s233 = smul.addr %s232, 4
      %s234 = scalar_lea.vmem %s0, %s233
      %p235 = scmp.lt.s32.totalorder %s16, 1
      %s236 = scalar_select %p235, %s16, 1
      %s237 = smul.addr %s236, 16
      %s238 = smul.addr %s237, 4
      %s239 = scalar_lea.vmem %s1, %s238
      %p240 = scmp.lt.s32.totalorder %s16, 1
      %s241 = scalar_select %p240, %s16, 1
      %s242 = smul.addr %s241, 16
      %s243 = smul.addr %s242, 4
      %s244 = scalar_lea.vmem %s5, %s243
      %v245 = vld [vmem:[%s239] sm:$0xf]
      %v246 = vld [vmem:[%s239 + $0x4] sm:$0xf]
      %v247 = vld [vmem:[%s239 + $0x8] sm:$0xf]
      %v248 = vld [vmem:[%s239 + $0xc] sm:$0xf]
      %v249 = vld [vmem:[%s239 + $0x10] sm:$0xf]
      %v250 = vld [vmem:[%s239 + $0x14] sm:$0xf]
      %v251 = vld [vmem:[%s239 + $0x18] sm:$0xf]
      %v252 = vld [vmem:[%s239 + $0x1c] sm:$0xf]
      %v253 = vld [vmem:[%s239 + $0x20] sm:$0xf]
      %v254 = vld [vmem:[%s239 + $0x24] sm:$0xf]
      %v255 = vld [vmem:[%s239 + $0x28] sm:$0xf]
      %v256 = vld [vmem:[%s239 + $0x2c] sm:$0xf]
      %v257 = vld [vmem:[%s239 + $0x30] sm:$0xf]
      %v258 = vld [vmem:[%s239 + $0x34] sm:$0xf]
      %v259 = vld [vmem:[%s239 + $0x38] sm:$0xf]
      %v260 = vld [vmem:[%s239 + $0x3c] sm:$0xf]
      %v261 = vld [vmem:[%s3] sm:$0xf]
      %v262 = vld [vmem:[%s3 + $0x4] sm:$0xf]
      %v263 = vld [vmem:[%s3 + $0x8] sm:$0xf]
      %v264 = vld [vmem:[%s3 + $0xc] sm:$0xf]
      %v265 = vld [vmem:[%s3 + $0x10] sm:$0xf]
      %v266 = vld [vmem:[%s3 + $0x14] sm:$0xf]
      %v267 = vld [vmem:[%s3 + $0x18] sm:$0xf]
      %v268 = vld [vmem:[%s3 + $0x1c] sm:$0xf]
      %v269 = vld [vmem:[%s3 + $0x20] sm:$0xf]
      %v270 = vld [vmem:[%s3 + $0x24] sm:$0xf]
      %v271 = vld [vmem:[%s3 + $0x28] sm:$0xf]
      %v272 = vld [vmem:[%s3 + $0x2c] sm:$0xf]
      %v273 = vld [vmem:[%s3 + $0x30] sm:$0xf]
      %v274 = vld [vmem:[%s3 + $0x34] sm:$0xf]
      %v275 = vld [vmem:[%s3 + $0x38] sm:$0xf]
      %v276 = vld [vmem:[%s3 + $0x3c] sm:$0xf]
      %v293 = vunpack.c.l.b16 %v245
      %v294 = vunpack.c.l.b16 %v246
      %v295 = vunpack.c.l.b16 %v247
      %v296 = vunpack.c.l.b16 %v248
      %v297 = vunpack.c.l.b16 %v249
      %v298 = vunpack.c.l.b16 %v250
      %v299 = vunpack.c.l.b16 %v251
      %v300 = vunpack.c.l.b16 %v252
      %v301 = vunpack.c.l.b16 %v253
      %v302 = vunpack.c.l.b16 %v254
      %v303 = vunpack.c.l.b16 %v255
      %v304 = vunpack.c.l.b16 %v256
      %v305 = vunpack.c.l.b16 %v257
      %v306 = vunpack.c.l.b16 %v258
      %v307 = vunpack.c.l.b16 %v259
      %v308 = vunpack.c.l.b16 %v260
      %v309 = vpack.c.b16 %v294, %v293
      %v310 = vpack.c.b16 %v296, %v295
      %v311 = vpack.c.b16 %v298, %v297
      %v312 = vpack.c.b16 %v300, %v299
      %v313 = vpack.c.b16 %v302, %v301
      %v314 = vpack.c.b16 %v304, %v303
      %v315 = vpack.c.b16 %v306, %v305
      %v316 = vpack.c.b16 %v308, %v307
      %v341 = vunpack.c.l.b16 %v261
      %v342 = vunpack.c.l.b16 %v262
      %v343 = vunpack.c.l.b16 %v263
      %v344 = vunpack.c.l.b16 %v264
      %v345 = vunpack.c.l.b16 %v265
      %v346 = vunpack.c.l.b16 %v266
      %v347 = vunpack.c.l.b16 %v267
      %v348 = vunpack.c.l.b16 %v268
      %v349 = vunpack.c.l.b16 %v269
      %v350 = vunpack.c.l.b16 %v270
      %v351 = vunpack.c.l.b16 %v271
      %v352 = vunpack.c.l.b16 %v272
      %v353 = vunpack.c.l.b16 %v273
      %v354 = vunpack.c.l.b16 %v274
      %v355 = vunpack.c.l.b16 %v275
      %v356 = vunpack.c.l.b16 %v276
      %v357 = vpack.c.b16 %v342, %v341
      %v358 = vpack.c.b16 %v344, %v343
      %v359 = vpack.c.b16 %v346, %v345
      %v360 = vpack.c.b16 %v348, %v347
      %v361 = vpack.c.b16 %v350, %v349
      %v362 = vpack.c.b16 %v352, %v351
      %v363 = vpack.c.b16 %v354, %v353
      %v364 = vpack.c.b16 %v356, %v355
      %373 = vmatpush.bf16.msra.mxu0 %v364
      %374 = vmatpush.bf16.msra.mxu0 %v363
      %375 = vmatpush.bf16.msra.mxu0 %v362
      %376 = vmatpush.bf16.msra.mxu0 %v361
      %377 = vmatpush.bf16.msra.mxu0 %v360
      %378 = vmatpush.bf16.msra.mxu0 %v359
      %379 = vmatpush.bf16.msra.mxu0 %v358
      %380 = vmatpush.bf16.msra.mxu0 %v357
      %381 = vmatmul.bf16.gmra.mxu0 %v309
      %v382 = vpop.f32.mrf.mxu0
      %v383 = vadd.f32 0.0, %v382
      %v384 = vpop.f32.mrf.mxu0
      %v385 = vadd.f32 0.0, %v384
      %386 = vmatmul.bf16.gmra.mxu0 %v310
      %v387 = vpop.f32.mrf.mxu0
      %v388 = vadd.f32 0.0, %v387
      %v389 = vpop.f32.mrf.mxu0
      %v390 = vadd.f32 0.0, %v389
      %391 = vmatmul.bf16.gmra.mxu0 %v311
      %v392 = vpop.f32.mrf.mxu0
      %v393 = vadd.f32 0.0, %v392
      %v394 = vpop.f32.mrf.mxu0
      %v395 = vadd.f32 0.0, %v394
      %396 = vmatmul.bf16.gmra.mxu0 %v312
      %v397 = vpop.f32.mrf.mxu0
      %v398 = vadd.f32 0.0, %v397
      %v399 = vpop.f32.mrf.mxu0
      %v400 = vadd.f32 0.0, %v399
      %401 = vmatmul.bf16.gmra.mxu0 %v313
      %v402 = vpop.f32.mrf.mxu0
      %v403 = vadd.f32 0.0, %v402
      %v404 = vpop.f32.mrf.mxu0
      %v405 = vadd.f32 0.0, %v404
      %406 = vmatmul.bf16.gmra.mxu0 %v314
      %v407 = vpop.f32.mrf.mxu0
      %v408 = vadd.f32 0.0, %v407
      %v409 = vpop.f32.mrf.mxu0
      %v410 = vadd.f32 0.0, %v409
      %411 = vmatmul.bf16.gmra.mxu0 %v315
      %v412 = vpop.f32.mrf.mxu0
      %v413 = vadd.f32 0.0, %v412
      %v414 = vpop.f32.mrf.mxu0
      %v415 = vadd.f32 0.0, %v414
      %416 = vmatmul.bf16.gmra.mxu0 %v316
      %v417 = vpop.f32.mrf.mxu0
      %v418 = vadd.f32 0.0, %v417
      %v419 = vpop.f32.mrf.mxu0
      %v420 = vadd.f32 0.0, %v419
      %421 = vdwg.mxu0
      %v422 = vld [vmem:[%s234] sm:$0xf]
      %v423 = vld [vmem:[%s234 + $0x4] sm:$0xf]
      %v424 = vld [vmem:[%s234 + $0x8] sm:$0xf]
      %v425 = vld [vmem:[%s234 + $0xc] sm:$0xf]
      %v426 = vld [vmem:[%s234 + $0x10] sm:$0xf]
      %v427 = vld [vmem:[%s234 + $0x14] sm:$0xf]
      %v428 = vld [vmem:[%s234 + $0x18] sm:$0xf]
      %v429 = vld [vmem:[%s234 + $0x1c] sm:$0xf]
      %v430 = vld [vmem:[%s234 + $0x20] sm:$0xf]
      %v431 = vld [vmem:[%s234 + $0x24] sm:$0xf]
      %v432 = vld [vmem:[%s234 + $0x28] sm:$0xf]
      %v433 = vld [vmem:[%s234 + $0x2c] sm:$0xf]
      %v434 = vld [vmem:[%s234 + $0x30] sm:$0xf]
      %v435 = vld [vmem:[%s234 + $0x34] sm:$0xf]
      %v436 = vld [vmem:[%s234 + $0x38] sm:$0xf]
      %v437 = vld [vmem:[%s234 + $0x3c] sm:$0xf]
      %v438 = vpack.c.bf16 %v385, %v383
      %v439 = vpack.c.bf16 %v390, %v388
      %v440 = vpack.c.bf16 %v395, %v393
      %v441 = vpack.c.bf16 %v400, %v398
      %v442 = vpack.c.bf16 %v405, %v403
      %v443 = vpack.c.bf16 %v410, %v408
      %v444 = vpack.c.bf16 %v415, %v413
      %v445 = vpack.c.bf16 %v420, %v418
      %v446 = vld [vmem:[%s4] sm:$0x1]
      %v448 = vperm.slane %v446, 0
      %v466 = vunpack.c.l.b16 %v422
      %v467 = vunpack.c.l.b16 %v423
      %v468 = vunpack.c.l.b16 %v424
      %v469 = vunpack.c.l.b16 %v425
      %v470 = vunpack.c.l.b16 %v426
      %v471 = vunpack.c.l.b16 %v427
      %v472 = vunpack.c.l.b16 %v428
      %v473 = vunpack.c.l.b16 %v429
      %v474 = vunpack.c.l.b16 %v430
      %v475 = vunpack.c.l.b16 %v431
      %v476 = vunpack.c.l.b16 %v432
      %v477 = vunpack.c.l.b16 %v433
      %v478 = vunpack.c.l.b16 %v434
      %v479 = vunpack.c.l.b16 %v435
      %v480 = vunpack.c.l.b16 %v436
      %v481 = vunpack.c.l.b16 %v437
      %v482 = vpack.c.b16 %v467, %v466
      %v483 = vpack.c.b16 %v469, %v468
      %v484 = vpack.c.b16 %v471, %v470
      %v485 = vpack.c.b16 %v473, %v472
      %v486 = vpack.c.b16 %v475, %v474
      %v487 = vpack.c.b16 %v477, %v476
      %v488 = vpack.c.b16 %v479, %v478
      %v489 = vpack.c.b16 %v481, %v480
      %498 = vmatpush.bf16.msra.mxu0 %v445
      %499 = vmatpush.bf16.msra.mxu0 %v444
      %500 = vmatpush.bf16.msra.mxu0 %v443
      %501 = vmatpush.bf16.msra.mxu0 %v442
      %502 = vmatpush.bf16.msra.mxu0 %v441
      %503 = vmatpush.bf16.msra.mxu0 %v440
      %504 = vmatpush.bf16.msra.mxu0 %v439
      %505 = vmatpush.bf16.msra.mxu0 %v438
      %506 = vmatmul.bf16.gmra.mxu0 %v482
      %v507 = vpop.f32.mrf.mxu0
      %v508 = vadd.f32 %v448, %v507
      %v509 = vpop.f32.mrf.mxu0
      %v510 = vadd.f32 %v448, %v509
      %511 = vmatmul.bf16.gmra.mxu0 %v483
      %v512 = vpop.f32.mrf.mxu0
      %v513 = vadd.f32 %v448, %v512
      %v514 = vpop.f32.mrf.mxu0
      %v515 = vadd.f32 %v448, %v514
      %516 = vmatmul.bf16.gmra.mxu0 %v484
      %v517 = vpop.f32.mrf.mxu0
      %v518 = vadd.f32 %v448, %v517
      %v519 = vpop.f32.mrf.mxu0
      %v520 = vadd.f32 %v448, %v519
      %521 = vmatmul.bf16.gmra.mxu0 %v485
      %v522 = vpop.f32.mrf.mxu0
      %v523 = vadd.f32 %v448, %v522
      %v524 = vpop.f32.mrf.mxu0
      %v525 = vadd.f32 %v448, %v524
      %526 = vmatmul.bf16.gmra.mxu0 %v486
      %v527 = vpop.f32.mrf.mxu0
      %v528 = vadd.f32 %v448, %v527
      %v529 = vpop.f32.mrf.mxu0
      %v530 = vadd.f32 %v448, %v529
      %531 = vmatmul.bf16.gmra.mxu0 %v487
      %v532 = vpop.f32.mrf.mxu0
      %v533 = vadd.f32 %v448, %v532
      %v534 = vpop.f32.mrf.mxu0
      %v535 = vadd.f32 %v448, %v534
      %536 = vmatmul.bf16.gmra.mxu0 %v488
      %v537 = vpop.f32.mrf.mxu0
      %v538 = vadd.f32 %v448, %v537
      %v539 = vpop.f32.mrf.mxu0
      %v540 = vadd.f32 %v448, %v539
      %541 = vmatmul.bf16.gmra.mxu0 %v489
      %v542 = vpop.f32.mrf.mxu0
      %v543 = vadd.f32 %v448, %v542
      %v544 = vpop.f32.mrf.mxu0
      %v545 = vadd.f32 %v448, %v544
      %546 = vdwg.mxu0
      %v547 = vmax.f32 %v508, 0.0
      %v548 = vmax.f32 %v510, 0.0
      %v549 = vmax.f32 %v513, 0.0
      %v550 = vmax.f32 %v515, 0.0
      %v551 = vmax.f32 %v518, 0.0
      %v552 = vmax.f32 %v520, 0.0
      %v553 = vmax.f32 %v523, 0.0
      %v554 = vmax.f32 %v525, 0.0
      %v555 = vmax.f32 %v528, 0.0
      %v556 = vmax.f32 %v530, 0.0
      %v557 = vmax.f32 %v533, 0.0
      %v558 = vmax.f32 %v535, 0.0
      %v559 = vmax.f32 %v538, 0.0
      %v560 = vmax.f32 %v540, 0.0
      %v561 = vmax.f32 %v543, 0.0
      %v562 = vmax.f32 %v545, 0.0
      %v563 = vld [vmem:[%s2] sm:$0xff]
      %v564 = vld [vmem:[%s2 + $0x8] sm:$0xff]
      %v565 = vld [vmem:[%s2 + $0x10] sm:$0xff]
      %v566 = vld [vmem:[%s2 + $0x18] sm:$0xff]
      %v567 = vld [vmem:[%s2 + $0x20] sm:$0xff]
      %v568 = vld [vmem:[%s2 + $0x28] sm:$0xff]
      %v569 = vld [vmem:[%s2 + $0x30] sm:$0xff]
      %v570 = vld [vmem:[%s2 + $0x38] sm:$0xff]
      %v571 = vld [vmem:[%s2 + $0x40] sm:$0xff]
      %v572 = vld [vmem:[%s2 + $0x48] sm:$0xff]
      %v573 = vld [vmem:[%s2 + $0x50] sm:$0xff]
      %v574 = vld [vmem:[%s2 + $0x58] sm:$0xff]
      %v575 = vld [vmem:[%s2 + $0x60] sm:$0xff]
      %v576 = vld [vmem:[%s2 + $0x68] sm:$0xff]
      %v577 = vld [vmem:[%s2 + $0x70] sm:$0xff]
      %v578 = vld [vmem:[%s2 + $0x78] sm:$0xff]
      %580 = vset.pattern.permute.xlu0 0
      %581 = vperm.xlu0 %580, %v563
      %v582 = vpop.permute.xlu0 %581
      %585 = vset.pattern.permute.xlu0 0
      %586 = vperm.xlu0 %585, %v564
      %v587 = vpop.permute.xlu0 %586
      %590 = vset.pattern.permute.xlu0 0
      %591 = vperm.xlu0 %590, %v565
      %v592 = vpop.permute.xlu0 %591
      %595 = vset.pattern.permute.xlu0 0
      %596 = vperm.xlu0 %595, %v566
      %v597 = vpop.permute.xlu0 %596
      %600 = vset.pattern.permute.xlu0 0
      %601 = vperm.xlu0 %600, %v567
      %v602 = vpop.permute.xlu0 %601
      %605 = vset.pattern.permute.xlu0 0
      %606 = vperm.xlu0 %605, %v568
      %v607 = vpop.permute.xlu0 %606
      %610 = vset.pattern.permute.xlu0 0
      %611 = vperm.xlu0 %610, %v569
      %v612 = vpop.permute.xlu0 %611
      %615 = vset.pattern.permute.xlu0 0
      %616 = vperm.xlu0 %615, %v570
      %v617 = vpop.permute.xlu0 %616
      %620 = vset.pattern.permute.xlu0 0
      %621 = vperm.xlu0 %620, %v571
      %v622 = vpop.permute.xlu0 %621
      %625 = vset.pattern.permute.xlu0 0
      %626 = vperm.xlu0 %625, %v572
      %v627 = vpop.permute.xlu0 %626
      %630 = vset.pattern.permute.xlu0 0
      %631 = vperm.xlu0 %630, %v573
      %v632 = vpop.permute.xlu0 %631
      %635 = vset.pattern.permute.xlu0 0
      %636 = vperm.xlu0 %635, %v574
      %v637 = vpop.permute.xlu0 %636
      %640 = vset.pattern.permute.xlu0 0
      %641 = vperm.xlu0 %640, %v575
      %v642 = vpop.permute.xlu0 %641
      %645 = vset.pattern.permute.xlu0 0
      %646 = vperm.xlu0 %645, %v576
      %v647 = vpop.permute.xlu0 %646
      %650 = vset.pattern.permute.xlu0 0
      %651 = vperm.xlu0 %650, %v577
      %v652 = vpop.permute.xlu0 %651
      %655 = vset.pattern.permute.xlu0 0
      %656 = vperm.xlu0 %655, %v578
      %v657 = vpop.permute.xlu0 %656
      %v659 = vmul.f32 %v547, %v582
      %v660 = vmul.f32 %v548, %v587
      %v661 = vmul.f32 %v549, %v592
      %v662 = vmul.f32 %v550, %v597
      %v663 = vmul.f32 %v551, %v602
      %v664 = vmul.f32 %v552, %v607
      %v665 = vmul.f32 %v553, %v612
      %v666 = vmul.f32 %v554, %v617
      %v667 = vmul.f32 %v555, %v622
      %v668 = vmul.f32 %v556, %v627
      %v669 = vmul.f32 %v557, %v632
      %v670 = vmul.f32 %v558, %v637
      %v671 = vmul.f32 %v559, %v642
      %v672 = vmul.f32 %v560, %v647
      %v673 = vmul.f32 %v561, %v652
      %v674 = vmul.f32 %v562, %v657
      %v675 = vpack.c.bf16 %v659, %v659
      %v676 = vpack.c.bf16 %v660, %v660
      %v677 = vpack.c.bf16 %v661, %v661
      %v678 = vpack.c.bf16 %v662, %v662
      %v679 = vpack.c.bf16 %v663, %v663
      %v680 = vpack.c.bf16 %v664, %v664
      %v681 = vpack.c.bf16 %v665, %v665
      %v682 = vpack.c.bf16 %v666, %v666
      %v683 = vpack.c.bf16 %v667, %v667
      %v684 = vpack.c.bf16 %v668, %v668
      %v685 = vpack.c.bf16 %v669, %v669
      %v686 = vpack.c.bf16 %v670, %v670
      %v687 = vpack.c.bf16 %v671, %v671
      %v688 = vpack.c.bf16 %v672, %v672
      %v689 = vpack.c.bf16 %v673, %v673
      %v690 = vpack.c.bf16 %v674, %v674
      %691 = vst [vmem:[%s244] sm:$0xf] %v675
      %692 = vst [vmem:[%s244 + $0x4] sm:$0xf] %v676
      %693 = vst [vmem:[%s244 + $0x8] sm:$0xf] %v677
      %694 = vst [vmem:[%s244 + $0xc] sm:$0xf] %v678
      %695 = vst [vmem:[%s244 + $0x10] sm:$0xf] %v679
      %696 = vst [vmem:[%s244 + $0x14] sm:$0xf] %v680
      %697 = vst [vmem:[%s244 + $0x18] sm:$0xf] %v681
      %698 = vst [vmem:[%s244 + $0x1c] sm:$0xf] %v682
      %699 = vst [vmem:[%s244 + $0x20] sm:$0xf] %v683
      %700 = vst [vmem:[%s244 + $0x24] sm:$0xf] %v684
      %701 = vst [vmem:[%s244 + $0x28] sm:$0xf] %v685
      %702 = vst [vmem:[%s244 + $0x2c] sm:$0xf] %v686
      %703 = vst [vmem:[%s244 + $0x30] sm:$0xf] %v687
      %704 = vst [vmem:[%s244 + $0x34] sm:$0xf] %v688
      %705 = vst [vmem:[%s244 + $0x38] sm:$0xf] %v689
      %706 = vst [vmem:[%s244 + $0x3c] sm:$0xf] %v690
      %p707 = scmp.lt.s32.totalorder %s16, 1
      %s708 = scalar_select %p707, %s16, 1
      %s709 = smul.addr %s708, 16
      %s710 = smul.addr %s709, 4
      %s711 = scalar_lea.vmem %s5, %s710
      // Predicated region
      $region41: #{causal_gin_forward.9} parent=39 // pred_check
        %p712 = pneg %p149
      $region42: #{causal_gin_forward.9} parent=39 // pred_check_branch
        %714 = sbr.rel (%p712) target = $region44
      $region43: #{causal_gin_forward.9} parent=39 // pred_region
        _
      $region44: #{causal_gin_forward.9} parent=39 // pred_fallthru
        _
    $region40: #{causal_gin_forward.9} parent=5 // pred_fallthru
      _
    %p715 = scmp.le.s32.totalorder 2, %s11
    // Predicated region
    $region45: #{causal_gin_forward.9} parent=5 // pred_check
      %p716 = pneg %p715
    $region46: #{causal_gin_forward.9} parent=5 // pred_check_branch
      %718 = sbr.rel (%p716) target = $region48
    $region47: #{causal_gin_forward.9} parent=5 // pred_region
      %s719 = ssub.s32 %s11, 2
      // Predicated region
      $region49: #{causal_gin_forward.9} parent=47 // pred_check
        %p720 = pneg %p155
      $region50: #{causal_gin_forward.9} parent=47 // pred_check_branch
        %722 = sbr.rel (%p720) target = $region52
      $region51: #{causal_gin_forward.9} parent=47 // pred_region
        %p723 = scmp.lt.s32.totalorder %s17, 1
        %s724 = scalar_select %p723, %s17, 1
        %s725 = smul.addr %s724, 16
        %s726 = smul.addr %s725, 4
        %s727 = scalar_lea.vmem %s5, %s726
      $region52: #{causal_gin_forward.9} parent=47 // pred_fallthru
        _
    $region48: #{causal_gin_forward.9} parent=5 // pred_fallthru
      _
  $region6: #{causal_gin_forward.9} parent=0 // loop_footer
    %s15 = sadd.s32 1, %s11
  $region7: #{causal_gin_forward.9} parent=0 // loop_footer_branch
    %10 = sbr.rel target = $region3
  $region8: #{causal_gin_forward.9} parent=0 // loop_exit
    _

// kernel: causal_gin_forward.10
$region0: #{causal_gin_forward.10}
  #allocation0 [shape = 'u32[]', space=smem, size = 0x4, offset = 0x4, fixed_abs, tag = 'smem constant byte address 0x4 - core index']
  #allocation1 [shape = 'u32[72,128]{1,0:T(1,128)}', space=vmem, size = 0x9000, scoped, tag = 'internal scratch']
  #allocation2 [shape = 'bf16[128,384]{1,0:T(8,128)(2,1)}', space=vmem, size = 0x18000, scoped, tag = 'scratch operand']
  %s0 = inlined_call_operand.vmem [shape: bf16[8,128], index: 0, kind: input, shape index: {}]
  %s1 = inlined_call_operand.vmem [shape: bf16[128,128], index: 1, kind: input, shape index: {}]
  %s2 = inlined_call_operand.vmem [shape: bf16[2,128,128], index: 2, kind: input, shape index: {}]
  %s3 = inlined_call_operand.vmem [shape: f32[8,384], index: 3, kind: output, shape index: {}]
  %s4 = sld [smem:[#allocation0]]
  $region22: #{causal_gin_forward.10} parent=0
    _
  %s6 = ssub.s32 1, %s4
  %s7 = scalar_select 0, %s6, %s4
  // Predicated region
  $region2: #{causal_gin_forward.10} parent=0 // pred_check
    _
  $region3: #{causal_gin_forward.10} parent=0 // pred_check_branch
    %9 = sbr.rel (0) target = $region5
  $region4: #{causal_gin_forward.10} parent=0 // pred_region
    _
  $region5: #{causal_gin_forward.10} parent=0 // pred_fallthru
    _
  // Predicated region
  $region6: #{causal_gin_forward.10} parent=0 // pred_check
    _
  $region7: #{causal_gin_forward.10} parent=0 // pred_check_branch
    %11 = sbr.rel (0) target = $region9
  $region8: #{causal_gin_forward.10} parent=0 // pred_region
    _
  $region9: #{causal_gin_forward.10} parent=0 // pred_fallthru
    _
  // Predicated region
  $region10: #{causal_gin_forward.10} parent=0 // pred_check
    _
  $region11: #{causal_gin_forward.10} parent=0 // pred_check_branch
    %13 = sbr.rel (0) target = $region13
  $region12: #{causal_gin_forward.10} parent=0 // pred_region
    _
  $region13: #{causal_gin_forward.10} parent=0 // pred_fallthru
    _
  %v14 = vld [vmem:[%s1] sm:$0xf]
  %v15 = vld [vmem:[%s1 + $0x4] sm:$0xf]
  %v16 = vld [vmem:[%s1 + $0x8] sm:$0xf]
  %v17 = vld [vmem:[%s1 + $0xc] sm:$0xf]
  %v18 = vld [vmem:[%s1 + $0x10] sm:$0xf]
  %v19 = vld [vmem:[%s1 + $0x14] sm:$0xf]
  %v20 = vld [vmem:[%s1 + $0x18] sm:$0xf]
  %v21 = vld [vmem:[%s1 + $0x1c] sm:$0xf]
  %v22 = vld [vmem:[%s1 + $0x20] sm:$0xf]
  %v23 = vld [vmem:[%s1 + $0x24] sm:$0xf]
  %v24 = vld [vmem:[%s1 + $0x28] sm:$0xf]
  %v25 = vld [vmem:[%s1 + $0x2c] sm:$0xf]
  %v26 = vld [vmem:[%s1 + $0x30] sm:$0xf]
  %v27 = vld [vmem:[%s1 + $0x34] sm:$0xf]
  %v28 = vld [vmem:[%s1 + $0x38] sm:$0xf]
  %v29 = vld [vmem:[%s1 + $0x3c] sm:$0xf]
  %30 = vst [vmem:[#allocation2] sm:$0xf] %v14
  %31 = vst [vmem:[#allocation2 + $0xc] sm:$0xf] %v15
  %32 = vst [vmem:[#allocation2 + $0x18] sm:$0xf] %v16
  %33 = vst [vmem:[#allocation2 + $0x24] sm:$0xf] %v17
  %34 = vst [vmem:[#allocation2 + $0x30] sm:$0xf] %v18
  %35 = vst [vmem:[#allocation2 + $0x3c] sm:$0xf] %v19
  %36 = vst [vmem:[#allocation2 + $0x48] sm:$0xf] %v20
  %37 = vst [vmem:[#allocation2 + $0x54] sm:$0xf] %v21
  %38 = vst [vmem:[#allocation2 + $0x60] sm:$0xf] %v22
  %39 = vst [vmem:[#allocation2 + $0x6c] sm:$0xf] %v23
  %40 = vst [vmem:[#allocation2 + $0x78] sm:$0xf] %v24
  %41 = vst [vmem:[#allocation2 + $0x84] sm:$0xf] %v25
  %42 = vst [vmem:[#allocation2 + $0x90] sm:$0xf] %v26
  %43 = vst [vmem:[#allocation2 + $0x9c] sm:$0xf] %v27
  %44 = vst [vmem:[#allocation2 + $0xa8] sm:$0xf] %v28
  %45 = vst [vmem:[#allocation2 + $0xb4] sm:$0xf] %v29
  %v46 = vld [vmem:[%s2] sm:$0xf]
  %v47 = vld [vmem:[%s2 + $0x4] sm:$0xf]
  %v48 = vld [vmem:[%s2 + $0x8] sm:$0xf]
  %v49 = vld [vmem:[%s2 + $0xc] sm:$0xf]
  %v50 = vld [vmem:[%s2 + $0x10] sm:$0xf]
  %v51 = vld [vmem:[%s2 + $0x14] sm:$0xf]
  %v52 = vld [vmem:[%s2 + $0x18] sm:$0xf]
  %v53 = vld [vmem:[%s2 + $0x1c] sm:$0xf]
  %v54 = vld [vmem:[%s2 + $0x20] sm:$0xf]
  %v55 = vld [vmem:[%s2 + $0x24] sm:$0xf]
  %v56 = vld [vmem:[%s2 + $0x28] sm:$0xf]
  %v57 = vld [vmem:[%s2 + $0x2c] sm:$0xf]
  %v58 = vld [vmem:[%s2 + $0x30] sm:$0xf]
  %v59 = vld [vmem:[%s2 + $0x34] sm:$0xf]
  %v60 = vld [vmem:[%s2 + $0x38] sm:$0xf]
  %v61 = vld [vmem:[%s2 + $0x3c] sm:$0xf]
  %62 = vst [vmem:[#allocation2 + $0x4] sm:$0xf] %v46
  %63 = vst [vmem:[#allocation2 + $0x10] sm:$0xf] %v47
  %64 = vst [vmem:[#allocation2 + $0x1c] sm:$0xf] %v48
  %65 = vst [vmem:[#allocation2 + $0x28] sm:$0xf] %v49
  %66 = vst [vmem:[#allocation2 + $0x34] sm:$0xf] %v50
  %67 = vst [vmem:[#allocation2 + $0x40] sm:$0xf] %v51
  %68 = vst [vmem:[#allocation2 + $0x4c] sm:$0xf] %v52
  %69 = vst [vmem:[#allocation2 + $0x58] sm:$0xf] %v53
  %70 = vst [vmem:[#allocation2 + $0x64] sm:$0xf] %v54
  %71 = vst [vmem:[#allocation2 + $0x70] sm:$0xf] %v55
  %72 = vst [vmem:[#allocation2 + $0x7c] sm:$0xf] %v56
  %73 = vst [vmem:[#allocation2 + $0x88] sm:$0xf] %v57
  %74 = vst [vmem:[#allocation2 + $0x94] sm:$0xf] %v58
  %75 = vst [vmem:[#allocation2 + $0xa0] sm:$0xf] %v59
  %76 = vst [vmem:[#allocation2 + $0xac] sm:$0xf] %v60
  %77 = vst [vmem:[#allocation2 + $0xb8] sm:$0xf] %v61
  %s78 = scalar_lea.vmem %s2, 64
  %v79 = vld [vmem:[%s78] sm:$0xf]
  %v80 = vld [vmem:[%s78 + $0x4] sm:$0xf]
  %v81 = vld [vmem:[%s78 + $0x8] sm:$0xf]
  %v82 = vld [vmem:[%s78 + $0xc] sm:$0xf]
  %v83 = vld [vmem:[%s78 + $0x10] sm:$0xf]
  %v84 = vld [vmem:[%s78 + $0x14] sm:$0xf]
  %v85 = vld [vmem:[%s78 + $0x18] sm:$0xf]
  %v86 = vld [vmem:[%s78 + $0x1c] sm:$0xf]
  %v87 = vld [vmem:[%s78 + $0x20] sm:$0xf]
  %v88 = vld [vmem:[%s78 + $0x24] sm:$0xf]
  %v89 = vld [vmem:[%s78 + $0x28] sm:$0xf]
  %v90 = vld [vmem:[%s78 + $0x2c] sm:$0xf]
  %v91 = vld [vmem:[%s78 + $0x30] sm:$0xf]
  %v92 = vld [vmem:[%s78 + $0x34] sm:$0xf]
  %v93 = vld [vmem:[%s78 + $0x38] sm:$0xf]
  %v94 = vld [vmem:[%s78 + $0x3c] sm:$0xf]
  %95 = vst [vmem:[#allocation2 + $0x8] sm:$0xf] %v79
  %96 = vst [vmem:[#allocation2 + $0x14] sm:$0xf] %v80
  %97 = vst [vmem:[#allocation2 + $0x20] sm:$0xf] %v81
  %98 = vst [vmem:[#allocation2 + $0x2c] sm:$0xf] %v82
  %99 = vst [vmem:[#allocation2 + $0x38] sm:$0xf] %v83
  %100 = vst [vmem:[#allocation2 + $0x44] sm:$0xf] %v84
  %101 = vst [vmem:[#allocation2 + $0x50] sm:$0xf] %v85
  %102 = vst [vmem:[#allocation2 + $0x5c] sm:$0xf] %v86
  %103 = vst [vmem:[#allocation2 + $0x68] sm:$0xf] %v87
  %104 = vst [vmem:[#allocation2 + $0x74] sm:$0xf] %v88
  %105 = vst [vmem:[#allocation2 + $0x80] sm:$0xf] %v89
  %106 = vst [vmem:[#allocation2 + $0x8c] sm:$0xf] %v90
  %107 = vst [vmem:[#allocation2 + $0x98] sm:$0xf] %v91
  %108 = vst [vmem:[#allocation2 + $0xa4] sm:$0xf] %v92
  %109 = vst [vmem:[#allocation2 + $0xb0] sm:$0xf] %v93
  %110 = vst [vmem:[#allocation2 + $0xbc] sm:$0xf] %v94
  %v111 = vld [vmem:[%s0] sm:$0xf]
  %v112 = vld [vmem:[#allocation2] sm:$0xff]
  %v113 = vld [vmem:[#allocation2 + $0x8] sm:$0xf]
  %v114 = vld [vmem:[#allocation2 + $0xc] sm:$0xff]
  %v115 = vld [vmem:[#allocation2 + $0x14] sm:$0xf]
  %v116 = vld [vmem:[#allocation2 + $0x18] sm:$0xff]
  %v117 = vld [vmem:[#allocation2 + $0x20] sm:$0xf]
  %v118 = vld [vmem:[#allocation2 + $0x24] sm:$0xff]
  %v119 = vld [vmem:[#allocation2 + $0x2c] sm:$0xf]
  %v120 = vld [vmem:[#allocation2 + $0x30] sm:$0xff]
  %v121 = vld [vmem:[#allocation2 + $0x38] sm:$0xf]
  %v122 = vld [vmem:[#allocation2 + $0x3c] sm:$0xff]
  %v123 = vld [vmem:[#allocation2 + $0x44] sm:$0xf]
  %v124 = vld [vmem:[#allocation2 + $0x48] sm:$0xff]
  %v125 = vld [vmem:[#allocation2 + $0x50] sm:$0xf]
  %v126 = vld [vmem:[#allocation2 + $0x54] sm:$0xff]
  %v127 = vld [vmem:[#allocation2 + $0x5c] sm:$0xf]
  %v128 = vld [vmem:[#allocation2 + $0x60] sm:$0xff]
  %v129 = vld [vmem:[#allocation2 + $0x68] sm:$0xf]
  %v130 = vld [vmem:[#allocation2 + $0x6c] sm:$0xff]
  %v131 = vld [vmem:[#allocation2 + $0x74] sm:$0xf]
  %v132 = vld [vmem:[#allocation2 + $0x78] sm:$0xff]
  %v133 = vld [vmem:[#allocation2 + $0x80] sm:$0xf]
  %v134 = vld [vmem:[#allocation2 + $0x84] sm:$0xff]
  %v135 = vld [vmem:[#allocation2 + $0x8c] sm:$0xf]
  %v136 = vld [vmem:[#allocation2 + $0x90] sm:$0xff]
  %v137 = vld [vmem:[#allocation2 + $0x98] sm:$0xf]
  %v138 = vld [vmem:[#allocation2 + $0x9c] sm:$0xff]
  %v139 = vld [vmem:[#allocation2 + $0xa4] sm:$0xf]
  %v140 = vld [vmem:[#allocation2 + $0xa8] sm:$0xff]
  %v141 = vld [vmem:[#allocation2 + $0xb0] sm:$0xf]
  %v142 = vld [vmem:[#allocation2 + $0xb4] sm:$0xff]
  %v143 = vld [vmem:[#allocation2 + $0xbc] sm:$0xf]
  %v176 = vunpack.c.l.b16 %v112
  %v177 = vunpack.c.h.b16 %v112
  %v178 = vunpack.c.l.b16 %v113
  %v179 = vunpack.c.l.b16 %v114
  %v180 = vunpack.c.h.b16 %v114
  %v181 = vunpack.c.l.b16 %v115
  %v182 = vunpack.c.l.b16 %v116
  %v183 = vunpack.c.h.b16 %v116
  %v184 = vunpack.c.l.b16 %v117
  %v185 = vunpack.c.l.b16 %v118
  %v186 = vunpack.c.h.b16 %v118
  %v187 = vunpack.c.l.b16 %v119
  %v188 = vunpack.c.l.b16 %v120
  %v189 = vunpack.c.h.b16 %v120
  %v190 = vunpack.c.l.b16 %v121
  %v191 = vunpack.c.l.b16 %v122
  %v192 = vunpack.c.h.b16 %v122
  %v193 = vunpack.c.l.b16 %v123
  %v194 = vunpack.c.l.b16 %v124
  %v195 = vunpack.c.h.b16 %v124
  %v196 = vunpack.c.l.b16 %v125
  %v197 = vunpack.c.l.b16 %v126
  %v198 = vunpack.c.h.b16 %v126
  %v199 = vunpack.c.l.b16 %v127
  %v200 = vunpack.c.l.b16 %v128
  %v201 = vunpack.c.h.b16 %v128
  %v202 = vunpack.c.l.b16 %v129
  %v203 = vunpack.c.l.b16 %v130
  %v204 = vunpack.c.h.b16 %v130
  %v205 = vunpack.c.l.b16 %v131
  %v206 = vunpack.c.l.b16 %v132
  %v207 = vunpack.c.h.b16 %v132
  %v208 = vunpack.c.l.b16 %v133
  %v209 = vunpack.c.l.b16 %v134
  %v210 = vunpack.c.h.b16 %v134
  %v211 = vunpack.c.l.b16 %v135
  %v212 = vunpack.c.l.b16 %v136
  %v213 = vunpack.c.h.b16 %v136
  %v214 = vunpack.c.l.b16 %v137
  %v215 = vunpack.c.l.b16 %v138
  %v216 = vunpack.c.h.b16 %v138
  %v217 = vunpack.c.l.b16 %v139
  %v218 = vunpack.c.l.b16 %v140
  %v219 = vunpack.c.h.b16 %v140
  %v220 = vunpack.c.l.b16 %v141
  %v221 = vunpack.c.l.b16 %v142
  %v222 = vunpack.c.h.b16 %v142
  %v223 = vunpack.c.l.b16 %v143
  %v224 = vpack.c.b16 %v179, %v176
  %v225 = vpack.c.b16 %v180, %v177
  %v226 = vpack.c.b16 %v181, %v178
  %v227 = vpack.c.b16 %v185, %v182
  %v228 = vpack.c.b16 %v186, %v183
  %v229 = vpack.c.b16 %v187, %v184
  %v230 = vpack.c.b16 %v191, %v188
  %v231 = vpack.c.b16 %v192, %v189
  %v232 = vpack.c.b16 %v193, %v190
  %v233 = vpack.c.b16 %v197, %v194
  %v234 = vpack.c.b16 %v198, %v195
  %v235 = vpack.c.b16 %v199, %v196
  %v236 = vpack.c.b16 %v203, %v200
  %v237 = vpack.c.b16 %v204, %v201
  %v238 = vpack.c.b16 %v205, %v202
  %v239 = vpack.c.b16 %v209, %v206
  %v240 = vpack.c.b16 %v210, %v207
  %v241 = vpack.c.b16 %v211, %v208
  %v242 = vpack.c.b16 %v215, %v212
  %v243 = vpack.c.b16 %v216, %v213
  %v244 = vpack.c.b16 %v217, %v214
  %v245 = vpack.c.b16 %v221, %v218
  %v246 = vpack.c.b16 %v222, %v219
  %v247 = vpack.c.b16 %v223, %v220
  %272 = vmatpush.bf16.msra.mxu0 %v245
  %273 = vmatpush.bf16.msra.mxu0 %v242
  %274 = vmatpush.bf16.msra.mxu0 %v239
  %275 = vmatpush.bf16.msra.mxu0 %v236
  %276 = vmatpush.bf16.msra.mxu0 %v233
  %277 = vmatpush.bf16.msra.mxu0 %v230
  %278 = vmatpush.bf16.msra.mxu0 %v227
  %279 = vmatpush.bf16.msra.mxu0 %v224
  %280 = vmatmul.bf16.gmra.mxu0 %v111
  %v281 = vpop.f32.mrf.mxu0
  %v282 = vadd.f32 0.0, %v281
  %v283 = vpop.f32.mrf.mxu0
  %284 = vdwg.mxu0
  %285 = vmatpush.bf16.msra.mxu0 %v246
  %286 = vmatpush.bf16.msra.mxu0 %v243
  %287 = vmatpush.bf16.msra.mxu0 %v240
  %288 = vmatpush.bf16.msra.mxu0 %v237
  %289 = vmatpush.bf16.msra.mxu0 %v234
  %290 = vmatpush.bf16.msra.mxu0 %v231
  %291 = vmatpush.bf16.msra.mxu0 %v228
  %292 = vmatpush.bf16.msra.mxu0 %v225
  %293 = vmatmul.bf16.gmra.mxu0 %v111
  %v294 = vpop.f32.mrf.mxu0
  %v295 = vadd.f32 0.0, %v294
  %v296 = vpop.f32.mrf.mxu0
  %297 = vdwg.mxu0
  %298 = vmatpush.bf16.msra.mxu0 %v247
  %299 = vmatpush.bf16.msra.mxu0 %v244
  %300 = vmatpush.bf16.msra.mxu0 %v241
  %301 = vmatpush.bf16.msra.mxu0 %v238
  %302 = vmatpush.bf16.msra.mxu0 %v235
  %303 = vmatpush.bf16.msra.mxu0 %v232
  %304 = vmatpush.bf16.msra.mxu0 %v229
  %305 = vmatpush.bf16.msra.mxu0 %v226
  %306 = vmatmul.bf16.gmra.mxu0 %v111
  %v307 = vpop.f32.mrf.mxu0
  %v308 = vadd.f32 0.0, %v307
  %v309 = vpop.f32.mrf.mxu0
  %310 = vdwg.mxu0
  %311 = vst [vmem:[%s3] sm:$0xff] %v282
  %312 = vst [vmem:[%s3 + $0x8] sm:$0xff] %v295
  %313 = vst [vmem:[%s3 + $0x10] sm:$0xff] %v308
  // Predicated region
  $region14: #{causal_gin_forward.10} parent=0 // pred_check
    _
  $region15: #{causal_gin_forward.10} parent=0 // pred_check_branch
    %315 = sbr.rel (0) target = $region17
  $region16: #{causal_gin_forward.10} parent=0 // pred_region
    _
  $region17: #{causal_gin_forward.10} parent=0 // pred_fallthru
    _
  // Predicated region
  $region18: #{causal_gin_forward.10} parent=0 // pred_check
    _
  $region19: #{causal_gin_forward.10} parent=0 // pred_check_branch
    %317 = sbr.rel (0) target = $region21
  $region20: #{causal_gin_forward.10} parent=0 // pred_region
    _
  $region21: #{causal_gin_forward.10} parent=0 // pred_fallthru
    _

// kernel: causal_gin_forward.11
$region0: #{causal_gin_forward.11}
  #allocation0 [shape = 'u32[]', space=smem, size = 0x4, offset = 0x4, fixed_abs, tag = 'smem constant byte address 0x4 - core index']
  #allocation1 [shape = 'u32[72,128]{1,0:T(1,128)}', space=vmem, size = 0x9000, scoped, tag = 'internal scratch']
  %s0 = inlined_call_operand.vmem [shape: f32[3,8,128], index: 0, kind: input, shape index: {}]
  %s1 = inlined_call_operand.vmem [shape: f32[8,1], index: 1, kind: input, shape index: {}]
  %s2 = inlined_call_operand.vmem [shape: f32[3,1,128], index: 2, kind: input, shape index: {}]
  %s3 = inlined_call_operand.vmem [shape: f32[3,1,128], index: 3, kind: input, shape index: {}]
  %s4 = inlined_call_operand.vmem [shape: f32[3,128,128], index: 4, kind: input, shape index: {}]
  %s5 = inlined_call_operand.vmem [shape: f32[3,1,128], index: 5, kind: input, shape index: {}]
  %s6 = inlined_call_operand.vmem [shape: f32[3,1,128], index: 6, kind: input, shape index: {}]
  %s7 = inlined_call_operand.vmem [shape: f32[3,1,128], index: 7, kind: input, shape index: {}]
  %s8 = inlined_call_operand.vmem [shape: f32[3,128,128], index: 8, kind: input, shape index: {}]
  %s9 = inlined_call_operand.vmem [shape: f32[3,1,128], index: 9, kind: input, shape index: {}]
  %s10 = inlined_call_operand.vmem [shape: f32[3,8,128], index: 10, kind: output, shape index: {}]
  %s11 = sld [smem:[#allocation0]]
  $region73: #{causal_gin_forward.11} parent=0
    _
  %s13 = ssub.s32 1, %s11
  %s14 = scalar_select 0, %s13, %s11
  loop: start=0, step=1, limit=5
  $region2: #{causal_gin_forward.11} parent=0 // loop_pre_header
    _
  $region3: #{causal_gin_forward.11} parent=0 // loop_header
    %s16 = sphi 0, %s20
    %p17 = scmp.ge.s32.totalorder %s16, 5
    %s26 = sphi 0, %s28
    %s29 = sphi 0, %s26
    %s30 = sphi 0, %s29
    %s46 = sphi 0, %s30
    %s50 = sphi 0, %s50
    %s52 = sphi 0, %s50
    %s53 = sphi 0, %s52
    %s67 = sphi 0, %s53
    %s73 = sphi 0, %s75
    %s76 = sphi 0, %s73
    %s77 = sphi 0, %s76
    %s93 = sphi 0, %s77
    %s99 = sphi 0, %s101
    %s102 = sphi 0, %s99
    %s103 = sphi 0, %s102
    %s119 = sphi 0, %s103
    %s125 = sphi 0, %s127
    %s128 = sphi 0, %s125
    %s129 = sphi 0, %s128
    %s145 = sphi 0, %s129
    %s151 = sphi 0, %s153
    %s154 = sphi 0, %s151
    %s155 = sphi 0, %s154
    %s171 = sphi 0, %s155
    %s177 = sphi 0, %s179
    %s180 = sphi 0, %s177
    %s181 = sphi 0, %s180
    %s197 = sphi 0, %s181
    %s203 = sphi 0, %s205
    %s206 = sphi 0, %s203
    %s207 = sphi 0, %s206
    %s223 = sphi 0, %s207
    %s229 = sphi 0, %s231
    %s232 = sphi 0, %s229
    %s233 = sphi 0, %s232
    %s249 = sphi 0, %s233
    %s255 = sphi 0, %s257
    %s258 = sphi 0, %s255
    %s259 = sphi 0, %s258
    %s275 = sphi 0, %s259
    %s281 = sphi 0, %s283
    %s284 = sphi 0, %s281
    %s285 = sphi 0, %s284
    %s301 = sphi 0, %s285
  $region4: #{causal_gin_forward.11} parent=0 // loop_header_branch
    %19 = sbr.rel (%p17) target = $region8
  $region5: #{causal_gin_forward.11} parent=0 // loop_body
    %s21 = ssub.s32 %s16, 1
    %s22 = ssub.s32 %s16, 2
    %s23 = sadd.s32 %s16, 1
    %s24 = ssub.s32 %s16, %s23
    %p25 = scmp.eq.s32.totalorder %s24, 0
    %s27 = sadd.s32 %s26, 1
    %s28 = scalar_select %p25, %s26, %s27
    %p31 = pneg %p25
    %p32 = scmp.eq.s32.totalorder %s16, 2
    %p33 = por %p31, %p32
    %p34 = scmp.ne.s32.totalorder %s26, %s29
    %p35 = scmp.eq.s32.totalorder %s16, 0
    %p36 = por %p34, %p35
    %p37 = scmp.ne.s32.totalorder %s26, %s29
    %p38 = scmp.eq.s32.totalorder %s21, 2
    %p39 = por %p37, %p38
    %p40 = scmp.ne.s32.totalorder %s29, %s30
    %p41 = scmp.eq.s32.totalorder %s21, 0
    %p42 = por %p40, %p41
    %p43 = scmp.ne.s32.totalorder %s29, %s30
    %p44 = scmp.eq.s32.totalorder %s22, 2
    %p45 = por %p43, %p44
    %p47 = scmp.ne.s32.totalorder %s30, %s46
    %p48 = scmp.eq.s32.totalorder %s22, 0
    %p49 = por %p47, %p48
    %s51 = sadd.s32 %s50, 1
    %p54 = scmp.eq.s32.totalorder %s16, 2
    %p55 = scmp.ne.s32.totalorder %s50, %s52
    %p56 = scmp.eq.s32.totalorder %s16, 0
    %p57 = por %p55, %p56
    %p58 = scmp.ne.s32.totalorder %s50, %s52
    %p59 = scmp.eq.s32.totalorder %s21, 2
    %p60 = por %p58, %p59
    %p61 = scmp.ne.s32.totalorder %s52, %s53
    %p62 = scmp.eq.s32.totalorder %s21, 0
    %p63 = por %p61, %p62
    %p64 = scmp.ne.s32.totalorder %s52, %s53
    %p65 = scmp.eq.s32.totalorder %s22, 2
    %p66 = por %p64, %p65
    %p68 = scmp.ne.s32.totalorder %s53, %s67
    %p69 = scmp.eq.s32.totalorder %s22, 0
    %p70 = por %p68, %p69
    %s71 = ssub.s32 %s16, %s23
    %p72 = scmp.eq.s32.totalorder %s71, 0
    %s74 = sadd.s32 %s73, 1
    %s75 = scalar_select %p72, %s73, %s74
    %p78 = pneg %p72
    %p79 = scmp.eq.s32.totalorder %s16, 2
    %p80 = por %p78, %p79
    %p81 = scmp.ne.s32.totalorder %s73, %s76
    %p82 = scmp.eq.s32.totalorder %s16, 0
    %p83 = por %p81, %p82
    %p84 = scmp.ne.s32.totalorder %s73, %s76
    %p85 = scmp.eq.s32.totalorder %s21, 2
    %p86 = por %p84, %p85
    %p87 = scmp.ne.s32.totalorder %s76, %s77
    %p88 = scmp.eq.s32.totalorder %s21, 0
    %p89 = por %p87, %p88
    %p90 = scmp.ne.s32.totalorder %s76, %s77
    %p91 = scmp.eq.s32.totalorder %s22, 2
    %p92 = por %p90, %p91
    %p94 = scmp.ne.s32.totalorder %s77, %s93
    %p95 = scmp.eq.s32.totalorder %s22, 0
    %p96 = por %p94, %p95
    %s97 = ssub.s32 %s16, %s23
    %p98 = scmp.eq.s32.totalorder %s97, 0
    %s100 = sadd.s32 %s99, 1
    %s101 = scalar_select %p98, %s99, %s100
    %p104 = pneg %p98
    %p105 = scmp.eq.s32.totalorder %s16, 2
    %p106 = por %p104, %p105
    %p107 = scmp.ne.s32.totalorder %s99, %s102
    %p108 = scmp.eq.s32.totalorder %s16, 0
    %p109 = por %p107, %p108
    %p110 = scmp.ne.s32.totalorder %s99, %s102
    %p111 = scmp.eq.s32.totalorder %s21, 2
    %p112 = por %p110, %p111
    %p113 = scmp.ne.s32.totalorder %s102, %s103
    %p114 = scmp.eq.s32.totalorder %s21, 0
    %p115 = por %p113, %p114
    %p116 = scmp.ne.s32.totalorder %s102, %s103
    %p117 = scmp.eq.s32.totalorder %s22, 2
    %p118 = por %p116, %p117
    %p120 = scmp.ne.s32.totalorder %s103, %s119
    %p121 = scmp.eq.s32.totalorder %s22, 0
    %p122 = por %p120, %p121
    %s123 = ssub.s32 %s16, %s23
    %p124 = scmp.eq.s32.totalorder %s123, 0
    %s126 = sadd.s32 %s125, 1
    %s127 = scalar_select %p124, %s125, %s126
    %p130 = pneg %p124
    %p131 = scmp.eq.s32.totalorder %s16, 2
    %p132 = por %p130, %p131
    %p133 = scmp.ne.s32.totalorder %s125, %s128
    %p134 = scmp.eq.s32.totalorder %s16, 0
    %p135 = por %p133, %p134
    %p136 = scmp.ne.s32.totalorder %s125, %s128
    %p137 = scmp.eq.s32.totalorder %s21, 2
    %p138 = por %p136, %p137
    %p139 = scmp.ne.s32.totalorder %s128, %s129
    %p140 = scmp.eq.s32.totalorder %s21, 0
    %p141 = por %p139, %p140
    %p142 = scmp.ne.s32.totalorder %s128, %s129
    %p143 = scmp.eq.s32.totalorder %s22, 2
    %p144 = por %p142, %p143
    %p146 = scmp.ne.s32.totalorder %s129, %s145
    %p147 = scmp.eq.s32.totalorder %s22, 0
    %p148 = por %p146, %p147
    %s149 = ssub.s32 %s16, %s23
    %p150 = scmp.eq.s32.totalorder %s149, 0
    %s152 = sadd.s32 %s151, 1
    %s153 = scalar_select %p150, %s151, %s152
    %p156 = pneg %p150
    %p157 = scmp.eq.s32.totalorder %s16, 2
    %p158 = por %p156, %p157
    %p159 = scmp.ne.s32.totalorder %s151, %s154
    %p160 = scmp.eq.s32.totalorder %s16, 0
    %p161 = por %p159, %p160
    %p162 = scmp.ne.s32.totalorder %s151, %s154
    %p163 = scmp.eq.s32.totalorder %s21, 2
    %p164 = por %p162, %p163
    %p165 = scmp.ne.s32.totalorder %s154, %s155
    %p166 = scmp.eq.s32.totalorder %s21, 0
    %p167 = por %p165, %p166
    %p168 = scmp.ne.s32.totalorder %s154, %s155
    %p169 = scmp.eq.s32.totalorder %s22, 2
    %p170 = por %p168, %p169
    %p172 = scmp.ne.s32.totalorder %s155, %s171
    %p173 = scmp.eq.s32.totalorder %s22, 0
    %p174 = por %p172, %p173
    %s175 = ssub.s32 %s16, %s23
    %p176 = scmp.eq.s32.totalorder %s175, 0
    %s178 = sadd.s32 %s177, 1
    %s179 = scalar_select %p176, %s177, %s178
    %p182 = pneg %p176
    %p183 = scmp.eq.s32.totalorder %s16, 2
    %p184 = por %p182, %p183
    %p185 = scmp.ne.s32.totalorder %s177, %s180
    %p186 = scmp.eq.s32.totalorder %s16, 0
    %p187 = por %p185, %p186
    %p188 = scmp.ne.s32.totalorder %s177, %s180
    %p189 = scmp.eq.s32.totalorder %s21, 2
    %p190 = por %p188, %p189
    %p191 = scmp.ne.s32.totalorder %s180, %s181
    %p192 = scmp.eq.s32.totalorder %s21, 0
    %p193 = por %p191, %p192
    %p194 = scmp.ne.s32.totalorder %s180, %s181
    %p195 = scmp.eq.s32.totalorder %s22, 2
    %p196 = por %p194, %p195
    %p198 = scmp.ne.s32.totalorder %s181, %s197
    %p199 = scmp.eq.s32.totalorder %s22, 0
    %p200 = por %p198, %p199
    %s201 = ssub.s32 %s16, %s23
    %p202 = scmp.eq.s32.totalorder %s201, 0
    %s204 = sadd.s32 %s203, 1
    %s205 = scalar_select %p202, %s203, %s204
    %p208 = pneg %p202
    %p209 = scmp.eq.s32.totalorder %s16, 2
    %p210 = por %p208, %p209
    %p211 = scmp.ne.s32.totalorder %s203, %s206
    %p212 = scmp.eq.s32.totalorder %s16, 0
    %p213 = por %p211, %p212
    %p214 = scmp.ne.s32.totalorder %s203, %s206
    %p215 = scmp.eq.s32.totalorder %s21, 2
    %p216 = por %p214, %p215
    %p217 = scmp.ne.s32.totalorder %s206, %s207
    %p218 = scmp.eq.s32.totalorder %s21, 0
    %p219 = por %p217, %p218
    %p220 = scmp.ne.s32.totalorder %s206, %s207
    %p221 = scmp.eq.s32.totalorder %s22, 2
    %p222 = por %p220, %p221
    %p224 = scmp.ne.s32.totalorder %s207, %s223
    %p225 = scmp.eq.s32.totalorder %s22, 0
    %p226 = por %p224, %p225
    %s227 = ssub.s32 %s16, %s23
    %p228 = scmp.eq.s32.totalorder %s227, 0
    %s230 = sadd.s32 %s229, 1
    %s231 = scalar_select %p228, %s229, %s230
    %p234 = pneg %p228
    %p235 = scmp.eq.s32.totalorder %s16, 2
    %p236 = por %p234, %p235
    %p237 = scmp.ne.s32.totalorder %s229, %s232
    %p238 = scmp.eq.s32.totalorder %s16, 0
    %p239 = por %p237, %p238
    %p240 = scmp.ne.s32.totalorder %s229, %s232
    %p241 = scmp.eq.s32.totalorder %s21, 2
    %p242 = por %p240, %p241
    %p243 = scmp.ne.s32.totalorder %s232, %s233
    %p244 = scmp.eq.s32.totalorder %s21, 0
    %p245 = por %p243, %p244
    %p246 = scmp.ne.s32.totalorder %s232, %s233
    %p247 = scmp.eq.s32.totalorder %s22, 2
    %p248 = por %p246, %p247
    %p250 = scmp.ne.s32.totalorder %s233, %s249
    %p251 = scmp.eq.s32.totalorder %s22, 0
    %p252 = por %p250, %p251
    %s253 = ssub.s32 %s16, %s23
    %p254 = scmp.eq.s32.totalorder %s253, 0
    %s256 = sadd.s32 %s255, 1
    %s257 = scalar_select %p254, %s255, %s256
    %p260 = pneg %p254
    %p261 = scmp.eq.s32.totalorder %s16, 2
    %p262 = por %p260, %p261
    %p263 = scmp.ne.s32.totalorder %s255, %s258
    %p264 = scmp.eq.s32.totalorder %s16, 0
    %p265 = por %p263, %p264
    %p266 = scmp.ne.s32.totalorder %s255, %s258
    %p267 = scmp.eq.s32.totalorder %s21, 2
    %p268 = por %p266, %p267
    %p269 = scmp.ne.s32.totalorder %s258, %s259
    %p270 = scmp.eq.s32.totalorder %s21, 0
    %p271 = por %p269, %p270
    %p272 = scmp.ne.s32.totalorder %s258, %s259
    %p273 = scmp.eq.s32.totalorder %s22, 2
    %p274 = por %p272, %p273
    %p276 = scmp.ne.s32.totalorder %s259, %s275
    %p277 = scmp.eq.s32.totalorder %s22, 0
    %p278 = por %p276, %p277
    %s279 = ssub.s32 %s16, %s23
    %p280 = scmp.eq.s32.totalorder %s279, 0
    %s282 = sadd.s32 %s281, 1
    %s283 = scalar_select %p280, %s281, %s282
    %p286 = pneg %p280
    %p287 = scmp.eq.s32.totalorder %s16, 2
    %p288 = por %p286, %p287
    %p289 = scmp.ne.s32.totalorder %s281, %s284
    %p290 = scmp.eq.s32.totalorder %s16, 0
    %p291 = por %p289, %p290
    %p292 = scmp.ne.s32.totalorder %s281, %s284
    %p293 = scmp.eq.s32.totalorder %s21, 2
    %p294 = por %p292, %p293
    %p295 = scmp.ne.s32.totalorder %s284, %s285
    %p296 = scmp.eq.s32.totalorder %s21, 0
    %p297 = por %p295, %p296
    %p298 = scmp.ne.s32.totalorder %s284, %s285
    %p299 = scmp.eq.s32.totalorder %s22, 2
    %p300 = por %p298, %p299
    %p302 = scmp.ne.s32.totalorder %s285, %s301
    %p303 = scmp.eq.s32.totalorder %s22, 0
    %p304 = por %p302, %p303
    %p305 = scmp.le.s32.totalorder 1, %s16
    %p306 = scmp.lt.s32.totalorder %s16, 4
    %p307 = pnand %p305, %p306
    %p308 = pneg %p307
    // Predicated region
    $region9: #{causal_gin_forward.11} parent=5 // pred_check
      _
    $region10: #{causal_gin_forward.11} parent=5 // pred_check_branch
      %310 = sbr.rel (%p307) target = $region12
    $region11: #{causal_gin_forward.11} parent=5 // pred_region
      %s311 = ssub.s32 %s16, 1
      // Predicated region
      $region13: #{causal_gin_forward.11} parent=11 // pred_check
        %p312 = pneg %p63
      $region14: #{causal_gin_forward.11} parent=11 // pred_check_branch
        %314 = sbr.rel (%p312) target = $region16
      $region15: #{causal_gin_forward.11} parent=11 // pred_region
        _
      $region16: #{causal_gin_forward.11} parent=11 // pred_fallthru
        _
    $region12: #{causal_gin_forward.11} parent=5 // pred_fallthru
      _
    %p315 = scmp.lt.s32.totalorder %s16, 3
    // Predicated region
    $region17: #{causal_gin_forward.11} parent=5 // pred_check
      %p316 = pneg %p315
    $region18: #{causal_gin_forward.11} parent=5 // pred_check_branch
      %318 = sbr.rel (%p316) target = $region20
    $region19: #{causal_gin_forward.11} parent=5 // pred_region
      // Predicated region
      $region21: #{causal_gin_forward.11} parent=19 // pred_check
        %p319 = pneg %p36
      $region22: #{causal_gin_forward.11} parent=19 // pred_check_branch
        %321 = sbr.rel (%p319) target = $region24
      $region23: #{causal_gin_forward.11} parent=19 // pred_region
        %p322 = scmp.lt.s32.totalorder %s16, 2
        %s323 = scalar_select %p322, %s16, 2
        %s324 = smul.addr %s323, 8
        %s325 = scalar_lea.vmem %s0, %s324
      $region24: #{causal_gin_forward.11} parent=19 // pred_fallthru
        _
      // Predicated region
      $region25: #{causal_gin_forward.11} parent=19 // pred_check
        %p326 = pneg %p83
      $region26: #{causal_gin_forward.11} parent=19 // pred_check_branch
        %328 = sbr.rel (%p326) target = $region28
      $region27: #{causal_gin_forward.11} parent=19 // pred_region
        %p329 = scmp.lt.s32.totalorder %s16, 2
        %s330 = scalar_select %p329, %s16, 2
        %s331 = scalar_lea.vmem %s2, %s330
      $region28: #{causal_gin_forward.11} parent=19 // pred_fallthru
        _
      // Predicated region
      $region29: #{causal_gin_forward.11} parent=19 // pred_check
        %p332 = pneg %p109
      $region30: #{causal_gin_forward.11} parent=19 // pred_check_branch
        %334 = sbr.rel (%p332) target = $region32
      $region31: #{causal_gin_forward.11} parent=19 // pred_region
        %p335 = scmp.lt.s32.totalorder %s16, 2
        %s336 = scalar_select %p335, %s16, 2
        %s337 = scalar_lea.vmem %s3, %s336
      $region32: #{causal_gin_forward.11} parent=19 // pred_fallthru
        _
      // Predicated region
      $region33: #{causal_gin_forward.11} parent=19 // pred_check
        %p338 = pneg %p135
      $region34: #{causal_gin_forward.11} parent=19 // pred_check_branch
        %340 = sbr.rel (%p338) target = $region36
      $region35: #{causal_gin_forward.11} parent=19 // pred_region
        %p341 = scmp.lt.s32.totalorder %s16, 2
        %s342 = scalar_select %p341, %s16, 2
        %s343 = smul.addr %s342, 16
        %s344 = smul.addr %s343, 8
        %s345 = scalar_lea.vmem %s4, %s344
      $region36: #{causal_gin_forward.11} parent=19 // pred_fallthru
        _
      // Predicated region
      $region37: #{causal_gin_forward.11} parent=19 // pred_check
        %p346 = pneg %p161
      $region38: #{causal_gin_forward.11} parent=19 // pred_check_branch
        %348 = sbr.rel (%p346) target = $region40
      $region39: #{causal_gin_forward.11} parent=19 // pred_region
        %p349 = scmp.lt.s32.totalorder %s16, 2
        %s350 = scalar_select %p349, %s16, 2
        %s351 = scalar_lea.vmem %s5, %s350
      $region40: #{causal_gin_forward.11} parent=19 // pred_fallthru
        _
      // Predicated region
      $region41: #{causal_gin_forward.11} parent=19 // pred_check
        %p352 = pneg %p187
      $region42: #{causal_gin_forward.11} parent=19 // pred_check_branch
        %354 = sbr.rel (%p352) target = $region44
      $region43: #{causal_gin_forward.11} parent=19 // pred_region
        %p355 = scmp.lt.s32.totalorder %s16, 2
        %s356 = scalar_select %p355, %s16, 2
        %s357 = scalar_lea.vmem %s6, %s356
      $region44: #{causal_gin_forward.11} parent=19 // pred_fallthru
        _
      // Predicated region
      $region45: #{causal_gin_forward.11} parent=19 // pred_check
        %p358 = pneg %p213
      $region46: #{causal_gin_forward.11} parent=19 // pred_check_branch
        %360 = sbr.rel (%p358) target = $region48
      $region47: #{causal_gin_forward.11} parent=19 // pred_region
        %p361 = scmp.lt.s32.totalorder %s16, 2
        %s362 = scalar_select %p361, %s16, 2
        %s363 = scalar_lea.vmem %s7, %s362
      $region48: #{causal_gin_forward.11} parent=19 // pred_fallthru
        _
      // Predicated region
      $region49: #{causal_gin_forward.11} parent=19 // pred_check
        %p364 = pneg %p239
      $region50: #{causal_gin_forward.11} parent=19 // pred_check_branch
        %366 = sbr.rel (%p364) target = $region52
      $region51: #{causal_gin_forward.11} parent=19 // pred_region
        %p367 = scmp.lt.s32.totalorder %s16, 2
        %s368 = scalar_select %p367, %s16, 2
        %s369 = smul.addr %s368, 16
        %s370 = smul.addr %s369, 8
        %s371 = scalar_lea.vmem %s8, %s370
      $region52: #{causal_gin_forward.11} parent=19 // pred_fallthru
        _
      // Predicated region
      $region53: #{causal_gin_forward.11} parent=19 // pred_check
        %p372 = pneg %p265
      $region54: #{causal_gin_forward.11} parent=19 // pred_check_branch
        %374 = sbr.rel (%p372) target = $region56
      $region55: #{causal_gin_forward.11} parent=19 // pred_region
        %p375 = scmp.lt.s32.totalorder %s16, 2
        %s376 = scalar_select %p375, %s16, 2
        %s377 = scalar_lea.vmem %s9, %s376
      $region56: #{causal_gin_forward.11} parent=19 // pred_fallthru
        _
    $region20: #{causal_gin_forward.11} parent=5 // pred_fallthru
      _
    %p378 = scmp.le.s32.totalorder 1, %s16
    %p379 = scmp.lt.s32.totalorder %s16, 4
    %p380 = pnand %p378, %p379
    %p381 = pneg %p380
    // Predicated region
    $region57: #{causal_gin_forward.11} parent=5 // pred_check
      _
    $region58: #{causal_gin_forward.11} parent=5 // pred_check_branch
      %383 = sbr.rel (%p380) target = $region60
    $region59: #{causal_gin_forward.11} parent=5 // pred_region
      %s384 = ssub.s32 %s16, 1
      %p385 = scmp.lt.s32.totalorder %s21, 2
      %s386 = scalar_select %p385, %s21, 2
      %s387 = smul.addr %s386, 8
      %s388 = scalar_lea.vmem %s0, %s387
      %p389 = pneg %p42
      %p390 = pneg %p39
      %p391 = pneg %p63
      %p392 = pneg %p60
      %p393 = scmp.lt.s32.totalorder %s21, 2
      %s394 = scalar_select %p393, %s21, 2
      %s395 = scalar_lea.vmem %s2, %s394
      %p396 = pneg %p89
      %p397 = pneg %p86
      %p398 = scmp.lt.s32.totalorder %s21, 2
      %s399 = scalar_select %p398, %s21, 2
      %s400 = scalar_lea.vmem %s3, %s399
      %p401 = pneg %p115
      %p402 = pneg %p112
      %p403 = scmp.lt.s32.totalorder %s21, 2
      %s404 = scalar_select %p403, %s21, 2
      %s405 = smul.addr %s404, 16
      %s406 = smul.addr %s405, 8
      %s407 = scalar_lea.vmem %s4, %s406
      %p408 = pneg %p141
      %p409 = pneg %p138
      %p410 = scmp.lt.s32.totalorder %s21, 2
      %s411 = scalar_select %p410, %s21, 2
      %s412 = scalar_lea.vmem %s5, %s411
      %p413 = pneg %p167
      %p414 = pneg %p164
      %p415 = scmp.lt.s32.totalorder %s21, 2
      %s416 = scalar_select %p415, %s21, 2
      %s417 = scalar_lea.vmem %s6, %s416
      %p418 = pneg %p193
      %p419 = pneg %p190
      %p420 = scmp.lt.s32.totalorder %s21, 2
      %s421 = scalar_select %p420, %s21, 2
      %s422 = scalar_lea.vmem %s7, %s421
      %p423 = pneg %p219
      %p424 = pneg %p216
      %p425 = scmp.lt.s32.totalorder %s21, 2
      %s426 = scalar_select %p425, %s21, 2
      %s427 = smul.addr %s426, 16
      %s428 = smul.addr %s427, 8
      %s429 = scalar_lea.vmem %s8, %s428
      %p430 = pneg %p245
      %p431 = pneg %p242
      %p432 = scmp.lt.s32.totalorder %s21, 2
      %s433 = scalar_select %p432, %s21, 2
      %s434 = scalar_lea.vmem %s9, %s433
      %p435 = pneg %p271
      %p436 = pneg %p268
      %p437 = pneg %p297
      %p438 = pneg %p294
      %p439 = scmp.lt.s32.totalorder %s21, 2
      %s440 = scalar_select %p439, %s21, 2
      %s441 = smul.addr %s440, 8
      %s442 = scalar_lea.vmem %s10, %s441
      %p443 = scmp.lt.s32.totalorder %s21, 2
      %s444 = scalar_select %p443, %s21, 2
      %s445 = smul.addr %s444, 8
      %s446 = scalar_lea.vmem %s0, %s445
      %p447 = scmp.lt.s32.totalorder %s21, 2
      %s448 = scalar_select %p447, %s21, 2
      %s449 = scalar_lea.vmem %s2, %s448
      %p450 = scmp.lt.s32.totalorder %s21, 2
      %s451 = scalar_select %p450, %s21, 2
      %s452 = scalar_lea.vmem %s3, %s451
      %p453 = scmp.lt.s32.totalorder %s21, 2
      %s454 = scalar_select %p453, %s21, 2
      %s455 = smul.addr %s454, 16
      %s456 = smul.addr %s455, 8
      %s457 = scalar_lea.vmem %s4, %s456
      %p458 = scmp.lt.s32.totalorder %s21, 2
      %s459 = scalar_select %p458, %s21, 2
      %s460 = scalar_lea.vmem %s5, %s459
      %p461 = scmp.lt.s32.totalorder %s21, 2
      %s462 = scalar_select %p461, %s21, 2
      %s463 = scalar_lea.vmem %s6, %s462
      %p464 = scmp.lt.s32.totalorder %s21, 2
      %s465 = scalar_select %p464, %s21, 2
      %s466 = scalar_lea.vmem %s7, %s465
      %p467 = scmp.lt.s32.totalorder %s21, 2
      %s468 = scalar_select %p467, %s21, 2
      %s469 = smul.addr %s468, 16
      %s470 = smul.addr %s469, 8
      %s471 = scalar_lea.vmem %s8, %s470
      %p472 = scmp.lt.s32.totalorder %s21, 2
      %s473 = scalar_select %p472, %s21, 2
      %s474 = scalar_lea.vmem %s9, %s473
      %p475 = scmp.lt.s32.totalorder %s21, 2
      %s476 = scalar_select %p475, %s21, 2
      %s477 = smul.addr %s476, 8
      %s478 = scalar_lea.vmem %s10, %s477
      %v479 = vld [vmem:[%s1] sm:$0xff]
      %v480 = vld [vmem:[%s446] sm:$0xff]
      %v481 = vld [vmem:[%s449] sm:$0x1]
      %v482 = vld [vmem:[%s452] sm:$0x1]
      %v483 = vrot.slane %v480, 4
      %v484 = vadd.f32 %v480, %v483
      %v485 = vrot.slane %v484, 2
      %v486 = vadd.f32 %v484, %v485
      %v487 = vrot.slane %v486, 1
      %v488 = vadd.f32 %v486, %v487
      %v489 = vmul.f32 %v488, 0.25
      %v490 = vsub.f32 %v480, %v489
      %492 = vset.pattern.permute.xlu0 0
      %493 = vperm.xlu0 %492, %v479
      %v494 = vpop.permute.xlu0 %493
      %v496 = vmul.f32 %v490, %v494
      %v497 = vmul.f32 %v496, %v496
      %v498 = vrot.slane %v497, 4
      %v499 = vadd.f32 %v497, %v498
      %v500 = vrot.slane %v499, 2
      %v501 = vadd.f32 %v499, %v500
      %v502 = vrot.slane %v501, 1
      %v503 = vadd.f32 %v501, %v502
      %v504 = vmul.f32 %v503, 0.25
      %v505 = vadd.f32 %v504, 1e-05
      %v506 = vrsqrt.pop %v505
      %v507 = vmul.f32 %v506, %v505
      %v508 = vmul.f32 %v507, %v506
      %v509 = vmul.f32 0.5, %v508
      %v510 = vsub.f32 1.5, %v509
      %v511 = vmul.f32 %v506, %v510
      %vm512 = vweird.f32 %v505
      %vm513 = vweird.f32 %v506
      %vm514 = vmor %vm512, %vm513
      %v515 = vsel %vm514, %v506, %v511
      %v516 = vmul.f32 %v490, %v515
      %v518 = vperm.slane %v481, 0
      %v520 = vmul.f32 %v516, %v518
      %v522 = vperm.slane %v482, 0
      %v524 = vadd.f32 %v520, %v522
      %v525 = vld [vmem:[%s457] sm:$0xff]
      %v526 = vld [vmem:[%s457 + $0x8] sm:$0xff]
      %v527 = vld [vmem:[%s457 + $0x10] sm:$0xff]
      %v528 = vld [vmem:[%s457 + $0x18] sm:$0xff]
      %v529 = vld [vmem:[%s457 + $0x20] sm:$0xff]
      %v530 = vld [vmem:[%s457 + $0x28] sm:$0xff]
      %v531 = vld [vmem:[%s457 + $0x30] sm:$0xff]
      %v532 = vld [vmem:[%s457 + $0x38] sm:$0xff]
      %v533 = vld [vmem:[%s457 + $0x40] sm:$0xff]
      %v534 = vld [vmem:[%s457 + $0x48] sm:$0xff]
      %v535 = vld [vmem:[%s457 + $0x50] sm:$0xff]
      %v536 = vld [vmem:[%s457 + $0x58] sm:$0xff]
      %v537 = vld [vmem:[%s457 + $0x60] sm:$0xff]
      %v538 = vld [vmem:[%s457 + $0x68] sm:$0xff]
      %v539 = vld [vmem:[%s457 + $0x70] sm:$0xff]
      %v540 = vld [vmem:[%s457 + $0x78] sm:$0xff]
      %v541 = vld [vmem:[%s460] sm:$0x1]
      %v543 = vperm.slane %v541, 0
      %545 = vmatpush.msra.mxu0 %v540
      %546 = vmatpush.msra.mxu0 %v539
      %547 = vmatpush.msra.mxu0 %v538
      %548 = vmatpush.msra.mxu0 %v537
      %549 = vmatpush.msra.mxu0 %v536
      %550 = vmatpush.msra.mxu0 %v535
      %551 = vmatpush.msra.mxu0 %v534
      %552 = vmatpush.msra.mxu0 %v533
      %553 = vmatpush.msra.mxu0 %v532
      %554 = vmatpush.msra.mxu0 %v531
      %555 = vmatpush.msra.mxu0 %v530
      %556 = vmatpush.msra.mxu0 %v529
      %557 = vmatpush.msra.mxu0 %v528
      %558 = vmatpush.msra.mxu0 %v527
      %559 = vmatpush.msra.mxu0 %v526
      %560 = vmatpush.msra.mxu0 %v525
      %561 = vmatmul.f32.gmra.mxu0 %v524
      %v562 = vpop.f32.mrf.mxu0
      %v563 = vadd.f32 %v543, %v562
      %564 = vdwg.mxu0
      %v565 = vmax.f32 %v563, 0.0
      %v566 = vmul.f32 %v565, %v494
      %v567 = vld [vmem:[%s463] sm:$0x1]
      %v568 = vld [vmem:[%s466] sm:$0x1]
      %v569 = vrot.slane %v566, 4
      %v570 = vadd.f32 %v566, %v569
      %v571 = vrot.slane %v570, 2
      %v572 = vadd.f32 %v570, %v571
      %v573 = vrot.slane %v572, 1
      %v574 = vadd.f32 %v572, %v573
      %v575 = vmul.f32 %v574, 0.25
      %v576 = vsub.f32 %v566, %v575
      %v577 = vmul.f32 %v576, %v494
      %v578 = vmul.f32 %v577, %v577
      %v579 = vrot.slane %v578, 4
      %v580 = vadd.f32 %v578, %v579
      %v581 = vrot.slane %v580, 2
      %v582 = vadd.f32 %v580, %v581
      %v583 = vrot.slane %v582, 1
      %v584 = vadd.f32 %v582, %v583
      %v585 = vmul.f32 %v584, 0.25
      %v586 = vadd.f32 %v585, 1e-05
      %v587 = vrsqrt.pop %v586
      %v588 = vmul.f32 %v587, %v586
      %v589 = vmul.f32 %v588, %v587
      %v590 = vmul.f32 0.5, %v589
      %v591 = vsub.f32 1.5, %v590
      %v592 = vmul.f32 %v587, %v591
      %vm593 = vweird.f32 %v586
      %vm594 = vweird.f32 %v587
      %vm595 = vmor %vm593, %vm594
      %v596 = vsel %vm595, %v587, %v592
      %v597 = vmul.f32 %v576, %v596
      %v599 = vperm.slane %v567, 0
      %v601 = vmul.f32 %v597, %v599
      %v603 = vperm.slane %v568, 0
      %v605 = vadd.f32 %v601, %v603
      %v606 = vld [vmem:[%s471] sm:$0xff]
      %v607 = vld [vmem:[%s471 + $0x8] sm:$0xff]
      %v608 = vld [vmem:[%s471 + $0x10] sm:$0xff]
      %v609 = vld [vmem:[%s471 + $0x18] sm:$0xff]
      %v610 = vld [vmem:[%s471 + $0x20] sm:$0xff]
      %v611 = vld [vmem:[%s471 + $0x28] sm:$0xff]
      %v612 = vld [vmem:[%s471 + $0x30] sm:$0xff]
      %v613 = vld [vmem:[%s471 + $0x38] sm:$0xff]
      %v614 = vld [vmem:[%s471 + $0x40] sm:$0xff]
      %v615 = vld [vmem:[%s471 + $0x48] sm:$0xff]
      %v616 = vld [vmem:[%s471 + $0x50] sm:$0xff]
      %v617 = vld [vmem:[%s471 + $0x58] sm:$0xff]
      %v618 = vld [vmem:[%s471 + $0x60] sm:$0xff]
      %v619 = vld [vmem:[%s471 + $0x68] sm:$0xff]
      %v620 = vld [vmem:[%s471 + $0x70] sm:$0xff]
      %v621 = vld [vmem:[%s471 + $0x78] sm:$0xff]
      %v622 = vld [vmem:[%s474] sm:$0x1]
      %v624 = vperm.slane %v622, 0
      %626 = vmatpush.msra.mxu0 %v621
      %627 = vmatpush.msra.mxu0 %v620
      %628 = vmatpush.msra.mxu0 %v619
      %629 = vmatpush.msra.mxu0 %v618
      %630 = vmatpush.msra.mxu0 %v617
      %631 = vmatpush.msra.mxu0 %v616
      %632 = vmatpush.msra.mxu0 %v615
      %633 = vmatpush.msra.mxu0 %v614
      %634 = vmatpush.msra.mxu0 %v613
      %635 = vmatpush.msra.mxu0 %v612
      %636 = vmatpush.msra.mxu0 %v611
      %637 = vmatpush.msra.mxu0 %v610
      %638 = vmatpush.msra.mxu0 %v609
      %639 = vmatpush.msra.mxu0 %v608
      %640 = vmatpush.msra.mxu0 %v607
      %641 = vmatpush.msra.mxu0 %v606
      %642 = vmatmul.f32.gmra.mxu0 %v605
      %v643 = vpop.f32.mrf.mxu0
      %v644 = vadd.f32 %v624, %v643
      %645 = vdwg.mxu0
      %646 = vst [vmem:[%s478] sm:$0xff] %v644
      %p647 = scmp.lt.s32.totalorder %s21, 2
      %s648 = scalar_select %p647, %s21, 2
      %s649 = smul.addr %s648, 8
      %s650 = scalar_lea.vmem %s10, %s649
      // Predicated region
      $region61: #{causal_gin_forward.11} parent=59 // pred_check
        %p651 = pneg %p294
      $region62: #{causal_gin_forward.11} parent=59 // pred_check_branch
        %653 = sbr.rel (%p651) target = $region64
      $region63: #{causal_gin_forward.11} parent=59 // pred_region
        _
      $region64: #{causal_gin_forward.11} parent=59 // pred_fallthru
        _
    $region60: #{causal_gin_forward.11} parent=5 // pred_fallthru
      _
    %p654 = scmp.le.s32.totalorder 2, %s16
    // Predicated region
    $region65: #{causal_gin_forward.11} parent=5 // pred_check
      %p655 = pneg %p654
    $region66: #{causal_gin_forward.11} parent=5 // pred_check_branch
      %657 = sbr.rel (%p655) target = $region68
    $region67: #{causal_gin_forward.11} parent=5 // pred_region
      %s658 = ssub.s32 %s16, 2
      // Predicated region
      $region69: #{causal_gin_forward.11} parent=67 // pred_check
        %p659 = pneg %p300
      $region70: #{causal_gin_forward.11} parent=67 // pred_check_branch
        %661 = sbr.rel (%p659) target = $region72
      $region71: #{causal_gin_forward.11} parent=67 // pred_region
        %p662 = scmp.lt.s32.totalorder %s22, 2
        %s663 = scalar_select %p662, %s22, 2
        %s664 = smul.addr %s663, 8
        %s665 = scalar_lea.vmem %s10, %s664
      $region72: #{causal_gin_forward.11} parent=67 // pred_fallthru
        _
    $region68: #{causal_gin_forward.11} parent=5 // pred_fallthru
      _
  $region6: #{causal_gin_forward.11} parent=0 // loop_footer
    %s20 = sadd.s32 1, %s16
  $region7: #{causal_gin_forward.11} parent=0 // loop_footer_branch
    %15 = sbr.rel target = $region3
  $region8: #{causal_gin_forward.11} parent=0 // loop_exit
    _

</llo_original>
